<compile_context>
chip_gen: v5e
topology: v5e:2x2
jax: 0.10.0
libtpu: 0.0.40
codegen_flags: <defaults>
</compile_context>

<pallas_src>
import functools

import jax
import jax.numpy as jnp
from jax.experimental import pallas as pl
from jax.experimental.pallas import tpu as pltpu

# ---- scaled-down, LANE-ALIGNED hyper-params (stand-ins for resnet50 cfg) ----
BATCH = 8
IN_CH = 3
IMG = 16
IN_FEATURES = 128      # stand-in for 2048 (multiple of 128 -> lane-dense)
OUT_FEATURES = 256     # stand-in for 4096 (multiple of 128)
OUT_DIM = 128          # stand-in for _out_feature_dim = 2048 (multiple of 128)
QUEUE_SIZE = 128       # stand-in for 65536 (multiple of 128 lanes, % BATCH == 0)
MOMENTUM = 0.999
TEMPERATURE = 0.2
NUM_CLASSES = 10
BN_EPS = 1e-5
LANE = 128             # TPU lane width (lane-dense output padding)


# ------------------------------ Pallas kernels -------------------------------

def _encoder_kernel(cols_ref, cw_ref, bn2_g_ref, bn2_b_ref,
                    w1_ref, bn1_g_ref, bn1_b_ref, w2_ref, fc_b_ref,
                    o_ref, *, batch, hw):
    """Fused surrogate encoder: conv stem -> BN2d -> ReLU -> GAP -> MLP head
    (Linear -> BN1d -> ReLU -> Linear+b) -> L2 normalize. One pallas_call."""
    # conv3x3 stem as im2col matmul (bf16 operands, f32 MXU accumulation).
    y = jnp.dot(cols_ref[...], cw_ref[...], preferred_element_type=jnp.float32)
    # BatchNorm2d, training-mode stats over all N*H*W rows per channel (f32).
    mu = jnp.mean(y, axis=0, keepdims=True)
    var = jnp.mean(jnp.square(y - mu), axis=0, keepdims=True)
    y = jnp.maximum((y - mu) * jax.lax.rsqrt(var + BN_EPS) * bn2_g_ref[...]
                    + bn2_b_ref[...], 0.0)
    # Global average pool: [B*HW, F] -> [B, HW, F] -> mean over HW
    # (sublane/XLU reduction; no mostly-zero pool-matrix matmul).
    pooled = jnp.mean(y.reshape(batch, hw, y.shape[-1]), axis=1)      # [B, F]
    # MLP head: Linear(no bias) -> BatchNorm1d (batch stats) -> ReLU -> Linear.
    h = jnp.dot(pooled.astype(jnp.bfloat16), w1_ref[...],
                preferred_element_type=jnp.float32)                   # [B, H]
    mu1 = jnp.mean(h, axis=0, keepdims=True)
    var1 = jnp.mean(jnp.square(h - mu1), axis=0, keepdims=True)
    h = jnp.maximum((h - mu1) * jax.lax.rsqrt(var1 + BN_EPS) * bn1_g_ref[...]
                    + bn1_b_ref[...], 0.0)
    z = jnp.dot(h.astype(jnp.bfloat16), w2_ref[...],
                preferred_element_type=jnp.float32) + fc_b_ref[...]   # [B, D]
    # torch F.normalize(dim=1): x / max(||x||, 1e-12) == x * rsqrt(max(||x||^2, 1e-24))
    ss = jnp.sum(z * z, axis=1, keepdims=True)
    o_ref[...] = z * jax.lax.rsqrt(jnp.maximum(ss, 1e-24))


def fused_encoder(cols, p, *, batch, hw):
    m, kc = cols.shape
    f = p["conv_w"].shape[1]
    hid = p["fc_w1"].shape[1]
    dout = p["fc_w2"].shape[1]
    kern = functools.partial(_encoder_kernel, batch=batch, hw=hw)
    # TODO(synk): for real ResNet-stem sizes, split the row (M) axis over a
    # 'parallel' grid (2nd TensorCore on v7x) and compute BN stats two-pass.
    return pl.pallas_call(
        kern,
        out_shape=jax.ShapeDtypeStruct((batch, dout), jnp.float32),
        grid=(1,),
        in_specs=[pl.BlockSpec((m, kc), lambda i: (0, 0)),
                  pl.BlockSpec((kc, f), lambda i: (0, 0)),
                  pl.BlockSpec((1, f), lambda i: (0, 0)),
                  pl.BlockSpec((1, f), lambda i: (0, 0)),
                  pl.BlockSpec((f, hid), lambda i: (0, 0)),
                  pl.BlockSpec((1, hid), lambda i: (0, 0)),
                  pl.BlockSpec((1, hid), lambda i: (0, 0)),
                  pl.BlockSpec((hid, dout), lambda i: (0, 0)),
                  pl.BlockSpec((1, dout), lambda i: (0, 0))],
        out_specs=pl.BlockSpec((batch, dout), lambda i: (0, 0)),
    )(cols,
      p["conv_w"].astype(jnp.bfloat16),
      p["bn2d_gamma"].reshape(1, f),
      p["bn2d_beta"].reshape(1, f),
      p["fc_w1"].astype(jnp.bfloat16),
      p["fc_bn_gamma"].reshape(1, hid),
      p["fc_bn_beta"].reshape(1, hid),
      p["fc_w2"].astype(jnp.bfloat16),
      p["fc_b2"].reshape(1, dout))


def _moco_logits_kernel(q_ref, k_ref, queue_ref, pos_ref, neg_ref, *, inv_t):
    q = q_ref[...]                                            # [B, D] f32
    # positive logits = row-wise <q, k>; store lane-dense ([B, 128] broadcast).
    pos = jnp.sum(q * k_ref[...], axis=1, keepdims=True) * inv_t
    pos_ref[...] = jnp.broadcast_to(pos, pos_ref.shape)
    # negative logits = q @ queue^T (queue stored [K, D]); bf16 MXU operands.
    # TODO(synk): at real QUEUE_SIZE=65536 grid-tile the K axis (lane-dense
    # tiles sized per-generation VMEM budget) instead of one whole block.
    neg = jnp.einsum("bd,kd->bk", q.astype(jnp.bfloat16), queue_ref[...],
                     preferred_element_type=jnp.float32)
    neg_ref[...] = neg * inv_t


def moco_logits(q, k, queue_kd):
    bsz, d = q.shape
    qs = queue_kd.shape[0]
    kern = functools.partial(_moco_logits_kernel, inv_t=1.0 / TEMPERATURE)
    pos, neg = pl.pallas_call(
        kern,
        out_shape=(jax.ShapeDtypeStruct((bsz, LANE), jnp.float32),
                   jax.ShapeDtypeStruct((bsz, qs), jnp.float32)),
        grid=(1,),
        in_specs=[pl.BlockSpec((bsz, d), lambda i: (0, 0)),
                  pl.BlockSpec((bsz, d), lambda i: (0, 0)),
                  pl.BlockSpec((qs, d), lambda i: (0, 0))],
        out_specs=(pl.BlockSpec((bsz, LANE), lambda i: (0, 0)),
                   pl.BlockSpec((bsz, qs), lambda i: (0, 0))),
    )(q, k, queue_kd.astype(jnp.bfloat16))
    # Present the module's [B, 1+K] view (cheap XLA concat outside the kernel).
    return jnp.concatenate([pos[:, :1], neg], axis=1)


def _enqueue_kernel(queue_in_ref, k_ref, ptr_ref, queue_out_ref, sem):
    # queue_in / queue_out alias the same HBM buffer; only the [B, D] row block
    # at ptr is DMA'd — no full-queue round trip through VMEM.
    del queue_in_ref
    rows = k_ref.shape[0]
    cp = pltpu.make_async_copy(
        k_ref, queue_out_ref.at[pl.ds(ptr_ref[0], rows), :], sem)
    cp.start()
    cp.wait()


def enqueue_keys(queue_kd, k, ptr):
    # In-place enqueue: queue stored [K, D], so `queue[ptr:ptr+B, :] = k`
    # == torch's `queue[:, ptr:ptr+B] = k.T` on the [D, K] buffer.
    # TODO(synk): in a real training loop donate the queue at the jit boundary
    # so XLA does not insert a defensive copy to satisfy the alias.
    qs, d = queue_kd.shape
    return pl.pallas_call(
        _enqueue_kernel,
        out_shape=jax.ShapeDtypeStruct((qs, d), queue_kd.dtype),
        in_specs=[pl.BlockSpec(memory_space=pl.ANY),
                  pl.BlockSpec(memory_space=pltpu.MemorySpace.VMEM),
                  pl.BlockSpec(memory_space=pltpu.MemorySpace.SMEM)],
        out_specs=pl.BlockSpec(memory_space=pl.ANY),
        scratch_shapes=[pltpu.SemaphoreType.DMA],
        input_output_aliases={0: 0},
    )(queue_kd, k, ptr)


def _linear_kernel(x_ref, w_ref, b_ref, o_ref, *, inv_t):
    y = jnp.dot(x_ref[...].astype(jnp.bfloat16), w_ref[...],
                preferred_element_type=jnp.float32) + b_ref[...]
    o_ref[...] = y * inv_t   # module divides logits by temperature in BOTH branches


def linear_classifier(x, w_pad, b_pad):
    m, kdim = x.shape
    n = w_pad.shape[1]       # padded to LANE for unmasked (lane-dense) stores
    return pl.pallas_call(
        functools.partial(_linear_kernel, inv_t=1.0 / TEMPERATURE),
        out_shape=jax.ShapeDtypeStruct((m, n), jnp.float32),
        grid=(1,),
        in_specs=[pl.BlockSpec((m, kdim), lambda i: (0, 0)),
                  pl.BlockSpec((kdim, n), lambda i: (0, 0)),
                  pl.BlockSpec((1, n), lambda i: (0, 0))],
        out_specs=pl.BlockSpec((m, n), lambda i: (0, 0)),
    )(x, w_pad.astype(jnp.bfloat16), b_pad.reshape(1, n))


# ------------------------------ JAX glue (setup) ------------------------------

def im2col_3x3(x_nhwc):
    # TODO(synk): at real image sizes fold im2col into the kernel's DMA
    # (overlapping row windows) or use lax.conv for the stem; at this scale
    # the jit-fused pad/concat is negligible.
    b, h, w, c = x_nhwc.shape
    xp = jnp.pad(x_nhwc, ((0, 0), (1, 1), (1, 1), (0, 0)))
    patches = [xp[:, dh:dh + h, dw:dw + w, :]
               for dh in range(3) for dw in range(3)]
    return jnp.concatenate(patches, axis=-1).reshape(b * h * w, 9 * c)


def init_encoder_params(key):
    ks = jax.random.split(key, 3)
    return {
        "conv_w": 0.05 * jax.random.normal(ks[0], (9 * IN_CH, IN_FEATURES),
                                           jnp.float32),
        "bn2d_gamma": jnp.ones((IN_FEATURES,), jnp.float32),
        "bn2d_beta": jnp.zeros((IN_FEATURES,), jnp.float32),
        "fc_w1": 0.05 * jax.random.normal(ks[1], (IN_FEATURES, OUT_FEATURES),
                                          jnp.float32),
        "fc_bn_gamma": jnp.ones((OUT_FEATURES,), jnp.float32),
        "fc_bn_beta": jnp.zeros((OUT_FEATURES,), jnp.float32),
        "fc_w2": 0.05 * jax.random.normal(ks[2], (OUT_FEATURES, OUT_DIM),
                                          jnp.float32),
        "fc_b2": jnp.zeros((OUT_DIM,), jnp.float32),
    }


def init_moco_params(key):
    kq, kk, kqueue, klin = jax.random.split(key, 4)
    # Queue kept transposed ([K, D]) vs the torch [D, K] buffer: enqueue writes
    # whole rows (DMA-friendly) and the logits matmul contracts on D directly.
    queue = jax.random.normal(kqueue, (QUEUE_SIZE, OUT_DIM), jnp.float32)
    queue = queue * jax.lax.rsqrt(
        jnp.maximum(jnp.sum(queue * queue, axis=1, keepdims=True), 1e-24))
    return {
        "encoder_q": init_encoder_params(kq),
        "encoder_k": init_encoder_params(kk),
        "queue": queue,
        "queue_ptr": jnp.zeros((1,), jnp.int32),   # traced, not a Python int
        "linear_w": 0.05 * jax.random.normal(klin, (OUT_DIM, NUM_CLASSES),
                                             jnp.float32),
        "linear_b": jnp.zeros((NUM_CLASSES,), jnp.float32),
    }


def encoder_forward(p, x_nchw):
    b, c, h, w = x_nchw.shape
    x = jnp.transpose(x_nchw, (0, 2, 3, 1))                 # NCHW -> NHWC
    cols = im2col_3x3(x).astype(jnp.bfloat16)               # [B*H*W, 9C] bf16
    # Single fused kernel: conv/BN/ReLU/GAP/MLP/L2norm -> [B, OUT_DIM] f32.
    return fused_encoder(cols, p, batch=b, hw=h * w)


@functools.partial(jax.jit, static_argnames=("training", "self_training"))
def moco_forward(params, in_q, in_k, shuffle_key, *, training=True,
                 self_training=True):
    bs = in_q.shape[0]
    q = encoder_forward(params["encoder_q"], in_q)           # L2-normalized

    if self_training:
        # ---- no_grad block: momentum update of key encoder (tiny, XLA fused) ----
        enc_k = jax.tree_util.tree_map(
            lambda pk, pq: MOMENTUM * pk + (1.0 - MOMENTUM) * pq,
            params["encoder_k"], params["encoder_q"])
        # shuffle / unshuffle (torch.randperm -> deterministic jax perm)
        shuffle_idx = jax.random.permutation(shuffle_key, bs)
        k = encoder_forward(enc_k, in_k[shuffle_idx])
        k = k[jnp.argsort(shuffle_idx)]
        queue = params["queue"]
        ptr = params["queue_ptr"]
        if training:
            assert QUEUE_SIZE % bs == 0
            # in-place slice enqueue (torch does this BEFORE the logits)
            queue = enqueue_keys(queue, k, ptr)
            ptr = (ptr + bs) % QUEUE_SIZE
        # fused positive + negative logits / temperature (lane-dense outputs)
        predictions = moco_logits(q, k, queue)
        # TODO(synk): torch.long labels kept as int32 (no int64 by default on TPU)
        labels = jnp.zeros((bs,), dtype=jnp.int32)
        new_state = {"encoder_k": enc_k, "queue": queue, "queue_ptr": ptr}
    else:
        w_pad = jnp.pad(params["linear_w"],
                        ((0, 0), (0, LANE - NUM_CLASSES)))
        b_pad = jnp.pad(params["linear_b"], (0, LANE - NUM_CLASSES))
        predictions = linear_classifier(q, w_pad, b_pad)[:, :NUM_CLASSES]
        labels = jnp.zeros((0,), dtype=jnp.int32)   # torch returns []
        new_state = {"encoder_k": params["encoder_k"],
                     "queue": params["queue"],
                     "queue_ptr": params["queue_ptr"]}

    # TODO(synk): torch.double output kept as float32 (no native f64 on TPU)
    return {"predictions": predictions.astype(jnp.float32),
            "labels": labels,
            "state": new_state}


# ----------------------------------- main -------------------------------------

if __name__ == "__main__":
    root = jax.random.PRNGKey(0)
    k_params, k_q, k_k, k_shuffle = jax.random.split(root, 4)

    params = init_moco_params(k_params)
    in_q = jax.random.normal(k_q, (BATCH, IN_CH, IMG, IMG), jnp.float32)
    in_k = jax.random.normal(k_k, (BATCH, IN_CH, IMG, IMG), jnp.float32)

    # self-supervised (contrastive) path
    out = moco_forward(params, in_q, in_k, k_shuffle,
                       training=True, self_training=True)
    jax.block_until_ready(out["predictions"])
    assert out["predictions"].shape == (BATCH, 1 + QUEUE_SIZE)
    assert out["labels"].shape == (BATCH,)
    assert out["state"]["queue"].shape == (QUEUE_SIZE, OUT_DIM)
    assert int(out["state"]["queue_ptr"][0]) == BATCH % QUEUE_SIZE
    assert bool(jnp.all(jnp.isfinite(out["predictions"])))

    # supervised (linear head) path
    out_sup = moco_forward(params, in_q, in_k, k_shuffle,
                           training=False, self_training=False)
    jax.block_until_ready(out_sup["predictions"])
    assert out_sup["predictions"].shape == (BATCH, NUM_CLASSES)
    assert bool(jnp.all(jnp.isfinite(out_sup["predictions"])))

    print("KERNEL_OK")
</pallas_src>

<mosaic_0001>
module attributes {stable_mosaic.version = 11 : i64} {
  func.func @_encoder_kernel(%arg0: i32, %arg1: memref<2048x27xbf16, #tpu.memory_space<vmem>>, %arg2: memref<27x128xbf16, #tpu.memory_space<vmem>>, %arg3: memref<1x128xf32, #tpu.memory_space<vmem>>, %arg4: memref<1x128xf32, #tpu.memory_space<vmem>>, %arg5: memref<128x256xbf16, #tpu.memory_space<vmem>>, %arg6: memref<1x256xf32, #tpu.memory_space<vmem>>, %arg7: memref<1x256xf32, #tpu.memory_space<vmem>>, %arg8: memref<256x128xbf16, #tpu.memory_space<vmem>>, %arg9: memref<1x128xf32, #tpu.memory_space<vmem>>, %arg10: memref<8x128xf32, #tpu.memory_space<vmem>>) attributes {dimension_semantics = [#tpu.dimension_semantics<arbitrary>], iteration_bounds = array<i64: 1>, scalar_prefetch = 0 : i64, scratch_operands = 0 : i64, tpu.core_type = #tpu.core_type<tc>, window_params = [{pipeline_mode = #tpu.pipeline_mode<synchronous>, transform_indices = @transform_0, window_bounds = array<i64: 2048, 27>}, {pipeline_mode = #tpu.pipeline_mode<synchronous>, transform_indices = @transform_1, window_bounds = array<i64: 27, 128>}, {pipeline_mode = #tpu.pipeline_mode<synchronous>, transform_indices = @transform_2, window_bounds = array<i64: 1, 128>}, {pipeline_mode = #tpu.pipeline_mode<synchronous>, transform_indices = @transform_3, window_bounds = array<i64: 1, 128>}, {pipeline_mode = #tpu.pipeline_mode<synchronous>, transform_indices = @transform_4, window_bounds = array<i64: 128, 256>}, {pipeline_mode = #tpu.pipeline_mode<synchronous>, transform_indices = @transform_5, window_bounds = array<i64: 1, 256>}, {pipeline_mode = #tpu.pipeline_mode<synchronous>, transform_indices = @transform_6, window_bounds = array<i64: 1, 256>}, {pipeline_mode = #tpu.pipeline_mode<synchronous>, transform_indices = @transform_7, window_bounds = array<i64: 256, 128>}, {pipeline_mode = #tpu.pipeline_mode<synchronous>, transform_indices = @transform_8, window_bounds = array<i64: 1, 128>}, {pipeline_mode = #tpu.pipeline_mode<synchronous>, transform_indices = @transform_9, window_bounds = array<i64: 8, 128>}]} {
    %c0 = arith.constant 0 : index
    %c0_0 = arith.constant 0 : index
    %0 = vector.load %arg1[%c0, %c0_0] : memref<2048x27xbf16, #tpu.memory_space<vmem>>, vector<2048x27xbf16>
    %c0_1 = arith.constant 0 : index
    %c0_2 = arith.constant 0 : index
    %1 = vector.load %arg2[%c0_1, %c0_2] : memref<27x128xbf16, #tpu.memory_space<vmem>>, vector<27x128xbf16>
    %cst = arith.constant dense<0.000000e+00> : vector<2048x128xf32>
    %2 = tpu.matmul %0, %1, %cst {dimension_numbers = #tpu.dot_dimension_numbers<[1], [0], [0], [1], [0, 0, 1, 1], [], []>} : vector<2048x27xbf16>, vector<27x128xbf16>, vector<2048x128xf32> -> vector<2048x128xf32>
    %cst_3 = arith.constant dense<0.000000e+00> : vector<128xf32>
    %3 = vector.multi_reduction <add>, %2, %cst_3 [0] : vector<2048x128xf32> to vector<128xf32>
    %4 = vector.shape_cast %3 : vector<128xf32> to vector<1x128xf32>
    %cst_4 = arith.constant 2.048000e+03 : f32
    %5 = vector.broadcast %cst_4 : f32 to vector<1x128xf32>
    %6 = arith.divf %4, %5 : vector<1x128xf32>
    %7 = vector.broadcast %6 : vector<1x128xf32> to vector<2048x128xf32>
    %8 = arith.subf %2, %7 : vector<2048x128xf32>
    %9 = arith.mulf %8, %8 : vector<2048x128xf32>
    %cst_5 = arith.constant dense<0.000000e+00> : vector<128xf32>
    %10 = vector.multi_reduction <add>, %9, %cst_5 [0] : vector<2048x128xf32> to vector<128xf32>
    %11 = vector.shape_cast %10 : vector<128xf32> to vector<1x128xf32>
    %cst_6 = arith.constant 2.048000e+03 : f32
    %12 = vector.broadcast %cst_6 : f32 to vector<1x128xf32>
    %13 = arith.divf %11, %12 : vector<1x128xf32>
    %14 = vector.broadcast %6 : vector<1x128xf32> to vector<2048x128xf32>
    %15 = arith.subf %2, %14 : vector<2048x128xf32>
    %cst_7 = arith.constant 9.99999974E-6 : f32
    %16 = vector.broadcast %cst_7 : f32 to vector<1x128xf32>
    %17 = arith.addf %13, %16 : vector<1x128xf32>
    %18 = math.rsqrt %17 : vector<1x128xf32>
    %19 = vector.broadcast %18 : vector<1x128xf32> to vector<2048x128xf32>
    %20 = arith.mulf %15, %19 : vector<2048x128xf32>
    %c0_8 = arith.constant 0 : index
    %c0_9 = arith.constant 0 : index
    %21 = vector.load %arg3[%c0_8, %c0_9] : memref<1x128xf32, #tpu.memory_space<vmem>>, vector<1x128xf32>
    %22 = vector.broadcast %21 : vector<1x128xf32> to vector<2048x128xf32>
    %23 = arith.mulf %20, %22 : vector<2048x128xf32>
    %c0_10 = arith.constant 0 : index
    %c0_11 = arith.constant 0 : index
    %24 = vector.load %arg4[%c0_10, %c0_11] : memref<1x128xf32, #tpu.memory_space<vmem>>, vector<1x128xf32>
    %25 = vector.broadcast %24 : vector<1x128xf32> to vector<2048x128xf32>
    %26 = arith.addf %23, %25 : vector<2048x128xf32>
    %cst_12 = arith.constant 0.000000e+00 : f32
    %27 = vector.broadcast %cst_12 : f32 to vector<2048x128xf32>
    %28 = arith.maximumf %26, %27 : vector<2048x128xf32>
    %29 = vector.shape_cast %28 : vector<2048x128xf32> to vector<8x256x128xf32>
    %cst_13 = arith.constant dense<0.000000e+00> : vector<8x128xf32>
    %30 = vector.multi_reduction <add>, %29, %cst_13 [1] : vector<8x256x128xf32> to vector<8x128xf32>
    %cst_14 = arith.constant 2.560000e+02 : f32
    %31 = vector.broadcast %cst_14 : f32 to vector<8x128xf32>
    %32 = arith.divf %30, %31 : vector<8x128xf32>
    %33 = arith.truncf %32 : vector<8x128xf32> to vector<8x128xbf16>
    %c0_15 = arith.constant 0 : index
    %c0_16 = arith.constant 0 : index
    %34 = vector.load %arg5[%c0_15, %c0_16] : memref<128x256xbf16, #tpu.memory_space<vmem>>, vector<128x256xbf16>
    %cst_17 = arith.constant dense<0.000000e+00> : vector<8x256xf32>
    %35 = tpu.matmul %33, %34, %cst_17 {dimension_numbers = #tpu.dot_dimension_numbers<[1], [0], [0], [1], [0, 0, 1, 1], [], []>} : vector<8x128xbf16>, vector<128x256xbf16>, vector<8x256xf32> -> vector<8x256xf32>
    %cst_18 = arith.constant dense<0.000000e+00> : vector<256xf32>
    %36 = vector.multi_reduction <add>, %35, %cst_18 [0] : vector<8x256xf32> to vector<256xf32>
    %37 = vector.shape_cast %36 : vector<256xf32> to vector<1x256xf32>
    %cst_19 = arith.constant 8.000000e+00 : f32
    %38 = vector.broadcast %cst_19 : f32 to vector<1x256xf32>
    %39 = arith.divf %37, %38 : vector<1x256xf32>
    %40 = vector.broadcast %39 : vector<1x256xf32> to vector<8x256xf32>
    %41 = arith.subf %35, %40 : vector<8x256xf32>
    %42 = arith.mulf %41, %41 : vector<8x256xf32>
    %cst_20 = arith.constant dense<0.000000e+00> : vector<256xf32>
    %43 = vector.multi_reduction <add>, %42, %cst_20 [0] : vector<8x256xf32> to vector<256xf32>
    %44 = vector.shape_cast %43 : vector<256xf32> to vector<1x256xf32>
    %cst_21 = arith.constant 8.000000e+00 : f32
    %45 = vector.broadcast %cst_21 : f32 to vector<1x256xf32>
    %46 = arith.divf %44, %45 : vector<1x256xf32>
    %47 = vector.broadcast %39 : vector<1x256xf32> to vector<8x256xf32>
    %48 = arith.subf %35, %47 : vector<8x256xf32>
    %cst_22 = arith.constant 9.99999974E-6 : f32
    %49 = vector.broadcast %cst_22 : f32 to vector<1x256xf32>
    %50 = arith.addf %46, %49 : vector<1x256xf32>
    %51 = math.rsqrt %50 : vector<1x256xf32>
    %52 = vector.broadcast %51 : vector<1x256xf32> to vector<8x256xf32>
    %53 = arith.mulf %48, %52 : vector<8x256xf32>
    %c0_23 = arith.constant 0 : index
    %c0_24 = arith.constant 0 : index
    %54 = vector.load %arg6[%c0_23, %c0_24] : memref<1x256xf32, #tpu.memory_space<vmem>>, vector<1x256xf32>
    %55 = vector.broadcast %54 : vector<1x256xf32> to vector<8x256xf32>
    %56 = arith.mulf %53, %55 : vector<8x256xf32>
    %c0_25 = arith.constant 0 : index
    %c0_26 = arith.constant 0 : index
    %57 = vector.load %arg7[%c0_25, %c0_26] : memref<1x256xf32, #tpu.memory_space<vmem>>, vector<1x256xf32>
    %58 = vector.broadcast %57 : vector<1x256xf32> to vector<8x256xf32>
    %59 = arith.addf %56, %58 : vector<8x256xf32>
    %cst_27 = arith.constant 0.000000e+00 : f32
    %60 = vector.broadcast %cst_27 : f32 to vector<8x256xf32>
    %61 = arith.maximumf %59, %60 : vector<8x256xf32>
    %62 = arith.truncf %61 : vector<8x256xf32> to vector<8x256xbf16>
    %c0_28 = arith.constant 0 : index
    %c0_29 = arith.constant 0 : index
    %63 = vector.load %arg8[%c0_28, %c0_29] : memref<256x128xbf16, #tpu.memory_space<vmem>>, vector<256x128xbf16>
    %cst_30 = arith.constant dense<0.000000e+00> : vector<8x128xf32>
    %64 = tpu.matmul %62, %63, %cst_30 {dimension_numbers = #tpu.dot_dimension_numbers<[1], [0], [0], [1], [0, 0, 1, 1], [], []>} : vector<8x256xbf16>, vector<256x128xbf16>, vector<8x128xf32> -> vector<8x128xf32>
    %c0_31 = arith.constant 0 : index
    %c0_32 = arith.constant 0 : index
    %65 = vector.load %arg9[%c0_31, %c0_32] : memref<1x128xf32, #tpu.memory_space<vmem>>, vector<1x128xf32>
    %66 = vector.broadcast %65 : vector<1x128xf32> to vector<8x128xf32>
    %67 = arith.addf %64, %66 : vector<8x128xf32>
    %68 = arith.mulf %67, %67 : vector<8x128xf32>
    %cst_33 = arith.constant dense<0.000000e+00> : vector<8xf32>
    %69 = vector.multi_reduction <add>, %68, %cst_33 [1] : vector<8x128xf32> to vector<8xf32>
    %70 = vector.shape_cast %69 : vector<8xf32> to vector<8x1xf32>
    %cst_34 = arith.constant 1.000000e-24 : f32
    %71 = vector.broadcast %cst_34 : f32 to vector<8x1xf32>
    %72 = arith.maximumf %70, %71 : vector<8x1xf32>
    %73 = math.rsqrt %72 : vector<8x1xf32>
    %74 = vector.broadcast %73 : vector<8x1xf32> to vector<8x128xf32>
    %75 = arith.mulf %67, %74 : vector<8x128xf32>
    %c0_35 = arith.constant 0 : index
    %c0_36 = arith.constant 0 : index
    %76 = vector.load %arg10[%c0_35, %c0_36] : memref<8x128xf32, #tpu.memory_space<vmem>>, vector<8x128xf32>
    tpu.vector_store %arg10[%c0_35, %c0_36], %75 {strides = array<i32>} : memref<8x128xf32, #tpu.memory_space<vmem>>, vector<8x128xf32>,
    return
  }
  func.func @transform_0(%arg0: i32) -> (i32, i32) {
    %c0_i32 = arith.constant 0 : i32
    %c0_i32_0 = arith.constant 0 : i32
    %c0_i32_1 = arith.constant 0 : i32
    return %c0_i32, %c0_i32_0 : i32, i32
  }
  func.func @transform_1(%arg0: i32) -> (i32, i32) {
    %c0_i32 = arith.constant 0 : i32
    %c0_i32_0 = arith.constant 0 : i32
    %c0_i32_1 = arith.constant 0 : i32
    return %c0_i32, %c0_i32_0 : i32, i32
  }
  func.func @transform_2(%arg0: i32) -> (i32, i32) {
    %c0_i32 = arith.constant 0 : i32
    %c0_i32_0 = arith.constant 0 : i32
    %c0_i32_1 = arith.constant 0 : i32
    return %c0_i32, %c0_i32_0 : i32, i32
  }
  func.func @transform_3(%arg0: i32) -> (i32, i32) {
    %c0_i32 = arith.constant 0 : i32
    %c0_i32_0 = arith.constant 0 : i32
    %c0_i32_1 = arith.constant 0 : i32
    return %c0_i32, %c0_i32_0 : i32, i32
  }
  func.func @transform_4(%arg0: i32) -> (i32, i32) {
    %c0_i32 = arith.constant 0 : i32
    %c0_i32_0 = arith.constant 0 : i32
    %c0_i32_1 = arith.constant 0 : i32
    return %c0_i32, %c0_i32_0 : i32, i32
  }
  func.func @transform_5(%arg0: i32) -> (i32, i32) {
    %c0_i32 = arith.constant 0 : i32
    %c0_i32_0 = arith.constant 0 : i32
    %c0_i32_1 = arith.constant 0 : i32
    return %c0_i32, %c0_i32_0 : i32, i32
  }
  func.func @transform_6(%arg0: i32) -> (i32, i32) {
    %c0_i32 = arith.constant 0 : i32
    %c0_i32_0 = arith.constant 0 : i32
    %c0_i32_1 = arith.constant 0 : i32
    return %c0_i32, %c0_i32_0 : i32, i32
  }
  func.func @transform_7(%arg0: i32) -> (i32, i32) {
    %c0_i32 = arith.constant 0 : i32
    %c0_i32_0 = arith.constant 0 : i32
    %c0_i32_1 = arith.constant 0 : i32
    return %c0_i32, %c0_i32_0 : i32, i32
  }
  func.func @transform_8(%arg0: i32) -> (i32, i32) {
    %c0_i32 = arith.constant 0 : i32
    %c0_i32_0 = arith.constant 0 : i32
    %c0_i32_1 = arith.constant 0 : i32
    return %c0_i32, %c0_i32_0 : i32, i32
  }
  func.func @transform_9(%arg0: i32) -> (i32, i32) {
    %c0_i32 = arith.constant 0 : i32
    %c0_i32_0 = arith.constant 0 : i32
    %c0_i32_1 = arith.constant 0 : i32
    return %c0_i32, %c0_i32_0 : i32, i32
  }
}

module attributes {stable_mosaic.version = 11 : i64} {
  func.func @_enqueue_kernel(%arg0: memref<128x128xf32, #tpu.memory_space<any>>, %arg1: memref<8x128xf32, #tpu.memory_space<vmem>>, %arg2: memref<1xi32, #tpu.memory_space<smem>>, %arg3: memref<128x128xf32, #tpu.memory_space<any>>, %arg4: memref<!tpu.dma_semaphore, #tpu.memory_space<semaphore_mem>>) attributes {dimension_semantics = [], scalar_prefetch = 0 : i64, scratch_operands = 1 : i64, tpu.core_type = #tpu.core_type<tc>} {
    %c0 = arith.constant 0 : index
    %0 = memref.load %arg2[%c0] : memref<1xi32, #tpu.memory_space<smem>>
    %c0_i32 = arith.constant 0 : i32
    %1 = tpu.memref_slice %arg3[%0, %c0_i32] : memref<128x128xf32, #tpu.memory_space<any>> -> memref<8x128xf32, #tpu.memory_space<any>>
    tpu.enqueue_dma source(%arg1 : memref<8x128xf32, #tpu.memory_space<vmem>>) target(%1 : memref<8x128xf32, #tpu.memory_space<any>>) target_semaphore(%arg4 : memref<!tpu.dma_semaphore, #tpu.memory_space<semaphore_mem>>)
    %c0_i32_0 = arith.constant 0 : i32
    %2 = tpu.memref_slice %arg3[%0, %c0_i32_0] : memref<128x128xf32, #tpu.memory_space<any>> -> memref<8x128xf32, #tpu.memory_space<any>>
    tpu.wait_dma2 semaphore(%arg4 : memref<!tpu.dma_semaphore, #tpu.memory_space<semaphore_mem>>) src(%arg1 : memref<8x128xf32, #tpu.memory_space<vmem>>) dst(%2 : memref<8x128xf32, #tpu.memory_space<any>>)
    return
  }
}

module attributes {stable_mosaic.version = 11 : i64} {
  func.func @_moco_logits_kernel(%arg0: i32, %arg1: memref<8x128xf32, #tpu.memory_space<vmem>>, %arg2: memref<8x128xf32, #tpu.memory_space<vmem>>, %arg3: memref<128x128xbf16, #tpu.memory_space<vmem>>, %arg4: memref<8x128xf32, #tpu.memory_space<vmem>>, %arg5: memref<8x128xf32, #tpu.memory_space<vmem>>) attributes {dimension_semantics = [#tpu.dimension_semantics<arbitrary>], iteration_bounds = array<i64: 1>, scalar_prefetch = 0 : i64, scratch_operands = 0 : i64, tpu.core_type = #tpu.core_type<tc>, window_params = [{pipeline_mode = #tpu.pipeline_mode<synchronous>, transform_indices = @transform_0, window_bounds = array<i64: 8, 128>}, {pipeline_mode = #tpu.pipeline_mode<synchronous>, transform_indices = @transform_1, window_bounds = array<i64: 8, 128>}, {pipeline_mode = #tpu.pipeline_mode<synchronous>, transform_indices = @transform_2, window_bounds = array<i64: 128, 128>}, {pipeline_mode = #tpu.pipeline_mode<synchronous>, transform_indices = @transform_3, window_bounds = array<i64: 8, 128>}, {pipeline_mode = #tpu.pipeline_mode<synchronous>, transform_indices = @transform_4, window_bounds = array<i64: 8, 128>}]} {
    %c0 = arith.constant 0 : index
    %c0_0 = arith.constant 0 : index
    %0 = vector.load %arg1[%c0, %c0_0] : memref<8x128xf32, #tpu.memory_space<vmem>>, vector<8x128xf32>
    %c0_1 = arith.constant 0 : index
    %c0_2 = arith.constant 0 : index
    %1 = vector.load %arg2[%c0_1, %c0_2] : memref<8x128xf32, #tpu.memory_space<vmem>>, vector<8x128xf32>
    %2 = arith.mulf %0, %1 : vector<8x128xf32>
    %cst = arith.constant dense<0.000000e+00> : vector<8xf32>
    %3 = vector.multi_reduction <add>, %2, %cst [1] : vector<8x128xf32> to vector<8xf32>
    %4 = vector.shape_cast %3 : vector<8xf32> to vector<8x1xf32>
    %cst_3 = arith.constant 5.000000e+00 : f32
    %5 = vector.broadcast %cst_3 : f32 to vector<8x1xf32>
    %6 = arith.mulf %4, %5 : vector<8x1xf32>
    %7 = vector.shape_cast %6 : vector<8x1xf32> to vector<8x1xf32>
    %8 = vector.broadcast %7 : vector<8x1xf32> to vector<8x128xf32>
    %c0_4 = arith.constant 0 : index
    %c0_5 = arith.constant 0 : index
    %9 = vector.load %arg4[%c0_4, %c0_5] : memref<8x128xf32, #tpu.memory_space<vmem>>, vector<8x128xf32>
    tpu.vector_store %arg4[%c0_4, %c0_5], %8 {strides = array<i32>} : memref<8x128xf32, #tpu.memory_space<vmem>>, vector<8x128xf32>,
    %10 = arith.truncf %0 : vector<8x128xf32> to vector<8x128xbf16>
    %c0_6 = arith.constant 0 : index
    %c0_7 = arith.constant 0 : index
    %11 = vector.load %arg3[%c0_6, %c0_7] : memref<128x128xbf16, #tpu.memory_space<vmem>>, vector<128x128xbf16>
    "tpu.trace_start"() <{level = 10 : i32, message = "bd,kd->bk"}> : () -> ()
    %cst_8 = arith.constant dense<0.000000e+00> : vector<8x128xf32>
    %12 = tpu.matmul %10, %11, %cst_8 {dimension_numbers = #tpu.dot_dimension_numbers<[1], [1], [0], [0], [0, 0, 1, 0], [], []>} : vector<8x128xbf16>, vector<128x128xbf16>, vector<8x128xf32> -> vector<8x128xf32>
    "tpu.trace_stop"() : () -> ()
    %cst_9 = arith.constant 5.000000e+00 : f32
    %13 = vector.broadcast %cst_9 : f32 to vector<8x128xf32>
    %14 = arith.mulf %12, %13 : vector<8x128xf32>
    %c0_10 = arith.constant 0 : index
    %c0_11 = arith.constant 0 : index
    %15 = vector.load %arg5[%c0_10, %c0_11] : memref<8x128xf32, #tpu.memory_space<vmem>>, vector<8x128xf32>
    tpu.vector_store %arg5[%c0_10, %c0_11], %14 {strides = array<i32>} : memref<8x128xf32, #tpu.memory_space<vmem>>, vector<8x128xf32>,
    return
  }
  func.func @transform_0(%arg0: i32) -> (i32, i32) {
    %c0_i32 = arith.constant 0 : i32
    %c0_i32_0 = arith.constant 0 : i32
    %c0_i32_1 = arith.constant 0 : i32
    return %c0_i32, %c0_i32_0 : i32, i32
  }
  func.func @transform_1(%arg0: i32) -> (i32, i32) {
    %c0_i32 = arith.constant 0 : i32
    %c0_i32_0 = arith.constant 0 : i32
    %c0_i32_1 = arith.constant 0 : i32
    return %c0_i32, %c0_i32_0 : i32, i32
  }
  func.func @transform_2(%arg0: i32) -> (i32, i32) {
    %c0_i32 = arith.constant 0 : i32
    %c0_i32_0 = arith.constant 0 : i32
    %c0_i32_1 = arith.constant 0 : i32
    return %c0_i32, %c0_i32_0 : i32, i32
  }
  func.func @transform_3(%arg0: i32) -> (i32, i32) {
    %c0_i32 = arith.constant 0 : i32
    %c0_i32_0 = arith.constant 0 : i32
    %c0_i32_1 = arith.constant 0 : i32
    return %c0_i32, %c0_i32_0 : i32, i32
  }
  func.func @transform_4(%arg0: i32) -> (i32, i32) {
    %c0_i32 = arith.constant 0 : i32
    %c0_i32_0 = arith.constant 0 : i32
    %c0_i32_1 = arith.constant 0 : i32
    return %c0_i32, %c0_i32_0 : i32, i32
  }
}

</mosaic_0001>

<llo_original>
// kernel: moco_forward.6
$region0: #{moco_forward.6}
  #allocation0 [shape = 'u32[]', space=smem, size = 0x4, offset = 0x4, fixed_abs, tag = 'smem constant byte address 0x4 - core index']
  #allocation1 [shape = 'u32[72,128]{1,0:T(1,128)}', space=vmem, size = 0x9000, scoped, tag = 'internal scratch']
  #allocation2 [shape = 's32[1]{0}', space=sflag, size = 0x4, scoped, tag = 'scratch operand']
  #allocation3 [shape = 's32[1]{0:T(128)S(6)}', space=smem, size = 0x200, scoped, tag = 'scoped memory for moco_forward.6']
  #allocation4 [shape = 's32[]', space=sflag, size = 0x4, offset = 0, fixed_abs, tag = 'sflag constant byte address 0x0 - dummy sync flag']
  %s0 = inlined_call_operand.vmem [shape: f32[128,128], index: 0, kind: input, shape index: {}, may-alias: {0,3}]
  %s1 = inlined_call_operand.vmem [shape: f32[8,128], index: 1, kind: input, shape index: {}]
  %s2 = inlined_call_operand.<no memory space> [shape: s32[1], index: 2, kind: input, shape index: {}]
  %s3 = inlined_call_operand.vmem [shape: f32[128,128], index: 3, kind: output, shape index: {}, may-alias: {0,3}]
  %s4 = sld [smem:[#allocation0]]
  $region44: #{moco_forward.6} parent=0
    _
  %s6 = ssub.s32 1, %s4
  %s7 = scalar_select 0, %s6, %s4
  %8 = sst [smem:[#allocation3]] %s2
  // Predicated region
  $region2: #{moco_forward.6} parent=0 // pred_check
    _
  $region3: #{moco_forward.6} parent=0 // pred_check_branch
    %10 = sbr.rel (0) target = $region5
  $region4: #{moco_forward.6} parent=0 // pred_region
    _
  $region5: #{moco_forward.6} parent=0 // pred_fallthru
    _
  // Predicated region
  $region6: #{moco_forward.6} parent=0 // pred_check
    _
  $region7: #{moco_forward.6} parent=0 // pred_check_branch
    %12 = sbr.rel (0) target = $region9
  $region8: #{moco_forward.6} parent=0 // pred_region
    _
  $region9: #{moco_forward.6} parent=0 // pred_fallthru
    _
  %s13 = sld [smem:[#allocation3]]
  %s14 = scalar_lea.vmem %s3, %s13
  // Predicated region
  $region10: #{moco_forward.6} parent=0 // pred_check
    _
  $region11: #{moco_forward.6} parent=0 // pred_check_branch
    %16 = sbr.rel (0) target = $region13
  $region12: #{moco_forward.6} parent=0 // pred_region
    // Predicated region
    $region25: #{moco_forward.6} parent=12 // pred_check
      _
    $region26: #{moco_forward.6} parent=12 // pred_check_branch
      %32 = sbr.rel (0) target = $region28
    $region27: #{moco_forward.6} parent=12 // pred_region
      loop: start=0, step=1, limit=1
      $region29: #{moco_forward.6} parent=27 // loop_pre_header
        _
      $region30: #{moco_forward.6} parent=27 // loop_header
        %s34 = sphi 0, %s38
        %p35 = scmp.ge.s32.totalorder %s34, 1
        %s39 = sphi %s1, %s1
        %s40 = sphi %s14, %s14
      $region31: #{moco_forward.6} parent=27 // loop_header_branch
        %37 = sbr.rel (%p35) target = $region35
      $region32: #{moco_forward.6} parent=27 // loop_body
        %v41 = vld [vmem:[%s39] sm:$0xff]
        %42 = vst [vmem:[%s40] sm:$0xff] %v41
      $region33: #{moco_forward.6} parent=27 // loop_footer
        %s38 = sadd.s32 1, %s34
      $region34: #{moco_forward.6} parent=27 // loop_footer_branch
        %33 = sbr.rel target = $region30
      $region35: #{moco_forward.6} parent=27 // loop_exit
        _
    $region28: #{moco_forward.6} parent=12 // pred_fallthru
      _
    // Predicated region
    $region36: #{moco_forward.6} parent=12 // pred_check
      _
    $region37: #{moco_forward.6} parent=12 // pred_check_branch
      %44 = sbr.rel target = $region39
    $region38: #{moco_forward.6} parent=12 // pred_region
      _
    $region39: #{moco_forward.6} parent=12 // pred_fallthru
      _
  $region13: #{moco_forward.6} parent=0 // pred_fallthru
    _
  // Predicated region
  $region14: #{moco_forward.6} parent=0 // pred_check
    _
  $region15: #{moco_forward.6} parent=0 // pred_check_branch
    %18 = sbr.rel target = $region17
  $region16: #{moco_forward.6} parent=0 // pred_region
    %s20 = ssub.s32 256, 1
    loop: start=0, step=1, limit=1
    $region18: #{moco_forward.6} parent=16 // loop_pre_header
      _
    $region19: #{moco_forward.6} parent=16 // loop_header
      %s22 = sphi 0, %s26
      %p23 = scmp.ge.s32.totalorder %s22, 1
      %s27 = sphi %s1, %s1
      %s28 = sphi %s14, %s14
    $region20: #{moco_forward.6} parent=16 // loop_header_branch
      %25 = sbr.rel (%p23) target = $region24
    $region21: #{moco_forward.6} parent=16 // loop_body
      %v29 = vld [vmem:[%s27] sm:%s20]
      %30 = vst [vmem:[%s28] sm:%s20] %v29
    $region22: #{moco_forward.6} parent=16 // loop_footer
      %s26 = sadd.s32 1, %s22
    $region23: #{moco_forward.6} parent=16 // loop_footer_branch
      %21 = sbr.rel target = $region19
    $region24: #{moco_forward.6} parent=16 // loop_exit
      _
  $region17: #{moco_forward.6} parent=0 // pred_fallthru
    _
  // Predicated region
  $region40: #{moco_forward.6} parent=0 // pred_check
    _
  $region41: #{moco_forward.6} parent=0 // pred_check_branch
    %47 = sbr.rel (0) target = $region43
  $region42: #{moco_forward.6} parent=0 // pred_region
    %48 = vsyncadd [#allocation2], 128
  $region43: #{moco_forward.6} parent=0 // pred_fallthru
    _
  %s49 = smul.u32 8, 1
  %s50 = sshll.u32 %s49, 4
  %51 = dma.done [#allocation2], %s50
  %52 = vsyncmov [#allocation2]
  %s53 = vpop.sfrf %52
  %p54 = scmp.eq.s32.totalorder %s53, 0
  %p55 = pneg %p54
  %57 = shalt.err (%p55)

// kernel: moco_forward.7
$region0: #{moco_forward.7}
  #allocation0 [shape = 'u32[]', space=smem, size = 0x4, offset = 0x4, fixed_abs, tag = 'smem constant byte address 0x4 - core index']
  #allocation1 [shape = 'u32[72,128]{1,0:T(1,128)}', space=vmem, size = 0x9000, scoped, tag = 'internal scratch']
  %s0 = inlined_call_operand.vmem [shape: f32[8,128], index: 0, kind: input, shape index: {}]
  %s1 = inlined_call_operand.vmem [shape: f32[8,128], index: 1, kind: input, shape index: {}]
  %s2 = inlined_call_operand.vmem [shape: bf16[128,128], index: 2, kind: input, shape index: {}]
  %s3 = inlined_call_operand.vmem [shape: f32[8,128], index: 3, kind: output, shape index: {0}]
  %s4 = inlined_call_operand.vmem [shape: f32[8,128], index: 4, kind: output, shape index: {1}]
  %5 = xla_tuple %s3, %s4
  %s6 = sld [smem:[#allocation0]]
  $region30: #{moco_forward.7} parent=0
    _
  %s8 = ssub.s32 1, %s6
  %s9 = scalar_select 0, %s8, %s6
  // Predicated region
  $region2: #{moco_forward.7} parent=0 // pred_check
    _
  $region3: #{moco_forward.7} parent=0 // pred_check_branch
    %11 = sbr.rel (0) target = $region5
  $region4: #{moco_forward.7} parent=0 // pred_region
    _
  $region5: #{moco_forward.7} parent=0 // pred_fallthru
    _
  // Predicated region
  $region6: #{moco_forward.7} parent=0 // pred_check
    _
  $region7: #{moco_forward.7} parent=0 // pred_check_branch
    %13 = sbr.rel (0) target = $region9
  $region8: #{moco_forward.7} parent=0 // pred_region
    _
  $region9: #{moco_forward.7} parent=0 // pred_fallthru
    _
  // Predicated region
  $region10: #{moco_forward.7} parent=0 // pred_check
    _
  $region11: #{moco_forward.7} parent=0 // pred_check_branch
    %15 = sbr.rel (0) target = $region13
  $region12: #{moco_forward.7} parent=0 // pred_region
    _
  $region13: #{moco_forward.7} parent=0 // pred_fallthru
    _
  %v16 = vld [vmem:[%s0] sm:$0xff]
  %v17 = vld [vmem:[%s1] sm:$0xff]
  %v18 = vmul.f32 %v16, %v17
  %19 = vadd.xlane.f32.xlu0 %v18
  %v20 = vpop.xlane.xlu0 %19
  %v21 = vmul.f32 %v20, 5.0
  %22 = vst [vmem:[%s3] sm:$0xff] %v21
  %v23 = vpack.c.bf16 %v16, %v16
  %v24 = vld [vmem:[%s2] sm:$0xf]
  %v25 = vld [vmem:[%s2 + $0x4] sm:$0xf]
  %v26 = vld [vmem:[%s2 + $0x8] sm:$0xf]
  %v27 = vld [vmem:[%s2 + $0xc] sm:$0xf]
  %v28 = vld [vmem:[%s2 + $0x10] sm:$0xf]
  %v29 = vld [vmem:[%s2 + $0x14] sm:$0xf]
  %v30 = vld [vmem:[%s2 + $0x18] sm:$0xf]
  %v31 = vld [vmem:[%s2 + $0x1c] sm:$0xf]
  %v32 = vld [vmem:[%s2 + $0x20] sm:$0xf]
  %v33 = vld [vmem:[%s2 + $0x24] sm:$0xf]
  %v34 = vld [vmem:[%s2 + $0x28] sm:$0xf]
  %v35 = vld [vmem:[%s2 + $0x2c] sm:$0xf]
  %v36 = vld [vmem:[%s2 + $0x30] sm:$0xf]
  %v37 = vld [vmem:[%s2 + $0x34] sm:$0xf]
  %v38 = vld [vmem:[%s2 + $0x38] sm:$0xf]
  %v39 = vld [vmem:[%s2 + $0x3c] sm:$0xf]
  %v56 = vunpack.c.l.b16 %v24
  %v57 = vunpack.c.l.b16 %v25
  %v58 = vunpack.c.l.b16 %v26
  %v59 = vunpack.c.l.b16 %v27
  %v60 = vunpack.c.l.b16 %v28
  %v61 = vunpack.c.l.b16 %v29
  %v62 = vunpack.c.l.b16 %v30
  %v63 = vunpack.c.l.b16 %v31
  %v64 = vunpack.c.l.b16 %v32
  %v65 = vunpack.c.l.b16 %v33
  %v66 = vunpack.c.l.b16 %v34
  %v67 = vunpack.c.l.b16 %v35
  %v68 = vunpack.c.l.b16 %v36
  %v69 = vunpack.c.l.b16 %v37
  %v70 = vunpack.c.l.b16 %v38
  %v71 = vunpack.c.l.b16 %v39
  %v72 = vpack.c.b16 %v57, %v56
  %v73 = vpack.c.b16 %v59, %v58
  %v74 = vpack.c.b16 %v61, %v60
  %v75 = vpack.c.b16 %v63, %v62
  %v76 = vpack.c.b16 %v65, %v64
  %v77 = vpack.c.b16 %v67, %v66
  %v78 = vpack.c.b16 %v69, %v68
  %v79 = vpack.c.b16 %v71, %v70
  %88 = vmatpush.bf16.xpose.msra.mxu0 %v79
  %89 = vmatpush.bf16.xpose.msra.mxu0 %v78
  %90 = vmatpush.bf16.xpose.msra.mxu0 %v77
  %91 = vmatpush.bf16.xpose.msra.mxu0 %v76
  %92 = vmatpush.bf16.xpose.msra.mxu0 %v75
  %93 = vmatpush.bf16.xpose.msra.mxu0 %v74
  %94 = vmatpush.bf16.xpose.msra.mxu0 %v73
  %95 = vmatpush.bf16.xpose.msra.mxu0 %v72
  %96 = vmatmul.bf16.gmra.mxu0 %v23
  %v97 = vpop.f32.mrf.mxu0
  %v98 = vadd.f32 0.0, %v97
  %v99 = vpop.f32.mrf.mxu0
  %100 = vdwg.mxu0
  %v101 = vmul.f32 %v98, 5.0
  %102 = vst [vmem:[%s4] sm:$0xff] %v101
  // Predicated region
  $region14: #{moco_forward.7} parent=0 // pred_check
    _
  $region15: #{moco_forward.7} parent=0 // pred_check_branch
    %104 = sbr.rel (0) target = $region17
  $region16: #{moco_forward.7} parent=0 // pred_region
    _
  $region17: #{moco_forward.7} parent=0 // pred_fallthru
    _
  // Predicated region
  $region18: #{moco_forward.7} parent=0 // pred_check
    _
  $region19: #{moco_forward.7} parent=0 // pred_check_branch
    %106 = sbr.rel (0) target = $region21
  $region20: #{moco_forward.7} parent=0 // pred_region
    _
  $region21: #{moco_forward.7} parent=0 // pred_fallthru
    _
  // Predicated region
  $region22: #{moco_forward.7} parent=0 // pred_check
    _
  $region23: #{moco_forward.7} parent=0 // pred_check_branch
    %108 = sbr.rel (0) target = $region25
  $region24: #{moco_forward.7} parent=0 // pred_region
    _
  $region25: #{moco_forward.7} parent=0 // pred_fallthru
    _
  // Predicated region
  $region26: #{moco_forward.7} parent=0 // pred_check
    _
  $region27: #{moco_forward.7} parent=0 // pred_check_branch
    %110 = sbr.rel (0) target = $region29
  $region28: #{moco_forward.7} parent=0 // pred_region
    _
  $region29: #{moco_forward.7} parent=0 // pred_fallthru
    _

// kernel: moco_forward.4
$region0: #{moco_forward.4}
  #allocation0 [shape = 'u32[]', space=smem, size = 0x4, offset = 0x4, fixed_abs, tag = 'smem constant byte address 0x4 - core index']
  #allocation1 [shape = 'u32[72,128]{1,0:T(1,128)}', space=vmem, size = 0x9000, scoped, tag = 'internal scratch']
  %s0 = inlined_call_operand.vmem [shape: bf16[2048,27], index: 0, kind: input, shape index: {}]
  %s1 = inlined_call_operand.vmem [shape: bf16[27,128], index: 1, kind: input, shape index: {}]
  %s2 = inlined_call_operand.vmem [shape: f32[1,128], index: 2, kind: input, shape index: {}]
  %s3 = inlined_call_operand.vmem [shape: f32[1,128], index: 3, kind: input, shape index: {}]
  %s4 = inlined_call_operand.vmem [shape: bf16[128,256], index: 4, kind: input, shape index: {}]
  %s5 = inlined_call_operand.vmem [shape: f32[1,256], index: 5, kind: input, shape index: {}]
  %s6 = inlined_call_operand.vmem [shape: f32[1,256], index: 6, kind: input, shape index: {}]
  %s7 = inlined_call_operand.vmem [shape: bf16[256,128], index: 7, kind: input, shape index: {}]
  %s8 = inlined_call_operand.vmem [shape: f32[1,128], index: 8, kind: input, shape index: {}]
  %s9 = inlined_call_operand.vmem [shape: f32[8,128], index: 9, kind: output, shape index: {}]
  %s10 = sld [smem:[#allocation0]]
  $region46: #{moco_forward.4} parent=0
    _
  %s12 = ssub.s32 1, %s10
  %s13 = scalar_select 0, %s12, %s10
  // Predicated region
  $region2: #{moco_forward.4} parent=0 // pred_check
    _
  $region3: #{moco_forward.4} parent=0 // pred_check_branch
    %15 = sbr.rel (0) target = $region5
  $region4: #{moco_forward.4} parent=0 // pred_region
    _
  $region5: #{moco_forward.4} parent=0 // pred_fallthru
    _
  // Predicated region
  $region6: #{moco_forward.4} parent=0 // pred_check
    _
  $region7: #{moco_forward.4} parent=0 // pred_check_branch
    %17 = sbr.rel (0) target = $region9
  $region8: #{moco_forward.4} parent=0 // pred_region
    _
  $region9: #{moco_forward.4} parent=0 // pred_fallthru
    _
  // Predicated region
  $region10: #{moco_forward.4} parent=0 // pred_check
    _
  $region11: #{moco_forward.4} parent=0 // pred_check_branch
    %19 = sbr.rel (0) target = $region13
  $region12: #{moco_forward.4} parent=0 // pred_region
    _
  $region13: #{moco_forward.4} parent=0 // pred_fallthru
    _
  // Predicated region
  $region14: #{moco_forward.4} parent=0 // pred_check
    _
  $region15: #{moco_forward.4} parent=0 // pred_check_branch
    %21 = sbr.rel (0) target = $region17
  $region16: #{moco_forward.4} parent=0 // pred_region
    _
  $region17: #{moco_forward.4} parent=0 // pred_fallthru
    _
  // Predicated region
  $region18: #{moco_forward.4} parent=0 // pred_check
    _
  $region19: #{moco_forward.4} parent=0 // pred_check_branch
    %23 = sbr.rel (0) target = $region21
  $region20: #{moco_forward.4} parent=0 // pred_region
    _
  $region21: #{moco_forward.4} parent=0 // pred_fallthru
    _
  // Predicated region
  $region22: #{moco_forward.4} parent=0 // pred_check
    _
  $region23: #{moco_forward.4} parent=0 // pred_check_branch
    %25 = sbr.rel (0) target = $region25
  $region24: #{moco_forward.4} parent=0 // pred_region
    _
  $region25: #{moco_forward.4} parent=0 // pred_fallthru
    _
  // Predicated region
  $region26: #{moco_forward.4} parent=0 // pred_check
    _
  $region27: #{moco_forward.4} parent=0 // pred_check_branch
    %27 = sbr.rel (0) target = $region29
  $region28: #{moco_forward.4} parent=0 // pred_region
    _
  $region29: #{moco_forward.4} parent=0 // pred_fallthru
    _
  // Predicated region
  $region30: #{moco_forward.4} parent=0 // pred_check
    _
  $region31: #{moco_forward.4} parent=0 // pred_check_branch
    %29 = sbr.rel (0) target = $region33
  $region32: #{moco_forward.4} parent=0 // pred_region
    _
  $region33: #{moco_forward.4} parent=0 // pred_fallthru
    _
  // Predicated region
  $region34: #{moco_forward.4} parent=0 // pred_check
    _
  $region35: #{moco_forward.4} parent=0 // pred_check_branch
    %31 = sbr.rel (0) target = $region37
  $region36: #{moco_forward.4} parent=0 // pred_region
    _
  $region37: #{moco_forward.4} parent=0 // pred_fallthru
    _
  %v33 = vld [vmem:[%s0] sm:$0xf]
  %v34 = vld [vmem:[%s0 + $0x4] sm:$0xf]
  %v35 = vld [vmem:[%s0 + $0x8] sm:$0xf]
  %v36 = vld [vmem:[%s0 + $0xc] sm:$0xf]
  %v37 = vld [vmem:[%s0 + $0x10] sm:$0xf]
  %v38 = vld [vmem:[%s0 + $0x14] sm:$0xf]
  %v39 = vld [vmem:[%s0 + $0x18] sm:$0xf]
  %v40 = vld [vmem:[%s0 + $0x1c] sm:$0xf]
  %v41 = vld [vmem:[%s0 + $0x20] sm:$0xf]
  %v42 = vld [vmem:[%s0 + $0x24] sm:$0xf]
  %v43 = vld [vmem:[%s0 + $0x28] sm:$0xf]
  %v44 = vld [vmem:[%s0 + $0x2c] sm:$0xf]
  %v45 = vld [vmem:[%s0 + $0x30] sm:$0xf]
  %v46 = vld [vmem:[%s0 + $0x34] sm:$0xf]
  %v47 = vld [vmem:[%s0 + $0x38] sm:$0xf]
  %v48 = vld [vmem:[%s0 + $0x3c] sm:$0xf]
  %v49 = vld [vmem:[%s0 + $0x40] sm:$0xf]
  %v50 = vld [vmem:[%s0 + $0x44] sm:$0xf]
  %v51 = vld [vmem:[%s0 + $0x48] sm:$0xf]
  %v52 = vld [vmem:[%s0 + $0x4c] sm:$0xf]
  %v53 = vld [vmem:[%s0 + $0x50] sm:$0xf]
  %v54 = vld [vmem:[%s0 + $0x54] sm:$0xf]
  %v55 = vld [vmem:[%s0 + $0x58] sm:$0xf]
  %v56 = vld [vmem:[%s0 + $0x5c] sm:$0xf]
  %v57 = vld [vmem:[%s0 + $0x60] sm:$0xf]
  %v58 = vld [vmem:[%s0 + $0x64] sm:$0xf]
  %v59 = vld [vmem:[%s0 + $0x68] sm:$0xf]
  %v60 = vld [vmem:[%s0 + $0x6c] sm:$0xf]
  %v61 = vld [vmem:[%s0 + $0x70] sm:$0xf]
  %v62 = vld [vmem:[%s0 + $0x74] sm:$0xf]
  %v63 = vld [vmem:[%s0 + $0x78] sm:$0xf]
  %v64 = vld [vmem:[%s0 + $0x7c] sm:$0xf]
  %v65 = vld [vmem:[%s0 + $0x80] sm:$0xf]
  %v66 = vld [vmem:[%s0 + $0x84] sm:$0xf]
  %v67 = vld [vmem:[%s0 + $0x88] sm:$0xf]
  %v68 = vld [vmem:[%s0 + $0x8c] sm:$0xf]
  %v69 = vld [vmem:[%s0 + $0x90] sm:$0xf]
  %v70 = vld [vmem:[%s0 + $0x94] sm:$0xf]
  %v71 = vld [vmem:[%s0 + $0x98] sm:$0xf]
  %v72 = vld [vmem:[%s0 + $0x9c] sm:$0xf]
  %v73 = vld [vmem:[%s0 + $0xa0] sm:$0xf]
  %v74 = vld [vmem:[%s0 + $0xa4] sm:$0xf]
  %v75 = vld [vmem:[%s0 + $0xa8] sm:$0xf]
  %v76 = vld [vmem:[%s0 + $0xac] sm:$0xf]
  %v77 = vld [vmem:[%s0 + $0xb0] sm:$0xf]
  %v78 = vld [vmem:[%s0 + $0xb4] sm:$0xf]
  %v79 = vld [vmem:[%s0 + $0xb8] sm:$0xf]
  %v80 = vld [vmem:[%s0 + $0xbc] sm:$0xf]
  %v81 = vld [vmem:[%s0 + $0xc0] sm:$0xf]
  %v82 = vld [vmem:[%s0 + $0xc4] sm:$0xf]
  %v83 = vld [vmem:[%s0 + $0xc8] sm:$0xf]
  %v84 = vld [vmem:[%s0 + $0xcc] sm:$0xf]
  %v85 = vld [vmem:[%s0 + $0xd0] sm:$0xf]
  %v86 = vld [vmem:[%s0 + $0xd4] sm:$0xf]
  %v87 = vld [vmem:[%s0 + $0xd8] sm:$0xf]
  %v88 = vld [vmem:[%s0 + $0xdc] sm:$0xf]
  %v89 = vld [vmem:[%s0 + $0xe0] sm:$0xf]
  %v90 = vld [vmem:[%s0 + $0xe4] sm:$0xf]
  %v91 = vld [vmem:[%s0 + $0xe8] sm:$0xf]
  %v92 = vld [vmem:[%s0 + $0xec] sm:$0xf]
  %v93 = vld [vmem:[%s0 + $0xf0] sm:$0xf]
  %v94 = vld [vmem:[%s0 + $0xf4] sm:$0xf]
  %v95 = vld [vmem:[%s0 + $0xf8] sm:$0xf]
  %v96 = vld [vmem:[%s0 + $0xfc] sm:$0xf]
  %v97 = vld [vmem:[%s0 + $0x100] sm:$0xf]
  %v98 = vld [vmem:[%s0 + $0x104] sm:$0xf]
  %v99 = vld [vmem:[%s0 + $0x108] sm:$0xf]
  %v100 = vld [vmem:[%s0 + $0x10c] sm:$0xf]
  %v101 = vld [vmem:[%s0 + $0x110] sm:$0xf]
  %v102 = vld [vmem:[%s0 + $0x114] sm:$0xf]
  %v103 = vld [vmem:[%s0 + $0x118] sm:$0xf]
  %v104 = vld [vmem:[%s0 + $0x11c] sm:$0xf]
  %v105 = vld [vmem:[%s0 + $0x120] sm:$0xf]
  %v106 = vld [vmem:[%s0 + $0x124] sm:$0xf]
  %v107 = vld [vmem:[%s0 + $0x128] sm:$0xf]
  %v108 = vld [vmem:[%s0 + $0x12c] sm:$0xf]
  %v109 = vld [vmem:[%s0 + $0x130] sm:$0xf]
  %v110 = vld [vmem:[%s0 + $0x134] sm:$0xf]
  %v111 = vld [vmem:[%s0 + $0x138] sm:$0xf]
  %v112 = vld [vmem:[%s0 + $0x13c] sm:$0xf]
  %v113 = vld [vmem:[%s0 + $0x140] sm:$0xf]
  %v114 = vld [vmem:[%s0 + $0x144] sm:$0xf]
  %v115 = vld [vmem:[%s0 + $0x148] sm:$0xf]
  %v116 = vld [vmem:[%s0 + $0x14c] sm:$0xf]
  %v117 = vld [vmem:[%s0 + $0x150] sm:$0xf]
  %v118 = vld [vmem:[%s0 + $0x154] sm:$0xf]
  %v119 = vld [vmem:[%s0 + $0x158] sm:$0xf]
  %v120 = vld [vmem:[%s0 + $0x15c] sm:$0xf]
  %v121 = vld [vmem:[%s0 + $0x160] sm:$0xf]
  %v122 = vld [vmem:[%s0 + $0x164] sm:$0xf]
  %v123 = vld [vmem:[%s0 + $0x168] sm:$0xf]
  %v124 = vld [vmem:[%s0 + $0x16c] sm:$0xf]
  %v125 = vld [vmem:[%s0 + $0x170] sm:$0xf]
  %v126 = vld [vmem:[%s0 + $0x174] sm:$0xf]
  %v127 = vld [vmem:[%s0 + $0x178] sm:$0xf]
  %v128 = vld [vmem:[%s0 + $0x17c] sm:$0xf]
  %v129 = vld [vmem:[%s0 + $0x180] sm:$0xf]
  %v130 = vld [vmem:[%s0 + $0x184] sm:$0xf]
  %v131 = vld [vmem:[%s0 + $0x188] sm:$0xf]
  %v132 = vld [vmem:[%s0 + $0x18c] sm:$0xf]
  %v133 = vld [vmem:[%s0 + $0x190] sm:$0xf]
  %v134 = vld [vmem:[%s0 + $0x194] sm:$0xf]
  %v135 = vld [vmem:[%s0 + $0x198] sm:$0xf]
  %v136 = vld [vmem:[%s0 + $0x19c] sm:$0xf]
  %v137 = vld [vmem:[%s0 + $0x1a0] sm:$0xf]
  %v138 = vld [vmem:[%s0 + $0x1a4] sm:$0xf]
  %v139 = vld [vmem:[%s0 + $0x1a8] sm:$0xf]
  %v140 = vld [vmem:[%s0 + $0x1ac] sm:$0xf]
  %v141 = vld [vmem:[%s0 + $0x1b0] sm:$0xf]
  %v142 = vld [vmem:[%s0 + $0x1b4] sm:$0xf]
  %v143 = vld [vmem:[%s0 + $0x1b8] sm:$0xf]
  %v144 = vld [vmem:[%s0 + $0x1bc] sm:$0xf]
  %v145 = vld [vmem:[%s0 + $0x1c0] sm:$0xf]
  %v146 = vld [vmem:[%s0 + $0x1c4] sm:$0xf]
  %v147 = vld [vmem:[%s0 + $0x1c8] sm:$0xf]
  %v148 = vld [vmem:[%s0 + $0x1cc] sm:$0xf]
  %v149 = vld [vmem:[%s0 + $0x1d0] sm:$0xf]
  %v150 = vld [vmem:[%s0 + $0x1d4] sm:$0xf]
  %v151 = vld [vmem:[%s0 + $0x1d8] sm:$0xf]
  %v152 = vld [vmem:[%s0 + $0x1dc] sm:$0xf]
  %v153 = vld [vmem:[%s0 + $0x1e0] sm:$0xf]
  %v154 = vld [vmem:[%s0 + $0x1e4] sm:$0xf]
  %v155 = vld [vmem:[%s0 + $0x1e8] sm:$0xf]
  %v156 = vld [vmem:[%s0 + $0x1ec] sm:$0xf]
  %v157 = vld [vmem:[%s0 + $0x1f0] sm:$0xf]
  %v158 = vld [vmem:[%s0 + $0x1f4] sm:$0xf]
  %v159 = vld [vmem:[%s0 + $0x1f8] sm:$0xf]
  %v160 = vld [vmem:[%s0 + $0x1fc] sm:$0xf]
  %v161 = vld [vmem:[%s0 + $0x200] sm:$0xf]
  %v162 = vld [vmem:[%s0 + $0x204] sm:$0xf]
  %v163 = vld [vmem:[%s0 + $0x208] sm:$0xf]
  %v164 = vld [vmem:[%s0 + $0x20c] sm:$0xf]
  %v165 = vld [vmem:[%s0 + $0x210] sm:$0xf]
  %v166 = vld [vmem:[%s0 + $0x214] sm:$0xf]
  %v167 = vld [vmem:[%s0 + $0x218] sm:$0xf]
  %v168 = vld [vmem:[%s0 + $0x21c] sm:$0xf]
  %v169 = vld [vmem:[%s0 + $0x220] sm:$0xf]
  %v170 = vld [vmem:[%s0 + $0x224] sm:$0xf]
  %v171 = vld [vmem:[%s0 + $0x228] sm:$0xf]
  %v172 = vld [vmem:[%s0 + $0x22c] sm:$0xf]
  %v173 = vld [vmem:[%s0 + $0x230] sm:$0xf]
  %v174 = vld [vmem:[%s0 + $0x234] sm:$0xf]
  %v175 = vld [vmem:[%s0 + $0x238] sm:$0xf]
  %v176 = vld [vmem:[%s0 + $0x23c] sm:$0xf]
  %v177 = vld [vmem:[%s0 + $0x240] sm:$0xf]
  %v178 = vld [vmem:[%s0 + $0x244] sm:$0xf]
  %v179 = vld [vmem:[%s0 + $0x248] sm:$0xf]
  %v180 = vld [vmem:[%s0 + $0x24c] sm:$0xf]
  %v181 = vld [vmem:[%s0 + $0x250] sm:$0xf]
  %v182 = vld [vmem:[%s0 + $0x254] sm:$0xf]
  %v183 = vld [vmem:[%s0 + $0x258] sm:$0xf]
  %v184 = vld [vmem:[%s0 + $0x25c] sm:$0xf]
  %v185 = vld [vmem:[%s0 + $0x260] sm:$0xf]
  %v186 = vld [vmem:[%s0 + $0x264] sm:$0xf]
  %v187 = vld [vmem:[%s0 + $0x268] sm:$0xf]
  %v188 = vld [vmem:[%s0 + $0x26c] sm:$0xf]
  %v189 = vld [vmem:[%s0 + $0x270] sm:$0xf]
  %v190 = vld [vmem:[%s0 + $0x274] sm:$0xf]
  %v191 = vld [vmem:[%s0 + $0x278] sm:$0xf]
  %v192 = vld [vmem:[%s0 + $0x27c] sm:$0xf]
  %v193 = vld [vmem:[%s0 + $0x280] sm:$0xf]
  %v194 = vld [vmem:[%s0 + $0x284] sm:$0xf]
  %v195 = vld [vmem:[%s0 + $0x288] sm:$0xf]
  %v196 = vld [vmem:[%s0 + $0x28c] sm:$0xf]
  %v197 = vld [vmem:[%s0 + $0x290] sm:$0xf]
  %v198 = vld [vmem:[%s0 + $0x294] sm:$0xf]
  %v199 = vld [vmem:[%s0 + $0x298] sm:$0xf]
  %v200 = vld [vmem:[%s0 + $0x29c] sm:$0xf]
  %v201 = vld [vmem:[%s0 + $0x2a0] sm:$0xf]
  %v202 = vld [vmem:[%s0 + $0x2a4] sm:$0xf]
  %v203 = vld [vmem:[%s0 + $0x2a8] sm:$0xf]
  %v204 = vld [vmem:[%s0 + $0x2ac] sm:$0xf]
  %v205 = vld [vmem:[%s0 + $0x2b0] sm:$0xf]
  %v206 = vld [vmem:[%s0 + $0x2b4] sm:$0xf]
  %v207 = vld [vmem:[%s0 + $0x2b8] sm:$0xf]
  %v208 = vld [vmem:[%s0 + $0x2bc] sm:$0xf]
  %v209 = vld [vmem:[%s0 + $0x2c0] sm:$0xf]
  %v210 = vld [vmem:[%s0 + $0x2c4] sm:$0xf]
  %v211 = vld [vmem:[%s0 + $0x2c8] sm:$0xf]
  %v212 = vld [vmem:[%s0 + $0x2cc] sm:$0xf]
  %v213 = vld [vmem:[%s0 + $0x2d0] sm:$0xf]
  %v214 = vld [vmem:[%s0 + $0x2d4] sm:$0xf]
  %v215 = vld [vmem:[%s0 + $0x2d8] sm:$0xf]
  %v216 = vld [vmem:[%s0 + $0x2dc] sm:$0xf]
  %v217 = vld [vmem:[%s0 + $0x2e0] sm:$0xf]
  %v218 = vld [vmem:[%s0 + $0x2e4] sm:$0xf]
  %v219 = vld [vmem:[%s0 + $0x2e8] sm:$0xf]
  %v220 = vld [vmem:[%s0 + $0x2ec] sm:$0xf]
  %v221 = vld [vmem:[%s0 + $0x2f0] sm:$0xf]
  %v222 = vld [vmem:[%s0 + $0x2f4] sm:$0xf]
  %v223 = vld [vmem:[%s0 + $0x2f8] sm:$0xf]
  %v224 = vld [vmem:[%s0 + $0x2fc] sm:$0xf]
  %v225 = vld [vmem:[%s0 + $0x300] sm:$0xf]
  %v226 = vld [vmem:[%s0 + $0x304] sm:$0xf]
  %v227 = vld [vmem:[%s0 + $0x308] sm:$0xf]
  %v228 = vld [vmem:[%s0 + $0x30c] sm:$0xf]
  %v229 = vld [vmem:[%s0 + $0x310] sm:$0xf]
  %v230 = vld [vmem:[%s0 + $0x314] sm:$0xf]
  %v231 = vld [vmem:[%s0 + $0x318] sm:$0xf]
  %v232 = vld [vmem:[%s0 + $0x31c] sm:$0xf]
  %v233 = vld [vmem:[%s0 + $0x320] sm:$0xf]
  %v234 = vld [vmem:[%s0 + $0x324] sm:$0xf]
  %v235 = vld [vmem:[%s0 + $0x328] sm:$0xf]
  %v236 = vld [vmem:[%s0 + $0x32c] sm:$0xf]
  %v237 = vld [vmem:[%s0 + $0x330] sm:$0xf]
  %v238 = vld [vmem:[%s0 + $0x334] sm:$0xf]
  %v239 = vld [vmem:[%s0 + $0x338] sm:$0xf]
  %v240 = vld [vmem:[%s0 + $0x33c] sm:$0xf]
  %v241 = vld [vmem:[%s0 + $0x340] sm:$0xf]
  %v242 = vld [vmem:[%s0 + $0x344] sm:$0xf]
  %v243 = vld [vmem:[%s0 + $0x348] sm:$0xf]
  %v244 = vld [vmem:[%s0 + $0x34c] sm:$0xf]
  %v245 = vld [vmem:[%s0 + $0x350] sm:$0xf]
  %v246 = vld [vmem:[%s0 + $0x354] sm:$0xf]
  %v247 = vld [vmem:[%s0 + $0x358] sm:$0xf]
  %v248 = vld [vmem:[%s0 + $0x35c] sm:$0xf]
  %v249 = vld [vmem:[%s0 + $0x360] sm:$0xf]
  %v250 = vld [vmem:[%s0 + $0x364] sm:$0xf]
  %v251 = vld [vmem:[%s0 + $0x368] sm:$0xf]
  %v252 = vld [vmem:[%s0 + $0x36c] sm:$0xf]
  %v253 = vld [vmem:[%s0 + $0x370] sm:$0xf]
  %v254 = vld [vmem:[%s0 + $0x374] sm:$0xf]
  %v255 = vld [vmem:[%s0 + $0x378] sm:$0xf]
  %v256 = vld [vmem:[%s0 + $0x37c] sm:$0xf]
  %v257 = vld [vmem:[%s0 + $0x380] sm:$0xf]
  %v258 = vld [vmem:[%s0 + $0x384] sm:$0xf]
  %v259 = vld [vmem:[%s0 + $0x388] sm:$0xf]
  %v260 = vld [vmem:[%s0 + $0x38c] sm:$0xf]
  %v261 = vld [vmem:[%s0 + $0x390] sm:$0xf]
  %v262 = vld [vmem:[%s0 + $0x394] sm:$0xf]
  %v263 = vld [vmem:[%s0 + $0x398] sm:$0xf]
  %v264 = vld [vmem:[%s0 + $0x39c] sm:$0xf]
  %v265 = vld [vmem:[%s0 + $0x3a0] sm:$0xf]
  %v266 = vld [vmem:[%s0 + $0x3a4] sm:$0xf]
  %v267 = vld [vmem:[%s0 + $0x3a8] sm:$0xf]
  %v268 = vld [vmem:[%s0 + $0x3ac] sm:$0xf]
  %v269 = vld [vmem:[%s0 + $0x3b0] sm:$0xf]
  %v270 = vld [vmem:[%s0 + $0x3b4] sm:$0xf]
  %v271 = vld [vmem:[%s0 + $0x3b8] sm:$0xf]
  %v272 = vld [vmem:[%s0 + $0x3bc] sm:$0xf]
  %v273 = vld [vmem:[%s0 + $0x3c0] sm:$0xf]
  %v274 = vld [vmem:[%s0 + $0x3c4] sm:$0xf]
  %v275 = vld [vmem:[%s0 + $0x3c8] sm:$0xf]
  %v276 = vld [vmem:[%s0 + $0x3cc] sm:$0xf]
  %v277 = vld [vmem:[%s0 + $0x3d0] sm:$0xf]
  %v278 = vld [vmem:[%s0 + $0x3d4] sm:$0xf]
  %v279 = vld [vmem:[%s0 + $0x3d8] sm:$0xf]
  %v280 = vld [vmem:[%s0 + $0x3dc] sm:$0xf]
  %v281 = vld [vmem:[%s0 + $0x3e0] sm:$0xf]
  %v282 = vld [vmem:[%s0 + $0x3e4] sm:$0xf]
  %v283 = vld [vmem:[%s0 + $0x3e8] sm:$0xf]
  %v284 = vld [vmem:[%s0 + $0x3ec] sm:$0xf]
  %v285 = vld [vmem:[%s0 + $0x3f0] sm:$0xf]
  %v286 = vld [vmem:[%s0 + $0x3f4] sm:$0xf]
  %v287 = vld [vmem:[%s0 + $0x3f8] sm:$0xf]
  %v288 = vld [vmem:[%s0 + $0x3fc] sm:$0xf]
  %v289 = vld [vmem:[%s1] sm:$0xf]
  %v290 = vld [vmem:[%s1 + $0x4] sm:$0xf]
  %v291 = vld [vmem:[%s1 + $0x8] sm:$0xf]
  %v292 = vld [vmem:[%s1 + $0xc] sm:$0x3]
  %v549 = vunpack.c.l.b16 %v33
  %v550 = vunpack.c.l.b16 %v34
  %v551 = vunpack.c.l.b16 %v35
  %v552 = vunpack.c.l.b16 %v36
  %v553 = vunpack.c.l.b16 %v37
  %v554 = vunpack.c.l.b16 %v38
  %v555 = vunpack.c.l.b16 %v39
  %v556 = vunpack.c.l.b16 %v40
  %v557 = vunpack.c.l.b16 %v41
  %v558 = vunpack.c.l.b16 %v42
  %v559 = vunpack.c.l.b16 %v43
  %v560 = vunpack.c.l.b16 %v44
  %v561 = vunpack.c.l.b16 %v45
  %v562 = vunpack.c.l.b16 %v46
  %v563 = vunpack.c.l.b16 %v47
  %v564 = vunpack.c.l.b16 %v48
  %v565 = vunpack.c.l.b16 %v49
  %v566 = vunpack.c.l.b16 %v50
  %v567 = vunpack.c.l.b16 %v51
  %v568 = vunpack.c.l.b16 %v52
  %v569 = vunpack.c.l.b16 %v53
  %v570 = vunpack.c.l.b16 %v54
  %v571 = vunpack.c.l.b16 %v55
  %v572 = vunpack.c.l.b16 %v56
  %v573 = vunpack.c.l.b16 %v57
  %v574 = vunpack.c.l.b16 %v58
  %v575 = vunpack.c.l.b16 %v59
  %v576 = vunpack.c.l.b16 %v60
  %v577 = vunpack.c.l.b16 %v61
  %v578 = vunpack.c.l.b16 %v62
  %v579 = vunpack.c.l.b16 %v63
  %v580 = vunpack.c.l.b16 %v64
  %v581 = vunpack.c.l.b16 %v65
  %v582 = vunpack.c.l.b16 %v66
  %v583 = vunpack.c.l.b16 %v67
  %v584 = vunpack.c.l.b16 %v68
  %v585 = vunpack.c.l.b16 %v69
  %v586 = vunpack.c.l.b16 %v70
  %v587 = vunpack.c.l.b16 %v71
  %v588 = vunpack.c.l.b16 %v72
  %v589 = vunpack.c.l.b16 %v73
  %v590 = vunpack.c.l.b16 %v74
  %v591 = vunpack.c.l.b16 %v75
  %v592 = vunpack.c.l.b16 %v76
  %v593 = vunpack.c.l.b16 %v77
  %v594 = vunpack.c.l.b16 %v78
  %v595 = vunpack.c.l.b16 %v79
  %v596 = vunpack.c.l.b16 %v80
  %v597 = vunpack.c.l.b16 %v81
  %v598 = vunpack.c.l.b16 %v82
  %v599 = vunpack.c.l.b16 %v83
  %v600 = vunpack.c.l.b16 %v84
  %v601 = vunpack.c.l.b16 %v85
  %v602 = vunpack.c.l.b16 %v86
  %v603 = vunpack.c.l.b16 %v87
  %v604 = vunpack.c.l.b16 %v88
  %v605 = vunpack.c.l.b16 %v89
  %v606 = vunpack.c.l.b16 %v90
  %v607 = vunpack.c.l.b16 %v91
  %v608 = vunpack.c.l.b16 %v92
  %v609 = vunpack.c.l.b16 %v93
  %v610 = vunpack.c.l.b16 %v94
  %v611 = vunpack.c.l.b16 %v95
  %v612 = vunpack.c.l.b16 %v96
  %v613 = vunpack.c.l.b16 %v97
  %v614 = vunpack.c.l.b16 %v98
  %v615 = vunpack.c.l.b16 %v99
  %v616 = vunpack.c.l.b16 %v100
  %v617 = vunpack.c.l.b16 %v101
  %v618 = vunpack.c.l.b16 %v102
  %v619 = vunpack.c.l.b16 %v103
  %v620 = vunpack.c.l.b16 %v104
  %v621 = vunpack.c.l.b16 %v105
  %v622 = vunpack.c.l.b16 %v106
  %v623 = vunpack.c.l.b16 %v107
  %v624 = vunpack.c.l.b16 %v108
  %v625 = vunpack.c.l.b16 %v109
  %v626 = vunpack.c.l.b16 %v110
  %v627 = vunpack.c.l.b16 %v111
  %v628 = vunpack.c.l.b16 %v112
  %v629 = vunpack.c.l.b16 %v113
  %v630 = vunpack.c.l.b16 %v114
  %v631 = vunpack.c.l.b16 %v115
  %v632 = vunpack.c.l.b16 %v116
  %v633 = vunpack.c.l.b16 %v117
  %v634 = vunpack.c.l.b16 %v118
  %v635 = vunpack.c.l.b16 %v119
  %v636 = vunpack.c.l.b16 %v120
  %v637 = vunpack.c.l.b16 %v121
  %v638 = vunpack.c.l.b16 %v122
  %v639 = vunpack.c.l.b16 %v123
  %v640 = vunpack.c.l.b16 %v124
  %v641 = vunpack.c.l.b16 %v125
  %v642 = vunpack.c.l.b16 %v126
  %v643 = vunpack.c.l.b16 %v127
  %v644 = vunpack.c.l.b16 %v128
  %v645 = vunpack.c.l.b16 %v129
  %v646 = vunpack.c.l.b16 %v130
  %v647 = vunpack.c.l.b16 %v131
  %v648 = vunpack.c.l.b16 %v132
  %v649 = vunpack.c.l.b16 %v133
  %v650 = vunpack.c.l.b16 %v134
  %v651 = vunpack.c.l.b16 %v135
  %v652 = vunpack.c.l.b16 %v136
  %v653 = vunpack.c.l.b16 %v137
  %v654 = vunpack.c.l.b16 %v138
  %v655 = vunpack.c.l.b16 %v139
  %v656 = vunpack.c.l.b16 %v140
  %v657 = vunpack.c.l.b16 %v141
  %v658 = vunpack.c.l.b16 %v142
  %v659 = vunpack.c.l.b16 %v143
  %v660 = vunpack.c.l.b16 %v144
  %v661 = vunpack.c.l.b16 %v145
  %v662 = vunpack.c.l.b16 %v146
  %v663 = vunpack.c.l.b16 %v147
  %v664 = vunpack.c.l.b16 %v148
  %v665 = vunpack.c.l.b16 %v149
  %v666 = vunpack.c.l.b16 %v150
  %v667 = vunpack.c.l.b16 %v151
  %v668 = vunpack.c.l.b16 %v152
  %v669 = vunpack.c.l.b16 %v153
  %v670 = vunpack.c.l.b16 %v154
  %v671 = vunpack.c.l.b16 %v155
  %v672 = vunpack.c.l.b16 %v156
  %v673 = vunpack.c.l.b16 %v157
  %v674 = vunpack.c.l.b16 %v158
  %v675 = vunpack.c.l.b16 %v159
  %v676 = vunpack.c.l.b16 %v160
  %v677 = vunpack.c.l.b16 %v161
  %v678 = vunpack.c.l.b16 %v162
  %v679 = vunpack.c.l.b16 %v163
  %v680 = vunpack.c.l.b16 %v164
  %v681 = vunpack.c.l.b16 %v165
  %v682 = vunpack.c.l.b16 %v166
  %v683 = vunpack.c.l.b16 %v167
  %v684 = vunpack.c.l.b16 %v168
  %v685 = vunpack.c.l.b16 %v169
  %v686 = vunpack.c.l.b16 %v170
  %v687 = vunpack.c.l.b16 %v171
  %v688 = vunpack.c.l.b16 %v172
  %v689 = vunpack.c.l.b16 %v173
  %v690 = vunpack.c.l.b16 %v174
  %v691 = vunpack.c.l.b16 %v175
  %v692 = vunpack.c.l.b16 %v176
  %v693 = vunpack.c.l.b16 %v177
  %v694 = vunpack.c.l.b16 %v178
  %v695 = vunpack.c.l.b16 %v179
  %v696 = vunpack.c.l.b16 %v180
  %v697 = vunpack.c.l.b16 %v181
  %v698 = vunpack.c.l.b16 %v182
  %v699 = vunpack.c.l.b16 %v183
  %v700 = vunpack.c.l.b16 %v184
  %v701 = vunpack.c.l.b16 %v185
  %v702 = vunpack.c.l.b16 %v186
  %v703 = vunpack.c.l.b16 %v187
  %v704 = vunpack.c.l.b16 %v188
  %v705 = vunpack.c.l.b16 %v189
  %v706 = vunpack.c.l.b16 %v190
  %v707 = vunpack.c.l.b16 %v191
  %v708 = vunpack.c.l.b16 %v192
  %v709 = vunpack.c.l.b16 %v193
  %v710 = vunpack.c.l.b16 %v194
  %v711 = vunpack.c.l.b16 %v195
  %v712 = vunpack.c.l.b16 %v196
  %v713 = vunpack.c.l.b16 %v197
  %v714 = vunpack.c.l.b16 %v198
  %v715 = vunpack.c.l.b16 %v199
  %v716 = vunpack.c.l.b16 %v200
  %v717 = vunpack.c.l.b16 %v201
  %v718 = vunpack.c.l.b16 %v202
  %v719 = vunpack.c.l.b16 %v203
  %v720 = vunpack.c.l.b16 %v204
  %v721 = vunpack.c.l.b16 %v205
  %v722 = vunpack.c.l.b16 %v206
  %v723 = vunpack.c.l.b16 %v207
  %v724 = vunpack.c.l.b16 %v208
  %v725 = vunpack.c.l.b16 %v209
  %v726 = vunpack.c.l.b16 %v210
  %v727 = vunpack.c.l.b16 %v211
  %v728 = vunpack.c.l.b16 %v212
  %v729 = vunpack.c.l.b16 %v213
  %v730 = vunpack.c.l.b16 %v214
  %v731 = vunpack.c.l.b16 %v215
  %v732 = vunpack.c.l.b16 %v216
  %v733 = vunpack.c.l.b16 %v217
  %v734 = vunpack.c.l.b16 %v218
  %v735 = vunpack.c.l.b16 %v219
  %v736 = vunpack.c.l.b16 %v220
  %v737 = vunpack.c.l.b16 %v221
  %v738 = vunpack.c.l.b16 %v222
  %v739 = vunpack.c.l.b16 %v223
  %v740 = vunpack.c.l.b16 %v224
  %v741 = vunpack.c.l.b16 %v225
  %v742 = vunpack.c.l.b16 %v226
  %v743 = vunpack.c.l.b16 %v227
  %v744 = vunpack.c.l.b16 %v228
  %v745 = vunpack.c.l.b16 %v229
  %v746 = vunpack.c.l.b16 %v230
  %v747 = vunpack.c.l.b16 %v231
  %v748 = vunpack.c.l.b16 %v232
  %v749 = vunpack.c.l.b16 %v233
  %v750 = vunpack.c.l.b16 %v234
  %v751 = vunpack.c.l.b16 %v235
  %v752 = vunpack.c.l.b16 %v236
  %v753 = vunpack.c.l.b16 %v237
  %v754 = vunpack.c.l.b16 %v238
  %v755 = vunpack.c.l.b16 %v239
  %v756 = vunpack.c.l.b16 %v240
  %v757 = vunpack.c.l.b16 %v241
  %v758 = vunpack.c.l.b16 %v242
  %v759 = vunpack.c.l.b16 %v243
  %v760 = vunpack.c.l.b16 %v244
  %v761 = vunpack.c.l.b16 %v245
  %v762 = vunpack.c.l.b16 %v246
  %v763 = vunpack.c.l.b16 %v247
  %v764 = vunpack.c.l.b16 %v248
  %v765 = vunpack.c.l.b16 %v249
  %v766 = vunpack.c.l.b16 %v250
  %v767 = vunpack.c.l.b16 %v251
  %v768 = vunpack.c.l.b16 %v252
  %v769 = vunpack.c.l.b16 %v253
  %v770 = vunpack.c.l.b16 %v254
  %v771 = vunpack.c.l.b16 %v255
  %v772 = vunpack.c.l.b16 %v256
  %v773 = vunpack.c.l.b16 %v257
  %v774 = vunpack.c.l.b16 %v258
  %v775 = vunpack.c.l.b16 %v259
  %v776 = vunpack.c.l.b16 %v260
  %v777 = vunpack.c.l.b16 %v261
  %v778 = vunpack.c.l.b16 %v262
  %v779 = vunpack.c.l.b16 %v263
  %v780 = vunpack.c.l.b16 %v264
  %v781 = vunpack.c.l.b16 %v265
  %v782 = vunpack.c.l.b16 %v266
  %v783 = vunpack.c.l.b16 %v267
  %v784 = vunpack.c.l.b16 %v268
  %v785 = vunpack.c.l.b16 %v269
  %v786 = vunpack.c.l.b16 %v270
  %v787 = vunpack.c.l.b16 %v271
  %v788 = vunpack.c.l.b16 %v272
  %v789 = vunpack.c.l.b16 %v273
  %v790 = vunpack.c.l.b16 %v274
  %v791 = vunpack.c.l.b16 %v275
  %v792 = vunpack.c.l.b16 %v276
  %v793 = vunpack.c.l.b16 %v277
  %v794 = vunpack.c.l.b16 %v278
  %v795 = vunpack.c.l.b16 %v279
  %v796 = vunpack.c.l.b16 %v280
  %v797 = vunpack.c.l.b16 %v281
  %v798 = vunpack.c.l.b16 %v282
  %v799 = vunpack.c.l.b16 %v283
  %v800 = vunpack.c.l.b16 %v284
  %v801 = vunpack.c.l.b16 %v285
  %v802 = vunpack.c.l.b16 %v286
  %v803 = vunpack.c.l.b16 %v287
  %v804 = vunpack.c.l.b16 %v288
  %v805 = vpack.c.b16 %v550, %v549
  %v806 = vpack.c.b16 %v552, %v551
  %v807 = vpack.c.b16 %v554, %v553
  %v808 = vpack.c.b16 %v556, %v555
  %v809 = vpack.c.b16 %v558, %v557
  %v810 = vpack.c.b16 %v560, %v559
  %v811 = vpack.c.b16 %v562, %v561
  %v812 = vpack.c.b16 %v564, %v563
  %v813 = vpack.c.b16 %v566, %v565
  %v814 = vpack.c.b16 %v568, %v567
  %v815 = vpack.c.b16 %v570, %v569
  %v816 = vpack.c.b16 %v572, %v571
  %v817 = vpack.c.b16 %v574, %v573
  %v818 = vpack.c.b16 %v576, %v575
  %v819 = vpack.c.b16 %v578, %v577
  %v820 = vpack.c.b16 %v580, %v579
  %v821 = vpack.c.b16 %v582, %v581
  %v822 = vpack.c.b16 %v584, %v583
  %v823 = vpack.c.b16 %v586, %v585
  %v824 = vpack.c.b16 %v588, %v587
  %v825 = vpack.c.b16 %v590, %v589
  %v826 = vpack.c.b16 %v592, %v591
  %v827 = vpack.c.b16 %v594, %v593
  %v828 = vpack.c.b16 %v596, %v595
  %v829 = vpack.c.b16 %v598, %v597
  %v830 = vpack.c.b16 %v600, %v599
  %v831 = vpack.c.b16 %v602, %v601
  %v832 = vpack.c.b16 %v604, %v603
  %v833 = vpack.c.b16 %v606, %v605
  %v834 = vpack.c.b16 %v608, %v607
  %v835 = vpack.c.b16 %v610, %v609
  %v836 = vpack.c.b16 %v612, %v611
  %v837 = vpack.c.b16 %v614, %v613
  %v838 = vpack.c.b16 %v616, %v615
  %v839 = vpack.c.b16 %v618, %v617
  %v840 = vpack.c.b16 %v620, %v619
  %v841 = vpack.c.b16 %v622, %v621
  %v842 = vpack.c.b16 %v624, %v623
  %v843 = vpack.c.b16 %v626, %v625
  %v844 = vpack.c.b16 %v628, %v627
  %v845 = vpack.c.b16 %v630, %v629
  %v846 = vpack.c.b16 %v632, %v631
  %v847 = vpack.c.b16 %v634, %v633
  %v848 = vpack.c.b16 %v636, %v635
  %v849 = vpack.c.b16 %v638, %v637
  %v850 = vpack.c.b16 %v640, %v639
  %v851 = vpack.c.b16 %v642, %v641
  %v852 = vpack.c.b16 %v644, %v643
  %v853 = vpack.c.b16 %v646, %v645
  %v854 = vpack.c.b16 %v648, %v647
  %v855 = vpack.c.b16 %v650, %v649
  %v856 = vpack.c.b16 %v652, %v651
  %v857 = vpack.c.b16 %v654, %v653
  %v858 = vpack.c.b16 %v656, %v655
  %v859 = vpack.c.b16 %v658, %v657
  %v860 = vpack.c.b16 %v660, %v659
  %v861 = vpack.c.b16 %v662, %v661
  %v862 = vpack.c.b16 %v664, %v663
  %v863 = vpack.c.b16 %v666, %v665
  %v864 = vpack.c.b16 %v668, %v667
  %v865 = vpack.c.b16 %v670, %v669
  %v866 = vpack.c.b16 %v672, %v671
  %v867 = vpack.c.b16 %v674, %v673
  %v868 = vpack.c.b16 %v676, %v675
  %v869 = vpack.c.b16 %v678, %v677
  %v870 = vpack.c.b16 %v680, %v679
  %v871 = vpack.c.b16 %v682, %v681
  %v872 = vpack.c.b16 %v684, %v683
  %v873 = vpack.c.b16 %v686, %v685
  %v874 = vpack.c.b16 %v688, %v687
  %v875 = vpack.c.b16 %v690, %v689
  %v876 = vpack.c.b16 %v692, %v691
  %v877 = vpack.c.b16 %v694, %v693
  %v878 = vpack.c.b16 %v696, %v695
  %v879 = vpack.c.b16 %v698, %v697
  %v880 = vpack.c.b16 %v700, %v699
  %v881 = vpack.c.b16 %v702, %v701
  %v882 = vpack.c.b16 %v704, %v703
  %v883 = vpack.c.b16 %v706, %v705
  %v884 = vpack.c.b16 %v708, %v707
  %v885 = vpack.c.b16 %v710, %v709
  %v886 = vpack.c.b16 %v712, %v711
  %v887 = vpack.c.b16 %v714, %v713
  %v888 = vpack.c.b16 %v716, %v715
  %v889 = vpack.c.b16 %v718, %v717
  %v890 = vpack.c.b16 %v720, %v719
  %v891 = vpack.c.b16 %v722, %v721
  %v892 = vpack.c.b16 %v724, %v723
  %v893 = vpack.c.b16 %v726, %v725
  %v894 = vpack.c.b16 %v728, %v727
  %v895 = vpack.c.b16 %v730, %v729
  %v896 = vpack.c.b16 %v732, %v731
  %v897 = vpack.c.b16 %v734, %v733
  %v898 = vpack.c.b16 %v736, %v735
  %v899 = vpack.c.b16 %v738, %v737
  %v900 = vpack.c.b16 %v740, %v739
  %v901 = vpack.c.b16 %v742, %v741
  %v902 = vpack.c.b16 %v744, %v743
  %v903 = vpack.c.b16 %v746, %v745
  %v904 = vpack.c.b16 %v748, %v747
  %v905 = vpack.c.b16 %v750, %v749
  %v906 = vpack.c.b16 %v752, %v751
  %v907 = vpack.c.b16 %v754, %v753
  %v908 = vpack.c.b16 %v756, %v755
  %v909 = vpack.c.b16 %v758, %v757
  %v910 = vpack.c.b16 %v760, %v759
  %v911 = vpack.c.b16 %v762, %v761
  %v912 = vpack.c.b16 %v764, %v763
  %v913 = vpack.c.b16 %v766, %v765
  %v914 = vpack.c.b16 %v768, %v767
  %v915 = vpack.c.b16 %v770, %v769
  %v916 = vpack.c.b16 %v772, %v771
  %v917 = vpack.c.b16 %v774, %v773
  %v918 = vpack.c.b16 %v776, %v775
  %v919 = vpack.c.b16 %v778, %v777
  %v920 = vpack.c.b16 %v780, %v779
  %v921 = vpack.c.b16 %v782, %v781
  %v922 = vpack.c.b16 %v784, %v783
  %v923 = vpack.c.b16 %v786, %v785
  %v924 = vpack.c.b16 %v788, %v787
  %v925 = vpack.c.b16 %v790, %v789
  %v926 = vpack.c.b16 %v792, %v791
  %v927 = vpack.c.b16 %v794, %v793
  %v928 = vpack.c.b16 %v796, %v795
  %v929 = vpack.c.b16 %v798, %v797
  %v930 = vpack.c.b16 %v800, %v799
  %v931 = vpack.c.b16 %v802, %v801
  %v932 = vpack.c.b16 %v804, %v803
  %v937 = vunpack.c.l.b16 %v289
  %v938 = vunpack.c.l.b16 %v290
  %v939 = vunpack.c.l.b16 %v291
  %v940 = vunpack.c.l.b16 %v292
  %v941 = vpack.c.b16 %v938, %v937
  %v942 = vpack.c.b16 %v940, %v939
  %vm944 = vcmask 220160
  %v946 = vsel %vm944, %v805, 0
  %v949 = vsel %vm944, %v806, 0
  %v952 = vsel %vm944, %v807, 0
  %v955 = vsel %vm944, %v808, 0
  %v958 = vsel %vm944, %v809, 0
  %v961 = vsel %vm944, %v810, 0
  %v964 = vsel %vm944, %v811, 0
  %v967 = vsel %vm944, %v812, 0
  %v970 = vsel %vm944, %v813, 0
  %v973 = vsel %vm944, %v814, 0
  %v976 = vsel %vm944, %v815, 0
  %v979 = vsel %vm944, %v816, 0
  %v982 = vsel %vm944, %v817, 0
  %v985 = vsel %vm944, %v818, 0
  %v988 = vsel %vm944, %v819, 0
  %v991 = vsel %vm944, %v820, 0
  %v994 = vsel %vm944, %v821, 0
  %v997 = vsel %vm944, %v822, 0
  %v1000 = vsel %vm944, %v823, 0
  %v1003 = vsel %vm944, %v824, 0
  %v1006 = vsel %vm944, %v825, 0
  %v1009 = vsel %vm944, %v826, 0
  %v1012 = vsel %vm944, %v827, 0
  %v1015 = vsel %vm944, %v828, 0
  %v1018 = vsel %vm944, %v829, 0
  %v1021 = vsel %vm944, %v830, 0
  %v1024 = vsel %vm944, %v831, 0
  %v1027 = vsel %vm944, %v832, 0
  %v1030 = vsel %vm944, %v833, 0
  %v1033 = vsel %vm944, %v834, 0
  %v1036 = vsel %vm944, %v835, 0
  %v1039 = vsel %vm944, %v836, 0
  %v1042 = vsel %vm944, %v837, 0
  %v1045 = vsel %vm944, %v838, 0
  %v1048 = vsel %vm944, %v839, 0
  %v1051 = vsel %vm944, %v840, 0
  %v1054 = vsel %vm944, %v841, 0
  %v1057 = vsel %vm944, %v842, 0
  %v1060 = vsel %vm944, %v843, 0
  %v1063 = vsel %vm944, %v844, 0
  %v1066 = vsel %vm944, %v845, 0
  %v1069 = vsel %vm944, %v846, 0
  %v1072 = vsel %vm944, %v847, 0
  %v1075 = vsel %vm944, %v848, 0
  %v1078 = vsel %vm944, %v849, 0
  %v1081 = vsel %vm944, %v850, 0
  %v1084 = vsel %vm944, %v851, 0
  %v1087 = vsel %vm944, %v852, 0
  %v1090 = vsel %vm944, %v853, 0
  %v1093 = vsel %vm944, %v854, 0
  %v1096 = vsel %vm944, %v855, 0
  %v1099 = vsel %vm944, %v856, 0
  %v1102 = vsel %vm944, %v857, 0
  %v1105 = vsel %vm944, %v858, 0
  %v1108 = vsel %vm944, %v859, 0
  %v1111 = vsel %vm944, %v860, 0
  %v1114 = vsel %vm944, %v861, 0
  %v1117 = vsel %vm944, %v862, 0
  %v1120 = vsel %vm944, %v863, 0
  %v1123 = vsel %vm944, %v864, 0
  %v1126 = vsel %vm944, %v865, 0
  %v1129 = vsel %vm944, %v866, 0
  %v1132 = vsel %vm944, %v867, 0
  %v1135 = vsel %vm944, %v868, 0
  %v1138 = vsel %vm944, %v869, 0
  %v1141 = vsel %vm944, %v870, 0
  %v1144 = vsel %vm944, %v871, 0
  %v1147 = vsel %vm944, %v872, 0
  %v1150 = vsel %vm944, %v873, 0
  %v1153 = vsel %vm944, %v874, 0
  %v1156 = vsel %vm944, %v875, 0
  %v1159 = vsel %vm944, %v876, 0
  %v1162 = vsel %vm944, %v877, 0
  %v1165 = vsel %vm944, %v878, 0
  %v1168 = vsel %vm944, %v879, 0
  %v1171 = vsel %vm944, %v880, 0
  %v1174 = vsel %vm944, %v881, 0
  %v1177 = vsel %vm944, %v882, 0
  %v1180 = vsel %vm944, %v883, 0
  %v1183 = vsel %vm944, %v884, 0
  %v1186 = vsel %vm944, %v885, 0
  %v1189 = vsel %vm944, %v886, 0
  %v1192 = vsel %vm944, %v887, 0
  %v1195 = vsel %vm944, %v888, 0
  %v1198 = vsel %vm944, %v889, 0
  %v1201 = vsel %vm944, %v890, 0
  %v1204 = vsel %vm944, %v891, 0
  %v1207 = vsel %vm944, %v892, 0
  %v1210 = vsel %vm944, %v893, 0
  %v1213 = vsel %vm944, %v894, 0
  %v1216 = vsel %vm944, %v895, 0
  %v1219 = vsel %vm944, %v896, 0
  %v1222 = vsel %vm944, %v897, 0
  %v1225 = vsel %vm944, %v898, 0
  %v1228 = vsel %vm944, %v899, 0
  %v1231 = vsel %vm944, %v900, 0
  %v1234 = vsel %vm944, %v901, 0
  %v1237 = vsel %vm944, %v902, 0
  %v1240 = vsel %vm944, %v903, 0
  %v1243 = vsel %vm944, %v904, 0
  %v1246 = vsel %vm944, %v905, 0
  %v1249 = vsel %vm944, %v906, 0
  %v1252 = vsel %vm944, %v907, 0
  %v1255 = vsel %vm944, %v908, 0
  %v1258 = vsel %vm944, %v909, 0
  %v1261 = vsel %vm944, %v910, 0
  %v1264 = vsel %vm944, %v911, 0
  %v1267 = vsel %vm944, %v912, 0
  %v1270 = vsel %vm944, %v913, 0
  %v1273 = vsel %vm944, %v914, 0
  %v1276 = vsel %vm944, %v915, 0
  %v1279 = vsel %vm944, %v916, 0
  %v1282 = vsel %vm944, %v917, 0
  %v1285 = vsel %vm944, %v918, 0
  %v1288 = vsel %vm944, %v919, 0
  %v1291 = vsel %vm944, %v920, 0
  %v1294 = vsel %vm944, %v921, 0
  %v1297 = vsel %vm944, %v922, 0
  %v1300 = vsel %vm944, %v923, 0
  %v1303 = vsel %vm944, %v924, 0
  %v1306 = vsel %vm944, %v925, 0
  %v1309 = vsel %vm944, %v926, 0
  %v1312 = vsel %vm944, %v927, 0
  %v1315 = vsel %vm944, %v928, 0
  %v1318 = vsel %vm944, %v929, 0
  %v1321 = vsel %vm944, %v930, 0
  %v1324 = vsel %vm944, %v931, 0
  %v1327 = vsel %vm944, %v932, 0
  %vm1329 = vcmask 1044480
  %vm1330 = vcmask 1045504
  %v1331 = vsel %vm1329, 4294967295, 65535
  %v1332 = vsel %vm1330, %v1331, 0
  %v1334 = vand.u32 %v942, %v1332
  %1336 = vmatpush.bf16.msra.mxu0 0
  %1337 = vmatpush.bf16.msra.mxu0 0
  %1338 = vmatpush.bf16.msra.mxu0 0
  %1339 = vmatpush.bf16.msra.mxu0 0
  %1340 = vmatpush.bf16.msra.mxu0 0
  %1341 = vmatpush.bf16.msra.mxu0 0
  %1342 = vmatpush.bf16.msra.mxu0 %v1334
  %1343 = vmatpush.bf16.msra.mxu0 %v941
  %1344 = vmatmul.bf16.gmra.mxu0 %v946
  %v1345 = vpop.f32.mrf.mxu0
  %v1346 = vadd.f32 0.0, %v1345
  %v1347 = vpop.f32.mrf.mxu0
  %v1348 = vadd.f32 0.0, %v1347
  %1349 = vmatmul.bf16.gmra.mxu0 %v949
  %v1350 = vpop.f32.mrf.mxu0
  %v1351 = vadd.f32 0.0, %v1350
  %v1352 = vpop.f32.mrf.mxu0
  %v1353 = vadd.f32 0.0, %v1352
  %1354 = vmatmul.bf16.gmra.mxu0 %v952
  %v1355 = vpop.f32.mrf.mxu0
  %v1356 = vadd.f32 0.0, %v1355
  %v1357 = vpop.f32.mrf.mxu0
  %v1358 = vadd.f32 0.0, %v1357
  %1359 = vmatmul.bf16.gmra.mxu0 %v955
  %v1360 = vpop.f32.mrf.mxu0
  %v1361 = vadd.f32 0.0, %v1360
  %v1362 = vpop.f32.mrf.mxu0
  %v1363 = vadd.f32 0.0, %v1362
  %1364 = vmatmul.bf16.gmra.mxu0 %v958
  %v1365 = vpop.f32.mrf.mxu0
  %v1366 = vadd.f32 0.0, %v1365
  %v1367 = vpop.f32.mrf.mxu0
  %v1368 = vadd.f32 0.0, %v1367
  %1369 = vmatmul.bf16.gmra.mxu0 %v961
  %v1370 = vpop.f32.mrf.mxu0
  %v1371 = vadd.f32 0.0, %v1370
  %v1372 = vpop.f32.mrf.mxu0
  %v1373 = vadd.f32 0.0, %v1372
  %1374 = vmatmul.bf16.gmra.mxu0 %v964
  %v1375 = vpop.f32.mrf.mxu0
  %v1376 = vadd.f32 0.0, %v1375
  %v1377 = vpop.f32.mrf.mxu0
  %v1378 = vadd.f32 0.0, %v1377
  %1379 = vmatmul.bf16.gmra.mxu0 %v967
  %v1380 = vpop.f32.mrf.mxu0
  %v1381 = vadd.f32 0.0, %v1380
  %v1382 = vpop.f32.mrf.mxu0
  %v1383 = vadd.f32 0.0, %v1382
  %1384 = vmatmul.bf16.gmra.mxu0 %v970
  %v1385 = vpop.f32.mrf.mxu0
  %v1386 = vadd.f32 0.0, %v1385
  %v1387 = vpop.f32.mrf.mxu0
  %v1388 = vadd.f32 0.0, %v1387
  %1389 = vmatmul.bf16.gmra.mxu0 %v973
  %v1390 = vpop.f32.mrf.mxu0
  %v1391 = vadd.f32 0.0, %v1390
  %v1392 = vpop.f32.mrf.mxu0
  %v1393 = vadd.f32 0.0, %v1392
  %1394 = vmatmul.bf16.gmra.mxu0 %v976
  %v1395 = vpop.f32.mrf.mxu0
  %v1396 = vadd.f32 0.0, %v1395
  %v1397 = vpop.f32.mrf.mxu0
  %v1398 = vadd.f32 0.0, %v1397
  %1399 = vmatmul.bf16.gmra.mxu0 %v979
  %v1400 = vpop.f32.mrf.mxu0
  %v1401 = vadd.f32 0.0, %v1400
  %v1402 = vpop.f32.mrf.mxu0
  %v1403 = vadd.f32 0.0, %v1402
  %1404 = vmatmul.bf16.gmra.mxu0 %v982
  %v1405 = vpop.f32.mrf.mxu0
  %v1406 = vadd.f32 0.0, %v1405
  %v1407 = vpop.f32.mrf.mxu0
  %v1408 = vadd.f32 0.0, %v1407
  %1409 = vmatmul.bf16.gmra.mxu0 %v985
  %v1410 = vpop.f32.mrf.mxu0
  %v1411 = vadd.f32 0.0, %v1410
  %v1412 = vpop.f32.mrf.mxu0
  %v1413 = vadd.f32 0.0, %v1412
  %1414 = vmatmul.bf16.gmra.mxu0 %v988
  %v1415 = vpop.f32.mrf.mxu0
  %v1416 = vadd.f32 0.0, %v1415
  %v1417 = vpop.f32.mrf.mxu0
  %v1418 = vadd.f32 0.0, %v1417
  %1419 = vmatmul.bf16.gmra.mxu0 %v991
  %v1420 = vpop.f32.mrf.mxu0
  %v1421 = vadd.f32 0.0, %v1420
  %v1422 = vpop.f32.mrf.mxu0
  %v1423 = vadd.f32 0.0, %v1422
  %1424 = vmatmul.bf16.gmra.mxu0 %v994
  %v1425 = vpop.f32.mrf.mxu0
  %v1426 = vadd.f32 0.0, %v1425
  %v1427 = vpop.f32.mrf.mxu0
  %v1428 = vadd.f32 0.0, %v1427
  %1429 = vmatmul.bf16.gmra.mxu0 %v997
  %v1430 = vpop.f32.mrf.mxu0
  %v1431 = vadd.f32 0.0, %v1430
  %v1432 = vpop.f32.mrf.mxu0
  %v1433 = vadd.f32 0.0, %v1432
  %1434 = vmatmul.bf16.gmra.mxu0 %v1000
  %v1435 = vpop.f32.mrf.mxu0
  %v1436 = vadd.f32 0.0, %v1435
  %v1437 = vpop.f32.mrf.mxu0
  %v1438 = vadd.f32 0.0, %v1437
  %1439 = vmatmul.bf16.gmra.mxu0 %v1003
  %v1440 = vpop.f32.mrf.mxu0
  %v1441 = vadd.f32 0.0, %v1440
  %v1442 = vpop.f32.mrf.mxu0
  %v1443 = vadd.f32 0.0, %v1442
  %1444 = vmatmul.bf16.gmra.mxu0 %v1006
  %v1445 = vpop.f32.mrf.mxu0
  %v1446 = vadd.f32 0.0, %v1445
  %v1447 = vpop.f32.mrf.mxu0
  %v1448 = vadd.f32 0.0, %v1447
  %1449 = vmatmul.bf16.gmra.mxu0 %v1009
  %v1450 = vpop.f32.mrf.mxu0
  %v1451 = vadd.f32 0.0, %v1450
  %v1452 = vpop.f32.mrf.mxu0
  %v1453 = vadd.f32 0.0, %v1452
  %1454 = vmatmul.bf16.gmra.mxu0 %v1012
  %v1455 = vpop.f32.mrf.mxu0
  %v1456 = vadd.f32 0.0, %v1455
  %v1457 = vpop.f32.mrf.mxu0
  %v1458 = vadd.f32 0.0, %v1457
  %1459 = vmatmul.bf16.gmra.mxu0 %v1015
  %v1460 = vpop.f32.mrf.mxu0
  %v1461 = vadd.f32 0.0, %v1460
  %v1462 = vpop.f32.mrf.mxu0
  %v1463 = vadd.f32 0.0, %v1462
  %1464 = vmatmul.bf16.gmra.mxu0 %v1018
  %v1465 = vpop.f32.mrf.mxu0
  %v1466 = vadd.f32 0.0, %v1465
  %v1467 = vpop.f32.mrf.mxu0
  %v1468 = vadd.f32 0.0, %v1467
  %1469 = vmatmul.bf16.gmra.mxu0 %v1021
  %v1470 = vpop.f32.mrf.mxu0
  %v1471 = vadd.f32 0.0, %v1470
  %v1472 = vpop.f32.mrf.mxu0
  %v1473 = vadd.f32 0.0, %v1472
  %1474 = vmatmul.bf16.gmra.mxu0 %v1024
  %v1475 = vpop.f32.mrf.mxu0
  %v1476 = vadd.f32 0.0, %v1475
  %v1477 = vpop.f32.mrf.mxu0
  %v1478 = vadd.f32 0.0, %v1477
  %1479 = vmatmul.bf16.gmra.mxu0 %v1027
  %v1480 = vpop.f32.mrf.mxu0
  %v1481 = vadd.f32 0.0, %v1480
  %v1482 = vpop.f32.mrf.mxu0
  %v1483 = vadd.f32 0.0, %v1482
  %1484 = vmatmul.bf16.gmra.mxu0 %v1030
  %v1485 = vpop.f32.mrf.mxu0
  %v1486 = vadd.f32 0.0, %v1485
  %v1487 = vpop.f32.mrf.mxu0
  %v1488 = vadd.f32 0.0, %v1487
  %1489 = vmatmul.bf16.gmra.mxu0 %v1033
  %v1490 = vpop.f32.mrf.mxu0
  %v1491 = vadd.f32 0.0, %v1490
  %v1492 = vpop.f32.mrf.mxu0
  %v1493 = vadd.f32 0.0, %v1492
  %1494 = vmatmul.bf16.gmra.mxu0 %v1036
  %v1495 = vpop.f32.mrf.mxu0
  %v1496 = vadd.f32 0.0, %v1495
  %v1497 = vpop.f32.mrf.mxu0
  %v1498 = vadd.f32 0.0, %v1497
  %1499 = vmatmul.bf16.gmra.mxu0 %v1039
  %v1500 = vpop.f32.mrf.mxu0
  %v1501 = vadd.f32 0.0, %v1500
  %v1502 = vpop.f32.mrf.mxu0
  %v1503 = vadd.f32 0.0, %v1502
  %1504 = vmatmul.bf16.gmra.mxu0 %v1042
  %v1505 = vpop.f32.mrf.mxu0
  %v1506 = vadd.f32 0.0, %v1505
  %v1507 = vpop.f32.mrf.mxu0
  %v1508 = vadd.f32 0.0, %v1507
  %1509 = vmatmul.bf16.gmra.mxu0 %v1045
  %v1510 = vpop.f32.mrf.mxu0
  %v1511 = vadd.f32 0.0, %v1510
  %v1512 = vpop.f32.mrf.mxu0
  %v1513 = vadd.f32 0.0, %v1512
  %1514 = vmatmul.bf16.gmra.mxu0 %v1048
  %v1515 = vpop.f32.mrf.mxu0
  %v1516 = vadd.f32 0.0, %v1515
  %v1517 = vpop.f32.mrf.mxu0
  %v1518 = vadd.f32 0.0, %v1517
  %1519 = vmatmul.bf16.gmra.mxu0 %v1051
  %v1520 = vpop.f32.mrf.mxu0
  %v1521 = vadd.f32 0.0, %v1520
  %v1522 = vpop.f32.mrf.mxu0
  %v1523 = vadd.f32 0.0, %v1522
  %1524 = vmatmul.bf16.gmra.mxu0 %v1054
  %v1525 = vpop.f32.mrf.mxu0
  %v1526 = vadd.f32 0.0, %v1525
  %v1527 = vpop.f32.mrf.mxu0
  %v1528 = vadd.f32 0.0, %v1527
  %1529 = vmatmul.bf16.gmra.mxu0 %v1057
  %v1530 = vpop.f32.mrf.mxu0
  %v1531 = vadd.f32 0.0, %v1530
  %v1532 = vpop.f32.mrf.mxu0
  %v1533 = vadd.f32 0.0, %v1532
  %1534 = vmatmul.bf16.gmra.mxu0 %v1060
  %v1535 = vpop.f32.mrf.mxu0
  %v1536 = vadd.f32 0.0, %v1535
  %v1537 = vpop.f32.mrf.mxu0
  %v1538 = vadd.f32 0.0, %v1537
  %1539 = vmatmul.bf16.gmra.mxu0 %v1063
  %v1540 = vpop.f32.mrf.mxu0
  %v1541 = vadd.f32 0.0, %v1540
  %v1542 = vpop.f32.mrf.mxu0
  %v1543 = vadd.f32 0.0, %v1542
  %1544 = vmatmul.bf16.gmra.mxu0 %v1066
  %v1545 = vpop.f32.mrf.mxu0
  %v1546 = vadd.f32 0.0, %v1545
  %v1547 = vpop.f32.mrf.mxu0
  %v1548 = vadd.f32 0.0, %v1547
  %1549 = vmatmul.bf16.gmra.mxu0 %v1069
  %v1550 = vpop.f32.mrf.mxu0
  %v1551 = vadd.f32 0.0, %v1550
  %v1552 = vpop.f32.mrf.mxu0
  %v1553 = vadd.f32 0.0, %v1552
  %1554 = vmatmul.bf16.gmra.mxu0 %v1072
  %v1555 = vpop.f32.mrf.mxu0
  %v1556 = vadd.f32 0.0, %v1555
  %v1557 = vpop.f32.mrf.mxu0
  %v1558 = vadd.f32 0.0, %v1557
  %1559 = vmatmul.bf16.gmra.mxu0 %v1075
  %v1560 = vpop.f32.mrf.mxu0
  %v1561 = vadd.f32 0.0, %v1560
  %v1562 = vpop.f32.mrf.mxu0
  %v1563 = vadd.f32 0.0, %v1562
  %1564 = vmatmul.bf16.gmra.mxu0 %v1078
  %v1565 = vpop.f32.mrf.mxu0
  %v1566 = vadd.f32 0.0, %v1565
  %v1567 = vpop.f32.mrf.mxu0
  %v1568 = vadd.f32 0.0, %v1567
  %1569 = vmatmul.bf16.gmra.mxu0 %v1081
  %v1570 = vpop.f32.mrf.mxu0
  %v1571 = vadd.f32 0.0, %v1570
  %v1572 = vpop.f32.mrf.mxu0
  %v1573 = vadd.f32 0.0, %v1572
  %1574 = vmatmul.bf16.gmra.mxu0 %v1084
  %v1575 = vpop.f32.mrf.mxu0
  %v1576 = vadd.f32 0.0, %v1575
  %v1577 = vpop.f32.mrf.mxu0
  %v1578 = vadd.f32 0.0, %v1577
  %1579 = vmatmul.bf16.gmra.mxu0 %v1087
  %v1580 = vpop.f32.mrf.mxu0
  %v1581 = vadd.f32 0.0, %v1580
  %v1582 = vpop.f32.mrf.mxu0
  %v1583 = vadd.f32 0.0, %v1582
  %1584 = vmatmul.bf16.gmra.mxu0 %v1090
  %v1585 = vpop.f32.mrf.mxu0
  %v1586 = vadd.f32 0.0, %v1585
  %v1587 = vpop.f32.mrf.mxu0
  %v1588 = vadd.f32 0.0, %v1587
  %1589 = vmatmul.bf16.gmra.mxu0 %v1093
  %v1590 = vpop.f32.mrf.mxu0
  %v1591 = vadd.f32 0.0, %v1590
  %v1592 = vpop.f32.mrf.mxu0
  %v1593 = vadd.f32 0.0, %v1592
  %1594 = vmatmul.bf16.gmra.mxu0 %v1096
  %v1595 = vpop.f32.mrf.mxu0
  %v1596 = vadd.f32 0.0, %v1595
  %v1597 = vpop.f32.mrf.mxu0
  %v1598 = vadd.f32 0.0, %v1597
  %1599 = vmatmul.bf16.gmra.mxu0 %v1099
  %v1600 = vpop.f32.mrf.mxu0
  %v1601 = vadd.f32 0.0, %v1600
  %v1602 = vpop.f32.mrf.mxu0
  %v1603 = vadd.f32 0.0, %v1602
  %1604 = vmatmul.bf16.gmra.mxu0 %v1102
  %v1605 = vpop.f32.mrf.mxu0
  %v1606 = vadd.f32 0.0, %v1605
  %v1607 = vpop.f32.mrf.mxu0
  %v1608 = vadd.f32 0.0, %v1607
  %1609 = vmatmul.bf16.gmra.mxu0 %v1105
  %v1610 = vpop.f32.mrf.mxu0
  %v1611 = vadd.f32 0.0, %v1610
  %v1612 = vpop.f32.mrf.mxu0
  %v1613 = vadd.f32 0.0, %v1612
  %1614 = vmatmul.bf16.gmra.mxu0 %v1108
  %v1615 = vpop.f32.mrf.mxu0
  %v1616 = vadd.f32 0.0, %v1615
  %v1617 = vpop.f32.mrf.mxu0
  %v1618 = vadd.f32 0.0, %v1617
  %1619 = vmatmul.bf16.gmra.mxu0 %v1111
  %v1620 = vpop.f32.mrf.mxu0
  %v1621 = vadd.f32 0.0, %v1620
  %v1622 = vpop.f32.mrf.mxu0
  %v1623 = vadd.f32 0.0, %v1622
  %1624 = vmatmul.bf16.gmra.mxu0 %v1114
  %v1625 = vpop.f32.mrf.mxu0
  %v1626 = vadd.f32 0.0, %v1625
  %v1627 = vpop.f32.mrf.mxu0
  %v1628 = vadd.f32 0.0, %v1627
  %1629 = vmatmul.bf16.gmra.mxu0 %v1117
  %v1630 = vpop.f32.mrf.mxu0
  %v1631 = vadd.f32 0.0, %v1630
  %v1632 = vpop.f32.mrf.mxu0
  %v1633 = vadd.f32 0.0, %v1632
  %1634 = vmatmul.bf16.gmra.mxu0 %v1120
  %v1635 = vpop.f32.mrf.mxu0
  %v1636 = vadd.f32 0.0, %v1635
  %v1637 = vpop.f32.mrf.mxu0
  %v1638 = vadd.f32 0.0, %v1637
  %1639 = vmatmul.bf16.gmra.mxu0 %v1123
  %v1640 = vpop.f32.mrf.mxu0
  %v1641 = vadd.f32 0.0, %v1640
  %v1642 = vpop.f32.mrf.mxu0
  %v1643 = vadd.f32 0.0, %v1642
  %1644 = vmatmul.bf16.gmra.mxu0 %v1126
  %v1645 = vpop.f32.mrf.mxu0
  %v1646 = vadd.f32 0.0, %v1645
  %v1647 = vpop.f32.mrf.mxu0
  %v1648 = vadd.f32 0.0, %v1647
  %1649 = vmatmul.bf16.gmra.mxu0 %v1129
  %v1650 = vpop.f32.mrf.mxu0
  %v1651 = vadd.f32 0.0, %v1650
  %v1652 = vpop.f32.mrf.mxu0
  %v1653 = vadd.f32 0.0, %v1652
  %1654 = vmatmul.bf16.gmra.mxu0 %v1132
  %v1655 = vpop.f32.mrf.mxu0
  %v1656 = vadd.f32 0.0, %v1655
  %v1657 = vpop.f32.mrf.mxu0
  %v1658 = vadd.f32 0.0, %v1657
  %1659 = vmatmul.bf16.gmra.mxu0 %v1135
  %v1660 = vpop.f32.mrf.mxu0
  %v1661 = vadd.f32 0.0, %v1660
  %v1662 = vpop.f32.mrf.mxu0
  %v1663 = vadd.f32 0.0, %v1662
  %1664 = vmatmul.bf16.gmra.mxu0 %v1138
  %v1665 = vpop.f32.mrf.mxu0
  %v1666 = vadd.f32 0.0, %v1665
  %v1667 = vpop.f32.mrf.mxu0
  %v1668 = vadd.f32 0.0, %v1667
  %1669 = vmatmul.bf16.gmra.mxu0 %v1141
  %v1670 = vpop.f32.mrf.mxu0
  %v1671 = vadd.f32 0.0, %v1670
  %v1672 = vpop.f32.mrf.mxu0
  %v1673 = vadd.f32 0.0, %v1672
  %1674 = vmatmul.bf16.gmra.mxu0 %v1144
  %v1675 = vpop.f32.mrf.mxu0
  %v1676 = vadd.f32 0.0, %v1675
  %v1677 = vpop.f32.mrf.mxu0
  %v1678 = vadd.f32 0.0, %v1677
  %1679 = vmatmul.bf16.gmra.mxu0 %v1147
  %v1680 = vpop.f32.mrf.mxu0
  %v1681 = vadd.f32 0.0, %v1680
  %v1682 = vpop.f32.mrf.mxu0
  %v1683 = vadd.f32 0.0, %v1682
  %1684 = vmatmul.bf16.gmra.mxu0 %v1150
  %v1685 = vpop.f32.mrf.mxu0
  %v1686 = vadd.f32 0.0, %v1685
  %v1687 = vpop.f32.mrf.mxu0
  %v1688 = vadd.f32 0.0, %v1687
  %1689 = vmatmul.bf16.gmra.mxu0 %v1153
  %v1690 = vpop.f32.mrf.mxu0
  %v1691 = vadd.f32 0.0, %v1690
  %v1692 = vpop.f32.mrf.mxu0
  %v1693 = vadd.f32 0.0, %v1692
  %1694 = vmatmul.bf16.gmra.mxu0 %v1156
  %v1695 = vpop.f32.mrf.mxu0
  %v1696 = vadd.f32 0.0, %v1695
  %v1697 = vpop.f32.mrf.mxu0
  %v1698 = vadd.f32 0.0, %v1697
  %1699 = vmatmul.bf16.gmra.mxu0 %v1159
  %v1700 = vpop.f32.mrf.mxu0
  %v1701 = vadd.f32 0.0, %v1700
  %v1702 = vpop.f32.mrf.mxu0
  %v1703 = vadd.f32 0.0, %v1702
  %1704 = vmatmul.bf16.gmra.mxu0 %v1162
  %v1705 = vpop.f32.mrf.mxu0
  %v1706 = vadd.f32 0.0, %v1705
  %v1707 = vpop.f32.mrf.mxu0
  %v1708 = vadd.f32 0.0, %v1707
  %1709 = vmatmul.bf16.gmra.mxu0 %v1165
  %v1710 = vpop.f32.mrf.mxu0
  %v1711 = vadd.f32 0.0, %v1710
  %v1712 = vpop.f32.mrf.mxu0
  %v1713 = vadd.f32 0.0, %v1712
  %1714 = vmatmul.bf16.gmra.mxu0 %v1168
  %v1715 = vpop.f32.mrf.mxu0
  %v1716 = vadd.f32 0.0, %v1715
  %v1717 = vpop.f32.mrf.mxu0
  %v1718 = vadd.f32 0.0, %v1717
  %1719 = vmatmul.bf16.gmra.mxu0 %v1171
  %v1720 = vpop.f32.mrf.mxu0
  %v1721 = vadd.f32 0.0, %v1720
  %v1722 = vpop.f32.mrf.mxu0
  %v1723 = vadd.f32 0.0, %v1722
  %1724 = vmatmul.bf16.gmra.mxu0 %v1174
  %v1725 = vpop.f32.mrf.mxu0
  %v1726 = vadd.f32 0.0, %v1725
  %v1727 = vpop.f32.mrf.mxu0
  %v1728 = vadd.f32 0.0, %v1727
  %1729 = vmatmul.bf16.gmra.mxu0 %v1177
  %v1730 = vpop.f32.mrf.mxu0
  %v1731 = vadd.f32 0.0, %v1730
  %v1732 = vpop.f32.mrf.mxu0
  %v1733 = vadd.f32 0.0, %v1732
  %1734 = vmatmul.bf16.gmra.mxu0 %v1180
  %v1735 = vpop.f32.mrf.mxu0
  %v1736 = vadd.f32 0.0, %v1735
  %v1737 = vpop.f32.mrf.mxu0
  %v1738 = vadd.f32 0.0, %v1737
  %1739 = vmatmul.bf16.gmra.mxu0 %v1183
  %v1740 = vpop.f32.mrf.mxu0
  %v1741 = vadd.f32 0.0, %v1740
  %v1742 = vpop.f32.mrf.mxu0
  %v1743 = vadd.f32 0.0, %v1742
  %1744 = vmatmul.bf16.gmra.mxu0 %v1186
  %v1745 = vpop.f32.mrf.mxu0
  %v1746 = vadd.f32 0.0, %v1745
  %v1747 = vpop.f32.mrf.mxu0
  %v1748 = vadd.f32 0.0, %v1747
  %1749 = vmatmul.bf16.gmra.mxu0 %v1189
  %v1750 = vpop.f32.mrf.mxu0
  %v1751 = vadd.f32 0.0, %v1750
  %v1752 = vpop.f32.mrf.mxu0
  %v1753 = vadd.f32 0.0, %v1752
  %1754 = vmatmul.bf16.gmra.mxu0 %v1192
  %v1755 = vpop.f32.mrf.mxu0
  %v1756 = vadd.f32 0.0, %v1755
  %v1757 = vpop.f32.mrf.mxu0
  %v1758 = vadd.f32 0.0, %v1757
  %1759 = vmatmul.bf16.gmra.mxu0 %v1195
  %v1760 = vpop.f32.mrf.mxu0
  %v1761 = vadd.f32 0.0, %v1760
  %v1762 = vpop.f32.mrf.mxu0
  %v1763 = vadd.f32 0.0, %v1762
  %1764 = vmatmul.bf16.gmra.mxu0 %v1198
  %v1765 = vpop.f32.mrf.mxu0
  %v1766 = vadd.f32 0.0, %v1765
  %v1767 = vpop.f32.mrf.mxu0
  %v1768 = vadd.f32 0.0, %v1767
  %1769 = vmatmul.bf16.gmra.mxu0 %v1201
  %v1770 = vpop.f32.mrf.mxu0
  %v1771 = vadd.f32 0.0, %v1770
  %v1772 = vpop.f32.mrf.mxu0
  %v1773 = vadd.f32 0.0, %v1772
  %1774 = vmatmul.bf16.gmra.mxu0 %v1204
  %v1775 = vpop.f32.mrf.mxu0
  %v1776 = vadd.f32 0.0, %v1775
  %v1777 = vpop.f32.mrf.mxu0
  %v1778 = vadd.f32 0.0, %v1777
  %1779 = vmatmul.bf16.gmra.mxu0 %v1207
  %v1780 = vpop.f32.mrf.mxu0
  %v1781 = vadd.f32 0.0, %v1780
  %v1782 = vpop.f32.mrf.mxu0
  %v1783 = vadd.f32 0.0, %v1782
  %1784 = vmatmul.bf16.gmra.mxu0 %v1210
  %v1785 = vpop.f32.mrf.mxu0
  %v1786 = vadd.f32 0.0, %v1785
  %v1787 = vpop.f32.mrf.mxu0
  %v1788 = vadd.f32 0.0, %v1787
  %1789 = vmatmul.bf16.gmra.mxu0 %v1213
  %v1790 = vpop.f32.mrf.mxu0
  %v1791 = vadd.f32 0.0, %v1790
  %v1792 = vpop.f32.mrf.mxu0
  %v1793 = vadd.f32 0.0, %v1792
  %1794 = vmatmul.bf16.gmra.mxu0 %v1216
  %v1795 = vpop.f32.mrf.mxu0
  %v1796 = vadd.f32 0.0, %v1795
  %v1797 = vpop.f32.mrf.mxu0
  %v1798 = vadd.f32 0.0, %v1797
  %1799 = vmatmul.bf16.gmra.mxu0 %v1219
  %v1800 = vpop.f32.mrf.mxu0
  %v1801 = vadd.f32 0.0, %v1800
  %v1802 = vpop.f32.mrf.mxu0
  %v1803 = vadd.f32 0.0, %v1802
  %1804 = vmatmul.bf16.gmra.mxu0 %v1222
  %v1805 = vpop.f32.mrf.mxu0
  %v1806 = vadd.f32 0.0, %v1805
  %v1807 = vpop.f32.mrf.mxu0
  %v1808 = vadd.f32 0.0, %v1807
  %1809 = vmatmul.bf16.gmra.mxu0 %v1225
  %v1810 = vpop.f32.mrf.mxu0
  %v1811 = vadd.f32 0.0, %v1810
  %v1812 = vpop.f32.mrf.mxu0
  %v1813 = vadd.f32 0.0, %v1812
  %1814 = vmatmul.bf16.gmra.mxu0 %v1228
  %v1815 = vpop.f32.mrf.mxu0
  %v1816 = vadd.f32 0.0, %v1815
  %v1817 = vpop.f32.mrf.mxu0
  %v1818 = vadd.f32 0.0, %v1817
  %1819 = vmatmul.bf16.gmra.mxu0 %v1231
  %v1820 = vpop.f32.mrf.mxu0
  %v1821 = vadd.f32 0.0, %v1820
  %v1822 = vpop.f32.mrf.mxu0
  %v1823 = vadd.f32 0.0, %v1822
  %1824 = vmatmul.bf16.gmra.mxu0 %v1234
  %v1825 = vpop.f32.mrf.mxu0
  %v1826 = vadd.f32 0.0, %v1825
  %v1827 = vpop.f32.mrf.mxu0
  %v1828 = vadd.f32 0.0, %v1827
  %1829 = vmatmul.bf16.gmra.mxu0 %v1237
  %v1830 = vpop.f32.mrf.mxu0
  %v1831 = vadd.f32 0.0, %v1830
  %v1832 = vpop.f32.mrf.mxu0
  %v1833 = vadd.f32 0.0, %v1832
  %1834 = vmatmul.bf16.gmra.mxu0 %v1240
  %v1835 = vpop.f32.mrf.mxu0
  %v1836 = vadd.f32 0.0, %v1835
  %v1837 = vpop.f32.mrf.mxu0
  %v1838 = vadd.f32 0.0, %v1837
  %1839 = vmatmul.bf16.gmra.mxu0 %v1243
  %v1840 = vpop.f32.mrf.mxu0
  %v1841 = vadd.f32 0.0, %v1840
  %v1842 = vpop.f32.mrf.mxu0
  %v1843 = vadd.f32 0.0, %v1842
  %1844 = vmatmul.bf16.gmra.mxu0 %v1246
  %v1845 = vpop.f32.mrf.mxu0
  %v1846 = vadd.f32 0.0, %v1845
  %v1847 = vpop.f32.mrf.mxu0
  %v1848 = vadd.f32 0.0, %v1847
  %1849 = vmatmul.bf16.gmra.mxu0 %v1249
  %v1850 = vpop.f32.mrf.mxu0
  %v1851 = vadd.f32 0.0, %v1850
  %v1852 = vpop.f32.mrf.mxu0
  %v1853 = vadd.f32 0.0, %v1852
  %1854 = vmatmul.bf16.gmra.mxu0 %v1252
  %v1855 = vpop.f32.mrf.mxu0
  %v1856 = vadd.f32 0.0, %v1855
  %v1857 = vpop.f32.mrf.mxu0
  %v1858 = vadd.f32 0.0, %v1857
  %1859 = vmatmul.bf16.gmra.mxu0 %v1255
  %v1860 = vpop.f32.mrf.mxu0
  %v1861 = vadd.f32 0.0, %v1860
  %v1862 = vpop.f32.mrf.mxu0
  %v1863 = vadd.f32 0.0, %v1862
  %1864 = vmatmul.bf16.gmra.mxu0 %v1258
  %v1865 = vpop.f32.mrf.mxu0
  %v1866 = vadd.f32 0.0, %v1865
  %v1867 = vpop.f32.mrf.mxu0
  %v1868 = vadd.f32 0.0, %v1867
  %1869 = vmatmul.bf16.gmra.mxu0 %v1261
  %v1870 = vpop.f32.mrf.mxu0
  %v1871 = vadd.f32 0.0, %v1870
  %v1872 = vpop.f32.mrf.mxu0
  %v1873 = vadd.f32 0.0, %v1872
  %1874 = vmatmul.bf16.gmra.mxu0 %v1264
  %v1875 = vpop.f32.mrf.mxu0
  %v1876 = vadd.f32 0.0, %v1875
  %v1877 = vpop.f32.mrf.mxu0
  %v1878 = vadd.f32 0.0, %v1877
  %1879 = vmatmul.bf16.gmra.mxu0 %v1267
  %v1880 = vpop.f32.mrf.mxu0
  %v1881 = vadd.f32 0.0, %v1880
  %v1882 = vpop.f32.mrf.mxu0
  %v1883 = vadd.f32 0.0, %v1882
  %1884 = vmatmul.bf16.gmra.mxu0 %v1270
  %v1885 = vpop.f32.mrf.mxu0
  %v1886 = vadd.f32 0.0, %v1885
  %v1887 = vpop.f32.mrf.mxu0
  %v1888 = vadd.f32 0.0, %v1887
  %1889 = vmatmul.bf16.gmra.mxu0 %v1273
  %v1890 = vpop.f32.mrf.mxu0
  %v1891 = vadd.f32 0.0, %v1890
  %v1892 = vpop.f32.mrf.mxu0
  %v1893 = vadd.f32 0.0, %v1892
  %1894 = vmatmul.bf16.gmra.mxu0 %v1276
  %v1895 = vpop.f32.mrf.mxu0
  %v1896 = vadd.f32 0.0, %v1895
  %v1897 = vpop.f32.mrf.mxu0
  %v1898 = vadd.f32 0.0, %v1897
  %1899 = vmatmul.bf16.gmra.mxu0 %v1279
  %v1900 = vpop.f32.mrf.mxu0
  %v1901 = vadd.f32 0.0, %v1900
  %v1902 = vpop.f32.mrf.mxu0
  %v1903 = vadd.f32 0.0, %v1902
  %1904 = vmatmul.bf16.gmra.mxu0 %v1282
  %v1905 = vpop.f32.mrf.mxu0
  %v1906 = vadd.f32 0.0, %v1905
  %v1907 = vpop.f32.mrf.mxu0
  %v1908 = vadd.f32 0.0, %v1907
  %1909 = vmatmul.bf16.gmra.mxu0 %v1285
  %v1910 = vpop.f32.mrf.mxu0
  %v1911 = vadd.f32 0.0, %v1910
  %v1912 = vpop.f32.mrf.mxu0
  %v1913 = vadd.f32 0.0, %v1912
  %1914 = vmatmul.bf16.gmra.mxu0 %v1288
  %v1915 = vpop.f32.mrf.mxu0
  %v1916 = vadd.f32 0.0, %v1915
  %v1917 = vpop.f32.mrf.mxu0
  %v1918 = vadd.f32 0.0, %v1917
  %1919 = vmatmul.bf16.gmra.mxu0 %v1291
  %v1920 = vpop.f32.mrf.mxu0
  %v1921 = vadd.f32 0.0, %v1920
  %v1922 = vpop.f32.mrf.mxu0
  %v1923 = vadd.f32 0.0, %v1922
  %1924 = vmatmul.bf16.gmra.mxu0 %v1294
  %v1925 = vpop.f32.mrf.mxu0
  %v1926 = vadd.f32 0.0, %v1925
  %v1927 = vpop.f32.mrf.mxu0
  %v1928 = vadd.f32 0.0, %v1927
  %1929 = vmatmul.bf16.gmra.mxu0 %v1297
  %v1930 = vpop.f32.mrf.mxu0
  %v1931 = vadd.f32 0.0, %v1930
  %v1932 = vpop.f32.mrf.mxu0
  %v1933 = vadd.f32 0.0, %v1932
  %1934 = vmatmul.bf16.gmra.mxu0 %v1300
  %v1935 = vpop.f32.mrf.mxu0
  %v1936 = vadd.f32 0.0, %v1935
  %v1937 = vpop.f32.mrf.mxu0
  %v1938 = vadd.f32 0.0, %v1937
  %1939 = vmatmul.bf16.gmra.mxu0 %v1303
  %v1940 = vpop.f32.mrf.mxu0
  %v1941 = vadd.f32 0.0, %v1940
  %v1942 = vpop.f32.mrf.mxu0
  %v1943 = vadd.f32 0.0, %v1942
  %1944 = vmatmul.bf16.gmra.mxu0 %v1306
  %v1945 = vpop.f32.mrf.mxu0
  %v1946 = vadd.f32 0.0, %v1945
  %v1947 = vpop.f32.mrf.mxu0
  %v1948 = vadd.f32 0.0, %v1947
  %1949 = vmatmul.bf16.gmra.mxu0 %v1309
  %v1950 = vpop.f32.mrf.mxu0
  %v1951 = vadd.f32 0.0, %v1950
  %v1952 = vpop.f32.mrf.mxu0
  %v1953 = vadd.f32 0.0, %v1952
  %1954 = vmatmul.bf16.gmra.mxu0 %v1312
  %v1955 = vpop.f32.mrf.mxu0
  %v1956 = vadd.f32 0.0, %v1955
  %v1957 = vpop.f32.mrf.mxu0
  %v1958 = vadd.f32 0.0, %v1957
  %1959 = vmatmul.bf16.gmra.mxu0 %v1315
  %v1960 = vpop.f32.mrf.mxu0
  %v1961 = vadd.f32 0.0, %v1960
  %v1962 = vpop.f32.mrf.mxu0
  %v1963 = vadd.f32 0.0, %v1962
  %1964 = vmatmul.bf16.gmra.mxu0 %v1318
  %v1965 = vpop.f32.mrf.mxu0
  %v1966 = vadd.f32 0.0, %v1965
  %v1967 = vpop.f32.mrf.mxu0
  %v1968 = vadd.f32 0.0, %v1967
  %1969 = vmatmul.bf16.gmra.mxu0 %v1321
  %v1970 = vpop.f32.mrf.mxu0
  %v1971 = vadd.f32 0.0, %v1970
  %v1972 = vpop.f32.mrf.mxu0
  %v1973 = vadd.f32 0.0, %v1972
  %1974 = vmatmul.bf16.gmra.mxu0 %v1324
  %v1975 = vpop.f32.mrf.mxu0
  %v1976 = vadd.f32 0.0, %v1975
  %v1977 = vpop.f32.mrf.mxu0
  %v1978 = vadd.f32 0.0, %v1977
  %1979 = vmatmul.bf16.gmra.mxu0 %v1327
  %v1980 = vpop.f32.mrf.mxu0
  %v1981 = vadd.f32 0.0, %v1980
  %v1982 = vpop.f32.mrf.mxu0
  %v1983 = vadd.f32 0.0, %v1982
  %1984 = vdwg.mxu0
  %v1985 = vadd.f32 %v1346, %v1348
  %v1986 = vadd.f32 %v1985, %v1351
  %v1987 = vadd.f32 %v1986, %v1353
  %v1988 = vadd.f32 %v1987, %v1356
  %v1989 = vadd.f32 %v1988, %v1358
  %v1990 = vadd.f32 %v1989, %v1361
  %v1991 = vadd.f32 %v1990, %v1363
  %v1992 = vadd.f32 %v1991, %v1366
  %v1993 = vadd.f32 %v1992, %v1368
  %v1994 = vadd.f32 %v1993, %v1371
  %v1995 = vadd.f32 %v1994, %v1373
  %v1996 = vadd.f32 %v1995, %v1376
  %v1997 = vadd.f32 %v1996, %v1378
  %v1998 = vadd.f32 %v1997, %v1381
  %v1999 = vadd.f32 %v1998, %v1383
  %v2000 = vadd.f32 %v1999, %v1386
  %v2001 = vadd.f32 %v2000, %v1388
  %v2002 = vadd.f32 %v2001, %v1391
  %v2003 = vadd.f32 %v2002, %v1393
  %v2004 = vadd.f32 %v2003, %v1396
  %v2005 = vadd.f32 %v2004, %v1398
  %v2006 = vadd.f32 %v2005, %v1401
  %v2007 = vadd.f32 %v2006, %v1403
  %v2008 = vadd.f32 %v2007, %v1406
  %v2009 = vadd.f32 %v2008, %v1408
  %v2010 = vadd.f32 %v2009, %v1411
  %v2011 = vadd.f32 %v2010, %v1413
  %v2012 = vadd.f32 %v2011, %v1416
  %v2013 = vadd.f32 %v2012, %v1418
  %v2014 = vadd.f32 %v2013, %v1421
  %v2015 = vadd.f32 %v2014, %v1423
  %v2016 = vadd.f32 %v2015, %v1426
  %v2017 = vadd.f32 %v2016, %v1428
  %v2018 = vadd.f32 %v2017, %v1431
  %v2019 = vadd.f32 %v2018, %v1433
  %v2020 = vadd.f32 %v2019, %v1436
  %v2021 = vadd.f32 %v2020, %v1438
  %v2022 = vadd.f32 %v2021, %v1441
  %v2023 = vadd.f32 %v2022, %v1443
  %v2024 = vadd.f32 %v2023, %v1446
  %v2025 = vadd.f32 %v2024, %v1448
  %v2026 = vadd.f32 %v2025, %v1451
  %v2027 = vadd.f32 %v2026, %v1453
  %v2028 = vadd.f32 %v2027, %v1456
  %v2029 = vadd.f32 %v2028, %v1458
  %v2030 = vadd.f32 %v2029, %v1461
  %v2031 = vadd.f32 %v2030, %v1463
  %v2032 = vadd.f32 %v2031, %v1466
  %v2033 = vadd.f32 %v2032, %v1468
  %v2034 = vadd.f32 %v2033, %v1471
  %v2035 = vadd.f32 %v2034, %v1473
  %v2036 = vadd.f32 %v2035, %v1476
  %v2037 = vadd.f32 %v2036, %v1478
  %v2038 = vadd.f32 %v2037, %v1481
  %v2039 = vadd.f32 %v2038, %v1483
  %v2040 = vadd.f32 %v2039, %v1486
  %v2041 = vadd.f32 %v2040, %v1488
  %v2042 = vadd.f32 %v2041, %v1491
  %v2043 = vadd.f32 %v2042, %v1493
  %v2044 = vadd.f32 %v2043, %v1496
  %v2045 = vadd.f32 %v2044, %v1498
  %v2046 = vadd.f32 %v2045, %v1501
  %v2047 = vadd.f32 %v2046, %v1503
  %v2048 = vadd.f32 %v2047, %v1506
  %v2049 = vadd.f32 %v2048, %v1508
  %v2050 = vadd.f32 %v2049, %v1511
  %v2051 = vadd.f32 %v2050, %v1513
  %v2052 = vadd.f32 %v2051, %v1516
  %v2053 = vadd.f32 %v2052, %v1518
  %v2054 = vadd.f32 %v2053, %v1521
  %v2055 = vadd.f32 %v2054, %v1523
  %v2056 = vadd.f32 %v2055, %v1526
  %v2057 = vadd.f32 %v2056, %v1528
  %v2058 = vadd.f32 %v2057, %v1531
  %v2059 = vadd.f32 %v2058, %v1533
  %v2060 = vadd.f32 %v2059, %v1536
  %v2061 = vadd.f32 %v2060, %v1538
  %v2062 = vadd.f32 %v2061, %v1541
  %v2063 = vadd.f32 %v2062, %v1543
  %v2064 = vadd.f32 %v2063, %v1546
  %v2065 = vadd.f32 %v2064, %v1548
  %v2066 = vadd.f32 %v2065, %v1551
  %v2067 = vadd.f32 %v2066, %v1553
  %v2068 = vadd.f32 %v2067, %v1556
  %v2069 = vadd.f32 %v2068, %v1558
  %v2070 = vadd.f32 %v2069, %v1561
  %v2071 = vadd.f32 %v2070, %v1563
  %v2072 = vadd.f32 %v2071, %v1566
  %v2073 = vadd.f32 %v2072, %v1568
  %v2074 = vadd.f32 %v2073, %v1571
  %v2075 = vadd.f32 %v2074, %v1573
  %v2076 = vadd.f32 %v2075, %v1576
  %v2077 = vadd.f32 %v2076, %v1578
  %v2078 = vadd.f32 %v2077, %v1581
  %v2079 = vadd.f32 %v2078, %v1583
  %v2080 = vadd.f32 %v2079, %v1586
  %v2081 = vadd.f32 %v2080, %v1588
  %v2082 = vadd.f32 %v2081, %v1591
  %v2083 = vadd.f32 %v2082, %v1593
  %v2084 = vadd.f32 %v2083, %v1596
  %v2085 = vadd.f32 %v2084, %v1598
  %v2086 = vadd.f32 %v2085, %v1601
  %v2087 = vadd.f32 %v2086, %v1603
  %v2088 = vadd.f32 %v2087, %v1606
  %v2089 = vadd.f32 %v2088, %v1608
  %v2090 = vadd.f32 %v2089, %v1611
  %v2091 = vadd.f32 %v2090, %v1613
  %v2092 = vadd.f32 %v2091, %v1616
  %v2093 = vadd.f32 %v2092, %v1618
  %v2094 = vadd.f32 %v2093, %v1621
  %v2095 = vadd.f32 %v2094, %v1623
  %v2096 = vadd.f32 %v2095, %v1626
  %v2097 = vadd.f32 %v2096, %v1628
  %v2098 = vadd.f32 %v2097, %v1631
  %v2099 = vadd.f32 %v2098, %v1633
  %v2100 = vadd.f32 %v2099, %v1636
  %v2101 = vadd.f32 %v2100, %v1638
  %v2102 = vadd.f32 %v2101, %v1641
  %v2103 = vadd.f32 %v2102, %v1643
  %v2104 = vadd.f32 %v2103, %v1646
  %v2105 = vadd.f32 %v2104, %v1648
  %v2106 = vadd.f32 %v2105, %v1651
  %v2107 = vadd.f32 %v2106, %v1653
  %v2108 = vadd.f32 %v2107, %v1656
  %v2109 = vadd.f32 %v2108, %v1658
  %v2110 = vadd.f32 %v2109, %v1661
  %v2111 = vadd.f32 %v2110, %v1663
  %v2112 = vadd.f32 %v2111, %v1666
  %v2113 = vadd.f32 %v2112, %v1668
  %v2114 = vadd.f32 %v2113, %v1671
  %v2115 = vadd.f32 %v2114, %v1673
  %v2116 = vadd.f32 %v2115, %v1676
  %v2117 = vadd.f32 %v2116, %v1678
  %v2118 = vadd.f32 %v2117, %v1681
  %v2119 = vadd.f32 %v2118, %v1683
  %v2120 = vadd.f32 %v2119, %v1686
  %v2121 = vadd.f32 %v2120, %v1688
  %v2122 = vadd.f32 %v2121, %v1691
  %v2123 = vadd.f32 %v2122, %v1693
  %v2124 = vadd.f32 %v2123, %v1696
  %v2125 = vadd.f32 %v2124, %v1698
  %v2126 = vadd.f32 %v2125, %v1701
  %v2127 = vadd.f32 %v2126, %v1703
  %v2128 = vadd.f32 %v2127, %v1706
  %v2129 = vadd.f32 %v2128, %v1708
  %v2130 = vadd.f32 %v2129, %v1711
  %v2131 = vadd.f32 %v2130, %v1713
  %v2132 = vadd.f32 %v2131, %v1716
  %v2133 = vadd.f32 %v2132, %v1718
  %v2134 = vadd.f32 %v2133, %v1721
  %v2135 = vadd.f32 %v2134, %v1723
  %v2136 = vadd.f32 %v2135, %v1726
  %v2137 = vadd.f32 %v2136, %v1728
  %v2138 = vadd.f32 %v2137, %v1731
  %v2139 = vadd.f32 %v2138, %v1733
  %v2140 = vadd.f32 %v2139, %v1736
  %v2141 = vadd.f32 %v2140, %v1738
  %v2142 = vadd.f32 %v2141, %v1741
  %v2143 = vadd.f32 %v2142, %v1743
  %v2144 = vadd.f32 %v2143, %v1746
  %v2145 = vadd.f32 %v2144, %v1748
  %v2146 = vadd.f32 %v2145, %v1751
  %v2147 = vadd.f32 %v2146, %v1753
  %v2148 = vadd.f32 %v2147, %v1756
  %v2149 = vadd.f32 %v2148, %v1758
  %v2150 = vadd.f32 %v2149, %v1761
  %v2151 = vadd.f32 %v2150, %v1763
  %v2152 = vadd.f32 %v2151, %v1766
  %v2153 = vadd.f32 %v2152, %v1768
  %v2154 = vadd.f32 %v2153, %v1771
  %v2155 = vadd.f32 %v2154, %v1773
  %v2156 = vadd.f32 %v2155, %v1776
  %v2157 = vadd.f32 %v2156, %v1778
  %v2158 = vadd.f32 %v2157, %v1781
  %v2159 = vadd.f32 %v2158, %v1783
  %v2160 = vadd.f32 %v2159, %v1786
  %v2161 = vadd.f32 %v2160, %v1788
  %v2162 = vadd.f32 %v2161, %v1791
  %v2163 = vadd.f32 %v2162, %v1793
  %v2164 = vadd.f32 %v2163, %v1796
  %v2165 = vadd.f32 %v2164, %v1798
  %v2166 = vadd.f32 %v2165, %v1801
  %v2167 = vadd.f32 %v2166, %v1803
  %v2168 = vadd.f32 %v2167, %v1806
  %v2169 = vadd.f32 %v2168, %v1808
  %v2170 = vadd.f32 %v2169, %v1811
  %v2171 = vadd.f32 %v2170, %v1813
  %v2172 = vadd.f32 %v2171, %v1816
  %v2173 = vadd.f32 %v2172, %v1818
  %v2174 = vadd.f32 %v2173, %v1821
  %v2175 = vadd.f32 %v2174, %v1823
  %v2176 = vadd.f32 %v2175, %v1826
  %v2177 = vadd.f32 %v2176, %v1828
  %v2178 = vadd.f32 %v2177, %v1831
  %v2179 = vadd.f32 %v2178, %v1833
  %v2180 = vadd.f32 %v2179, %v1836
  %v2181 = vadd.f32 %v2180, %v1838
  %v2182 = vadd.f32 %v2181, %v1841
  %v2183 = vadd.f32 %v2182, %v1843
  %v2184 = vadd.f32 %v2183, %v1846
  %v2185 = vadd.f32 %v2184, %v1848
  %v2186 = vadd.f32 %v2185, %v1851
  %v2187 = vadd.f32 %v2186, %v1853
  %v2188 = vadd.f32 %v2187, %v1856
  %v2189 = vadd.f32 %v2188, %v1858
  %v2190 = vadd.f32 %v2189, %v1861
  %v2191 = vadd.f32 %v2190, %v1863
  %v2192 = vadd.f32 %v2191, %v1866
  %v2193 = vadd.f32 %v2192, %v1868
  %v2194 = vadd.f32 %v2193, %v1871
  %v2195 = vadd.f32 %v2194, %v1873
  %v2196 = vadd.f32 %v2195, %v1876
  %v2197 = vadd.f32 %v2196, %v1878
  %v2198 = vadd.f32 %v2197, %v1881
  %v2199 = vadd.f32 %v2198, %v1883
  %v2200 = vadd.f32 %v2199, %v1886
  %v2201 = vadd.f32 %v2200, %v1888
  %v2202 = vadd.f32 %v2201, %v1891
  %v2203 = vadd.f32 %v2202, %v1893
  %v2204 = vadd.f32 %v2203, %v1896
  %v2205 = vadd.f32 %v2204, %v1898
  %v2206 = vadd.f32 %v2205, %v1901
  %v2207 = vadd.f32 %v2206, %v1903
  %v2208 = vadd.f32 %v2207, %v1906
  %v2209 = vadd.f32 %v2208, %v1908
  %v2210 = vadd.f32 %v2209, %v1911
  %v2211 = vadd.f32 %v2210, %v1913
  %v2212 = vadd.f32 %v2211, %v1916
  %v2213 = vadd.f32 %v2212, %v1918
  %v2214 = vadd.f32 %v2213, %v1921
  %v2215 = vadd.f32 %v2214, %v1923
  %v2216 = vadd.f32 %v2215, %v1926
  %v2217 = vadd.f32 %v2216, %v1928
  %v2218 = vadd.f32 %v2217, %v1931
  %v2219 = vadd.f32 %v2218, %v1933
  %v2220 = vadd.f32 %v2219, %v1936
  %v2221 = vadd.f32 %v2220, %v1938
  %v2222 = vadd.f32 %v2221, %v1941
  %v2223 = vadd.f32 %v2222, %v1943
  %v2224 = vadd.f32 %v2223, %v1946
  %v2225 = vadd.f32 %v2224, %v1948
  %v2226 = vadd.f32 %v2225, %v1951
  %v2227 = vadd.f32 %v2226, %v1953
  %v2228 = vadd.f32 %v2227, %v1956
  %v2229 = vadd.f32 %v2228, %v1958
  %v2230 = vadd.f32 %v2229, %v1961
  %v2231 = vadd.f32 %v2230, %v1963
  %v2232 = vadd.f32 %v2231, %v1966
  %v2233 = vadd.f32 %v2232, %v1968
  %v2234 = vadd.f32 %v2233, %v1971
  %v2235 = vadd.f32 %v2234, %v1973
  %v2236 = vadd.f32 %v2235, %v1976
  %v2237 = vadd.f32 %v2236, %v1978
  %v2238 = vadd.f32 %v2237, %v1981
  %v2239 = vadd.f32 %v2238, %v1983
  %v2240 = vrot.slane %v2239, 4
  %v2241 = vadd.f32 %v2239, %v2240
  %v2242 = vrot.slane %v2241, 2
  %v2243 = vadd.f32 %v2241, %v2242
  %v2244 = vrot.slane %v2243, 1
  %v2245 = vadd.f32 %v2243, %v2244
  %v2246 = vrcp.pop 2048.0
  %v2247 = vmul.f32 2048.0, %v2246
  %v2248 = vsub.f32 1.0, %v2247
  %v2249 = vmul.f32 %v2246, %v2248
  %v2250 = vadd.f32 %v2246, %v2249
  %vm2251 = vweird.f32 %v2246
  %v2252 = vsel %vm2251, %v2246, %v2250
  %v2253 = vmul.f32 %v2245, %v2252
  %v2254 = vsub.f32 %v1346, %v2253
  %v2255 = vsub.f32 %v1348, %v2253
  %v2256 = vsub.f32 %v1351, %v2253
  %v2257 = vsub.f32 %v1353, %v2253
  %v2258 = vsub.f32 %v1356, %v2253
  %v2259 = vsub.f32 %v1358, %v2253
  %v2260 = vsub.f32 %v1361, %v2253
  %v2261 = vsub.f32 %v1363, %v2253
  %v2262 = vsub.f32 %v1366, %v2253
  %v2263 = vsub.f32 %v1368, %v2253
  %v2264 = vsub.f32 %v1371, %v2253
  %v2265 = vsub.f32 %v1373, %v2253
  %v2266 = vsub.f32 %v1376, %v2253
  %v2267 = vsub.f32 %v1378, %v2253
  %v2268 = vsub.f32 %v1381, %v2253
  %v2269 = vsub.f32 %v1383, %v2253
  %v2270 = vsub.f32 %v1386, %v2253
  %v2271 = vsub.f32 %v1388, %v2253
  %v2272 = vsub.f32 %v1391, %v2253
  %v2273 = vsub.f32 %v1393, %v2253
  %v2274 = vsub.f32 %v1396, %v2253
  %v2275 = vsub.f32 %v1398, %v2253
  %v2276 = vsub.f32 %v1401, %v2253
  %v2277 = vsub.f32 %v1403, %v2253
  %v2278 = vsub.f32 %v1406, %v2253
  %v2279 = vsub.f32 %v1408, %v2253
  %v2280 = vsub.f32 %v1411, %v2253
  %v2281 = vsub.f32 %v1413, %v2253
  %v2282 = vsub.f32 %v1416, %v2253
  %v2283 = vsub.f32 %v1418, %v2253
  %v2284 = vsub.f32 %v1421, %v2253
  %v2285 = vsub.f32 %v1423, %v2253
  %v2286 = vsub.f32 %v1426, %v2253
  %v2287 = vsub.f32 %v1428, %v2253
  %v2288 = vsub.f32 %v1431, %v2253
  %v2289 = vsub.f32 %v1433, %v2253
  %v2290 = vsub.f32 %v1436, %v2253
  %v2291 = vsub.f32 %v1438, %v2253
  %v2292 = vsub.f32 %v1441, %v2253
  %v2293 = vsub.f32 %v1443, %v2253
  %v2294 = vsub.f32 %v1446, %v2253
  %v2295 = vsub.f32 %v1448, %v2253
  %v2296 = vsub.f32 %v1451, %v2253
  %v2297 = vsub.f32 %v1453, %v2253
  %v2298 = vsub.f32 %v1456, %v2253
  %v2299 = vsub.f32 %v1458, %v2253
  %v2300 = vsub.f32 %v1461, %v2253
  %v2301 = vsub.f32 %v1463, %v2253
  %v2302 = vsub.f32 %v1466, %v2253
  %v2303 = vsub.f32 %v1468, %v2253
  %v2304 = vsub.f32 %v1471, %v2253
  %v2305 = vsub.f32 %v1473, %v2253
  %v2306 = vsub.f32 %v1476, %v2253
  %v2307 = vsub.f32 %v1478, %v2253
  %v2308 = vsub.f32 %v1481, %v2253
  %v2309 = vsub.f32 %v1483, %v2253
  %v2310 = vsub.f32 %v1486, %v2253
  %v2311 = vsub.f32 %v1488, %v2253
  %v2312 = vsub.f32 %v1491, %v2253
  %v2313 = vsub.f32 %v1493, %v2253
  %v2314 = vsub.f32 %v1496, %v2253
  %v2315 = vsub.f32 %v1498, %v2253
  %v2316 = vsub.f32 %v1501, %v2253
  %v2317 = vsub.f32 %v1503, %v2253
  %v2318 = vsub.f32 %v1506, %v2253
  %v2319 = vsub.f32 %v1508, %v2253
  %v2320 = vsub.f32 %v1511, %v2253
  %v2321 = vsub.f32 %v1513, %v2253
  %v2322 = vsub.f32 %v1516, %v2253
  %v2323 = vsub.f32 %v1518, %v2253
  %v2324 = vsub.f32 %v1521, %v2253
  %v2325 = vsub.f32 %v1523, %v2253
  %v2326 = vsub.f32 %v1526, %v2253
  %v2327 = vsub.f32 %v1528, %v2253
  %v2328 = vsub.f32 %v1531, %v2253
  %v2329 = vsub.f32 %v1533, %v2253
  %v2330 = vsub.f32 %v1536, %v2253
  %v2331 = vsub.f32 %v1538, %v2253
  %v2332 = vsub.f32 %v1541, %v2253
  %v2333 = vsub.f32 %v1543, %v2253
  %v2334 = vsub.f32 %v1546, %v2253
  %v2335 = vsub.f32 %v1548, %v2253
  %v2336 = vsub.f32 %v1551, %v2253
  %v2337 = vsub.f32 %v1553, %v2253
  %v2338 = vsub.f32 %v1556, %v2253
  %v2339 = vsub.f32 %v1558, %v2253
  %v2340 = vsub.f32 %v1561, %v2253
  %v2341 = vsub.f32 %v1563, %v2253
  %v2342 = vsub.f32 %v1566, %v2253
  %v2343 = vsub.f32 %v1568, %v2253
  %v2344 = vsub.f32 %v1571, %v2253
  %v2345 = vsub.f32 %v1573, %v2253
  %v2346 = vsub.f32 %v1576, %v2253
  %v2347 = vsub.f32 %v1578, %v2253
  %v2348 = vsub.f32 %v1581, %v2253
  %v2349 = vsub.f32 %v1583, %v2253
  %v2350 = vsub.f32 %v1586, %v2253
  %v2351 = vsub.f32 %v1588, %v2253
  %v2352 = vsub.f32 %v1591, %v2253
  %v2353 = vsub.f32 %v1593, %v2253
  %v2354 = vsub.f32 %v1596, %v2253
  %v2355 = vsub.f32 %v1598, %v2253
  %v2356 = vsub.f32 %v1601, %v2253
  %v2357 = vsub.f32 %v1603, %v2253
  %v2358 = vsub.f32 %v1606, %v2253
  %v2359 = vsub.f32 %v1608, %v2253
  %v2360 = vsub.f32 %v1611, %v2253
  %v2361 = vsub.f32 %v1613, %v2253
  %v2362 = vsub.f32 %v1616, %v2253
  %v2363 = vsub.f32 %v1618, %v2253
  %v2364 = vsub.f32 %v1621, %v2253
  %v2365 = vsub.f32 %v1623, %v2253
  %v2366 = vsub.f32 %v1626, %v2253
  %v2367 = vsub.f32 %v1628, %v2253
  %v2368 = vsub.f32 %v1631, %v2253
  %v2369 = vsub.f32 %v1633, %v2253
  %v2370 = vsub.f32 %v1636, %v2253
  %v2371 = vsub.f32 %v1638, %v2253
  %v2372 = vsub.f32 %v1641, %v2253
  %v2373 = vsub.f32 %v1643, %v2253
  %v2374 = vsub.f32 %v1646, %v2253
  %v2375 = vsub.f32 %v1648, %v2253
  %v2376 = vsub.f32 %v1651, %v2253
  %v2377 = vsub.f32 %v1653, %v2253
  %v2378 = vsub.f32 %v1656, %v2253
  %v2379 = vsub.f32 %v1658, %v2253
  %v2380 = vsub.f32 %v1661, %v2253
  %v2381 = vsub.f32 %v1663, %v2253
  %v2382 = vsub.f32 %v1666, %v2253
  %v2383 = vsub.f32 %v1668, %v2253
  %v2384 = vsub.f32 %v1671, %v2253
  %v2385 = vsub.f32 %v1673, %v2253
  %v2386 = vsub.f32 %v1676, %v2253
  %v2387 = vsub.f32 %v1678, %v2253
  %v2388 = vsub.f32 %v1681, %v2253
  %v2389 = vsub.f32 %v1683, %v2253
  %v2390 = vsub.f32 %v1686, %v2253
  %v2391 = vsub.f32 %v1688, %v2253
  %v2392 = vsub.f32 %v1691, %v2253
  %v2393 = vsub.f32 %v1693, %v2253
  %v2394 = vsub.f32 %v1696, %v2253
  %v2395 = vsub.f32 %v1698, %v2253
  %v2396 = vsub.f32 %v1701, %v2253
  %v2397 = vsub.f32 %v1703, %v2253
  %v2398 = vsub.f32 %v1706, %v2253
  %v2399 = vsub.f32 %v1708, %v2253
  %v2400 = vsub.f32 %v1711, %v2253
  %v2401 = vsub.f32 %v1713, %v2253
  %v2402 = vsub.f32 %v1716, %v2253
  %v2403 = vsub.f32 %v1718, %v2253
  %v2404 = vsub.f32 %v1721, %v2253
  %v2405 = vsub.f32 %v1723, %v2253
  %v2406 = vsub.f32 %v1726, %v2253
  %v2407 = vsub.f32 %v1728, %v2253
  %v2408 = vsub.f32 %v1731, %v2253
  %v2409 = vsub.f32 %v1733, %v2253
  %v2410 = vsub.f32 %v1736, %v2253
  %v2411 = vsub.f32 %v1738, %v2253
  %v2412 = vsub.f32 %v1741, %v2253
  %v2413 = vsub.f32 %v1743, %v2253
  %v2414 = vsub.f32 %v1746, %v2253
  %v2415 = vsub.f32 %v1748, %v2253
  %v2416 = vsub.f32 %v1751, %v2253
  %v2417 = vsub.f32 %v1753, %v2253
  %v2418 = vsub.f32 %v1756, %v2253
  %v2419 = vsub.f32 %v1758, %v2253
  %v2420 = vsub.f32 %v1761, %v2253
  %v2421 = vsub.f32 %v1763, %v2253
  %v2422 = vsub.f32 %v1766, %v2253
  %v2423 = vsub.f32 %v1768, %v2253
  %v2424 = vsub.f32 %v1771, %v2253
  %v2425 = vsub.f32 %v1773, %v2253
  %v2426 = vsub.f32 %v1776, %v2253
  %v2427 = vsub.f32 %v1778, %v2253
  %v2428 = vsub.f32 %v1781, %v2253
  %v2429 = vsub.f32 %v1783, %v2253
  %v2430 = vsub.f32 %v1786, %v2253
  %v2431 = vsub.f32 %v1788, %v2253
  %v2432 = vsub.f32 %v1791, %v2253
  %v2433 = vsub.f32 %v1793, %v2253
  %v2434 = vsub.f32 %v1796, %v2253
  %v2435 = vsub.f32 %v1798, %v2253
  %v2436 = vsub.f32 %v1801, %v2253
  %v2437 = vsub.f32 %v1803, %v2253
  %v2438 = vsub.f32 %v1806, %v2253
  %v2439 = vsub.f32 %v1808, %v2253
  %v2440 = vsub.f32 %v1811, %v2253
  %v2441 = vsub.f32 %v1813, %v2253
  %v2442 = vsub.f32 %v1816, %v2253
  %v2443 = vsub.f32 %v1818, %v2253
  %v2444 = vsub.f32 %v1821, %v2253
  %v2445 = vsub.f32 %v1823, %v2253
  %v2446 = vsub.f32 %v1826, %v2253
  %v2447 = vsub.f32 %v1828, %v2253
  %v2448 = vsub.f32 %v1831, %v2253
  %v2449 = vsub.f32 %v1833, %v2253
  %v2450 = vsub.f32 %v1836, %v2253
  %v2451 = vsub.f32 %v1838, %v2253
  %v2452 = vsub.f32 %v1841, %v2253
  %v2453 = vsub.f32 %v1843, %v2253
  %v2454 = vsub.f32 %v1846, %v2253
  %v2455 = vsub.f32 %v1848, %v2253
  %v2456 = vsub.f32 %v1851, %v2253
  %v2457 = vsub.f32 %v1853, %v2253
  %v2458 = vsub.f32 %v1856, %v2253
  %v2459 = vsub.f32 %v1858, %v2253
  %v2460 = vsub.f32 %v1861, %v2253
  %v2461 = vsub.f32 %v1863, %v2253
  %v2462 = vsub.f32 %v1866, %v2253
  %v2463 = vsub.f32 %v1868, %v2253
  %v2464 = vsub.f32 %v1871, %v2253
  %v2465 = vsub.f32 %v1873, %v2253
  %v2466 = vsub.f32 %v1876, %v2253
  %v2467 = vsub.f32 %v1878, %v2253
  %v2468 = vsub.f32 %v1881, %v2253
  %v2469 = vsub.f32 %v1883, %v2253
  %v2470 = vsub.f32 %v1886, %v2253
  %v2471 = vsub.f32 %v1888, %v2253
  %v2472 = vsub.f32 %v1891, %v2253
  %v2473 = vsub.f32 %v1893, %v2253
  %v2474 = vsub.f32 %v1896, %v2253
  %v2475 = vsub.f32 %v1898, %v2253
  %v2476 = vsub.f32 %v1901, %v2253
  %v2477 = vsub.f32 %v1903, %v2253
  %v2478 = vsub.f32 %v1906, %v2253
  %v2479 = vsub.f32 %v1908, %v2253
  %v2480 = vsub.f32 %v1911, %v2253
  %v2481 = vsub.f32 %v1913, %v2253
  %v2482 = vsub.f32 %v1916, %v2253
  %v2483 = vsub.f32 %v1918, %v2253
  %v2484 = vsub.f32 %v1921, %v2253
  %v2485 = vsub.f32 %v1923, %v2253
  %v2486 = vsub.f32 %v1926, %v2253
  %v2487 = vsub.f32 %v1928, %v2253
  %v2488 = vsub.f32 %v1931, %v2253
  %v2489 = vsub.f32 %v1933, %v2253
  %v2490 = vsub.f32 %v1936, %v2253
  %v2491 = vsub.f32 %v1938, %v2253
  %v2492 = vsub.f32 %v1941, %v2253
  %v2493 = vsub.f32 %v1943, %v2253
  %v2494 = vsub.f32 %v1946, %v2253
  %v2495 = vsub.f32 %v1948, %v2253
  %v2496 = vsub.f32 %v1951, %v2253
  %v2497 = vsub.f32 %v1953, %v2253
  %v2498 = vsub.f32 %v1956, %v2253
  %v2499 = vsub.f32 %v1958, %v2253
  %v2500 = vsub.f32 %v1961, %v2253
  %v2501 = vsub.f32 %v1963, %v2253
  %v2502 = vsub.f32 %v1966, %v2253
  %v2503 = vsub.f32 %v1968, %v2253
  %v2504 = vsub.f32 %v1971, %v2253
  %v2505 = vsub.f32 %v1973, %v2253
  %v2506 = vsub.f32 %v1976, %v2253
  %v2507 = vsub.f32 %v1978, %v2253
  %v2508 = vsub.f32 %v1981, %v2253
  %v2509 = vsub.f32 %v1983, %v2253
  %v2510 = vmul.f32 %v2254, %v2254
  %v2511 = vmul.f32 %v2255, %v2255
  %v2512 = vmul.f32 %v2256, %v2256
  %v2513 = vmul.f32 %v2257, %v2257
  %v2514 = vmul.f32 %v2258, %v2258
  %v2515 = vmul.f32 %v2259, %v2259
  %v2516 = vmul.f32 %v2260, %v2260
  %v2517 = vmul.f32 %v2261, %v2261
  %v2518 = vmul.f32 %v2262, %v2262
  %v2519 = vmul.f32 %v2263, %v2263
  %v2520 = vmul.f32 %v2264, %v2264
  %v2521 = vmul.f32 %v2265, %v2265
  %v2522 = vmul.f32 %v2266, %v2266
  %v2523 = vmul.f32 %v2267, %v2267
  %v2524 = vmul.f32 %v2268, %v2268
  %v2525 = vmul.f32 %v2269, %v2269
  %v2526 = vmul.f32 %v2270, %v2270
  %v2527 = vmul.f32 %v2271, %v2271
  %v2528 = vmul.f32 %v2272, %v2272
  %v2529 = vmul.f32 %v2273, %v2273
  %v2530 = vmul.f32 %v2274, %v2274
  %v2531 = vmul.f32 %v2275, %v2275
  %v2532 = vmul.f32 %v2276, %v2276
  %v2533 = vmul.f32 %v2277, %v2277
  %v2534 = vmul.f32 %v2278, %v2278
  %v2535 = vmul.f32 %v2279, %v2279
  %v2536 = vmul.f32 %v2280, %v2280
  %v2537 = vmul.f32 %v2281, %v2281
  %v2538 = vmul.f32 %v2282, %v2282
  %v2539 = vmul.f32 %v2283, %v2283
  %v2540 = vmul.f32 %v2284, %v2284
  %v2541 = vmul.f32 %v2285, %v2285
  %v2542 = vmul.f32 %v2286, %v2286
  %v2543 = vmul.f32 %v2287, %v2287
  %v2544 = vmul.f32 %v2288, %v2288
  %v2545 = vmul.f32 %v2289, %v2289
  %v2546 = vmul.f32 %v2290, %v2290
  %v2547 = vmul.f32 %v2291, %v2291
  %v2548 = vmul.f32 %v2292, %v2292
  %v2549 = vmul.f32 %v2293, %v2293
  %v2550 = vmul.f32 %v2294, %v2294
  %v2551 = vmul.f32 %v2295, %v2295
  %v2552 = vmul.f32 %v2296, %v2296
  %v2553 = vmul.f32 %v2297, %v2297
  %v2554 = vmul.f32 %v2298, %v2298
  %v2555 = vmul.f32 %v2299, %v2299
  %v2556 = vmul.f32 %v2300, %v2300
  %v2557 = vmul.f32 %v2301, %v2301
  %v2558 = vmul.f32 %v2302, %v2302
  %v2559 = vmul.f32 %v2303, %v2303
  %v2560 = vmul.f32 %v2304, %v2304
  %v2561 = vmul.f32 %v2305, %v2305
  %v2562 = vmul.f32 %v2306, %v2306
  %v2563 = vmul.f32 %v2307, %v2307
  %v2564 = vmul.f32 %v2308, %v2308
  %v2565 = vmul.f32 %v2309, %v2309
  %v2566 = vmul.f32 %v2310, %v2310
  %v2567 = vmul.f32 %v2311, %v2311
  %v2568 = vmul.f32 %v2312, %v2312
  %v2569 = vmul.f32 %v2313, %v2313
  %v2570 = vmul.f32 %v2314, %v2314
  %v2571 = vmul.f32 %v2315, %v2315
  %v2572 = vmul.f32 %v2316, %v2316
  %v2573 = vmul.f32 %v2317, %v2317
  %v2574 = vmul.f32 %v2318, %v2318
  %v2575 = vmul.f32 %v2319, %v2319
  %v2576 = vmul.f32 %v2320, %v2320
  %v2577 = vmul.f32 %v2321, %v2321
  %v2578 = vmul.f32 %v2322, %v2322
  %v2579 = vmul.f32 %v2323, %v2323
  %v2580 = vmul.f32 %v2324, %v2324
  %v2581 = vmul.f32 %v2325, %v2325
  %v2582 = vmul.f32 %v2326, %v2326
  %v2583 = vmul.f32 %v2327, %v2327
  %v2584 = vmul.f32 %v2328, %v2328
  %v2585 = vmul.f32 %v2329, %v2329
  %v2586 = vmul.f32 %v2330, %v2330
  %v2587 = vmul.f32 %v2331, %v2331
  %v2588 = vmul.f32 %v2332, %v2332
  %v2589 = vmul.f32 %v2333, %v2333
  %v2590 = vmul.f32 %v2334, %v2334
  %v2591 = vmul.f32 %v2335, %v2335
  %v2592 = vmul.f32 %v2336, %v2336
  %v2593 = vmul.f32 %v2337, %v2337
  %v2594 = vmul.f32 %v2338, %v2338
  %v2595 = vmul.f32 %v2339, %v2339
  %v2596 = vmul.f32 %v2340, %v2340
  %v2597 = vmul.f32 %v2341, %v2341
  %v2598 = vmul.f32 %v2342, %v2342
  %v2599 = vmul.f32 %v2343, %v2343
  %v2600 = vmul.f32 %v2344, %v2344
  %v2601 = vmul.f32 %v2345, %v2345
  %v2602 = vmul.f32 %v2346, %v2346
  %v2603 = vmul.f32 %v2347, %v2347
  %v2604 = vmul.f32 %v2348, %v2348
  %v2605 = vmul.f32 %v2349, %v2349
  %v2606 = vmul.f32 %v2350, %v2350
  %v2607 = vmul.f32 %v2351, %v2351
  %v2608 = vmul.f32 %v2352, %v2352
  %v2609 = vmul.f32 %v2353, %v2353
  %v2610 = vmul.f32 %v2354, %v2354
  %v2611 = vmul.f32 %v2355, %v2355
  %v2612 = vmul.f32 %v2356, %v2356
  %v2613 = vmul.f32 %v2357, %v2357
  %v2614 = vmul.f32 %v2358, %v2358
  %v2615 = vmul.f32 %v2359, %v2359
  %v2616 = vmul.f32 %v2360, %v2360
  %v2617 = vmul.f32 %v2361, %v2361
  %v2618 = vmul.f32 %v2362, %v2362
  %v2619 = vmul.f32 %v2363, %v2363
  %v2620 = vmul.f32 %v2364, %v2364
  %v2621 = vmul.f32 %v2365, %v2365
  %v2622 = vmul.f32 %v2366, %v2366
  %v2623 = vmul.f32 %v2367, %v2367
  %v2624 = vmul.f32 %v2368, %v2368
  %v2625 = vmul.f32 %v2369, %v2369
  %v2626 = vmul.f32 %v2370, %v2370
  %v2627 = vmul.f32 %v2371, %v2371
  %v2628 = vmul.f32 %v2372, %v2372
  %v2629 = vmul.f32 %v2373, %v2373
  %v2630 = vmul.f32 %v2374, %v2374
  %v2631 = vmul.f32 %v2375, %v2375
  %v2632 = vmul.f32 %v2376, %v2376
  %v2633 = vmul.f32 %v2377, %v2377
  %v2634 = vmul.f32 %v2378, %v2378
  %v2635 = vmul.f32 %v2379, %v2379
  %v2636 = vmul.f32 %v2380, %v2380
  %v2637 = vmul.f32 %v2381, %v2381
  %v2638 = vmul.f32 %v2382, %v2382
  %v2639 = vmul.f32 %v2383, %v2383
  %v2640 = vmul.f32 %v2384, %v2384
  %v2641 = vmul.f32 %v2385, %v2385
  %v2642 = vmul.f32 %v2386, %v2386
  %v2643 = vmul.f32 %v2387, %v2387
  %v2644 = vmul.f32 %v2388, %v2388
  %v2645 = vmul.f32 %v2389, %v2389
  %v2646 = vmul.f32 %v2390, %v2390
  %v2647 = vmul.f32 %v2391, %v2391
  %v2648 = vmul.f32 %v2392, %v2392
  %v2649 = vmul.f32 %v2393, %v2393
  %v2650 = vmul.f32 %v2394, %v2394
  %v2651 = vmul.f32 %v2395, %v2395
  %v2652 = vmul.f32 %v2396, %v2396
  %v2653 = vmul.f32 %v2397, %v2397
  %v2654 = vmul.f32 %v2398, %v2398
  %v2655 = vmul.f32 %v2399, %v2399
  %v2656 = vmul.f32 %v2400, %v2400
  %v2657 = vmul.f32 %v2401, %v2401
  %v2658 = vmul.f32 %v2402, %v2402
  %v2659 = vmul.f32 %v2403, %v2403
  %v2660 = vmul.f32 %v2404, %v2404
  %v2661 = vmul.f32 %v2405, %v2405
  %v2662 = vmul.f32 %v2406, %v2406
  %v2663 = vmul.f32 %v2407, %v2407
  %v2664 = vmul.f32 %v2408, %v2408
  %v2665 = vmul.f32 %v2409, %v2409
  %v2666 = vmul.f32 %v2410, %v2410
  %v2667 = vmul.f32 %v2411, %v2411
  %v2668 = vmul.f32 %v2412, %v2412
  %v2669 = vmul.f32 %v2413, %v2413
  %v2670 = vmul.f32 %v2414, %v2414
  %v2671 = vmul.f32 %v2415, %v2415
  %v2672 = vmul.f32 %v2416, %v2416
  %v2673 = vmul.f32 %v2417, %v2417
  %v2674 = vmul.f32 %v2418, %v2418
  %v2675 = vmul.f32 %v2419, %v2419
  %v2676 = vmul.f32 %v2420, %v2420
  %v2677 = vmul.f32 %v2421, %v2421
  %v2678 = vmul.f32 %v2422, %v2422
  %v2679 = vmul.f32 %v2423, %v2423
  %v2680 = vmul.f32 %v2424, %v2424
  %v2681 = vmul.f32 %v2425, %v2425
  %v2682 = vmul.f32 %v2426, %v2426
  %v2683 = vmul.f32 %v2427, %v2427
  %v2684 = vmul.f32 %v2428, %v2428
  %v2685 = vmul.f32 %v2429, %v2429
  %v2686 = vmul.f32 %v2430, %v2430
  %v2687 = vmul.f32 %v2431, %v2431
  %v2688 = vmul.f32 %v2432, %v2432
  %v2689 = vmul.f32 %v2433, %v2433
  %v2690 = vmul.f32 %v2434, %v2434
  %v2691 = vmul.f32 %v2435, %v2435
  %v2692 = vmul.f32 %v2436, %v2436
  %v2693 = vmul.f32 %v2437, %v2437
  %v2694 = vmul.f32 %v2438, %v2438
  %v2695 = vmul.f32 %v2439, %v2439
  %v2696 = vmul.f32 %v2440, %v2440
  %v2697 = vmul.f32 %v2441, %v2441
  %v2698 = vmul.f32 %v2442, %v2442
  %v2699 = vmul.f32 %v2443, %v2443
  %v2700 = vmul.f32 %v2444, %v2444
  %v2701 = vmul.f32 %v2445, %v2445
  %v2702 = vmul.f32 %v2446, %v2446
  %v2703 = vmul.f32 %v2447, %v2447
  %v2704 = vmul.f32 %v2448, %v2448
  %v2705 = vmul.f32 %v2449, %v2449
  %v2706 = vmul.f32 %v2450, %v2450
  %v2707 = vmul.f32 %v2451, %v2451
  %v2708 = vmul.f32 %v2452, %v2452
  %v2709 = vmul.f32 %v2453, %v2453
  %v2710 = vmul.f32 %v2454, %v2454
  %v2711 = vmul.f32 %v2455, %v2455
  %v2712 = vmul.f32 %v2456, %v2456
  %v2713 = vmul.f32 %v2457, %v2457
  %v2714 = vmul.f32 %v2458, %v2458
  %v2715 = vmul.f32 %v2459, %v2459
  %v2716 = vmul.f32 %v2460, %v2460
  %v2717 = vmul.f32 %v2461, %v2461
  %v2718 = vmul.f32 %v2462, %v2462
  %v2719 = vmul.f32 %v2463, %v2463
  %v2720 = vmul.f32 %v2464, %v2464
  %v2721 = vmul.f32 %v2465, %v2465
  %v2722 = vmul.f32 %v2466, %v2466
  %v2723 = vmul.f32 %v2467, %v2467
  %v2724 = vmul.f32 %v2468, %v2468
  %v2725 = vmul.f32 %v2469, %v2469
  %v2726 = vmul.f32 %v2470, %v2470
  %v2727 = vmul.f32 %v2471, %v2471
  %v2728 = vmul.f32 %v2472, %v2472
  %v2729 = vmul.f32 %v2473, %v2473
  %v2730 = vmul.f32 %v2474, %v2474
  %v2731 = vmul.f32 %v2475, %v2475
  %v2732 = vmul.f32 %v2476, %v2476
  %v2733 = vmul.f32 %v2477, %v2477
  %v2734 = vmul.f32 %v2478, %v2478
  %v2735 = vmul.f32 %v2479, %v2479
  %v2736 = vmul.f32 %v2480, %v2480
  %v2737 = vmul.f32 %v2481, %v2481
  %v2738 = vmul.f32 %v2482, %v2482
  %v2739 = vmul.f32 %v2483, %v2483
  %v2740 = vmul.f32 %v2484, %v2484
  %v2741 = vmul.f32 %v2485, %v2485
  %v2742 = vmul.f32 %v2486, %v2486
  %v2743 = vmul.f32 %v2487, %v2487
  %v2744 = vmul.f32 %v2488, %v2488
  %v2745 = vmul.f32 %v2489, %v2489
  %v2746 = vmul.f32 %v2490, %v2490
  %v2747 = vmul.f32 %v2491, %v2491
  %v2748 = vmul.f32 %v2492, %v2492
  %v2749 = vmul.f32 %v2493, %v2493
  %v2750 = vmul.f32 %v2494, %v2494
  %v2751 = vmul.f32 %v2495, %v2495
  %v2752 = vmul.f32 %v2496, %v2496
  %v2753 = vmul.f32 %v2497, %v2497
  %v2754 = vmul.f32 %v2498, %v2498
  %v2755 = vmul.f32 %v2499, %v2499
  %v2756 = vmul.f32 %v2500, %v2500
  %v2757 = vmul.f32 %v2501, %v2501
  %v2758 = vmul.f32 %v2502, %v2502
  %v2759 = vmul.f32 %v2503, %v2503
  %v2760 = vmul.f32 %v2504, %v2504
  %v2761 = vmul.f32 %v2505, %v2505
  %v2762 = vmul.f32 %v2506, %v2506
  %v2763 = vmul.f32 %v2507, %v2507
  %v2764 = vmul.f32 %v2508, %v2508
  %v2765 = vmul.f32 %v2509, %v2509
  %v2766 = vadd.f32 %v2510, %v2511
  %v2767 = vadd.f32 %v2766, %v2512
  %v2768 = vadd.f32 %v2767, %v2513
  %v2769 = vadd.f32 %v2768, %v2514
  %v2770 = vadd.f32 %v2769, %v2515
  %v2771 = vadd.f32 %v2770, %v2516
  %v2772 = vadd.f32 %v2771, %v2517
  %v2773 = vadd.f32 %v2772, %v2518
  %v2774 = vadd.f32 %v2773, %v2519
  %v2775 = vadd.f32 %v2774, %v2520
  %v2776 = vadd.f32 %v2775, %v2521
  %v2777 = vadd.f32 %v2776, %v2522
  %v2778 = vadd.f32 %v2777, %v2523
  %v2779 = vadd.f32 %v2778, %v2524
  %v2780 = vadd.f32 %v2779, %v2525
  %v2781 = vadd.f32 %v2780, %v2526
  %v2782 = vadd.f32 %v2781, %v2527
  %v2783 = vadd.f32 %v2782, %v2528
  %v2784 = vadd.f32 %v2783, %v2529
  %v2785 = vadd.f32 %v2784, %v2530
  %v2786 = vadd.f32 %v2785, %v2531
  %v2787 = vadd.f32 %v2786, %v2532
  %v2788 = vadd.f32 %v2787, %v2533
  %v2789 = vadd.f32 %v2788, %v2534
  %v2790 = vadd.f32 %v2789, %v2535
  %v2791 = vadd.f32 %v2790, %v2536
  %v2792 = vadd.f32 %v2791, %v2537
  %v2793 = vadd.f32 %v2792, %v2538
  %v2794 = vadd.f32 %v2793, %v2539
  %v2795 = vadd.f32 %v2794, %v2540
  %v2796 = vadd.f32 %v2795, %v2541
  %v2797 = vadd.f32 %v2796, %v2542
  %v2798 = vadd.f32 %v2797, %v2543
  %v2799 = vadd.f32 %v2798, %v2544
  %v2800 = vadd.f32 %v2799, %v2545
  %v2801 = vadd.f32 %v2800, %v2546
  %v2802 = vadd.f32 %v2801, %v2547
  %v2803 = vadd.f32 %v2802, %v2548
  %v2804 = vadd.f32 %v2803, %v2549
  %v2805 = vadd.f32 %v2804, %v2550
  %v2806 = vadd.f32 %v2805, %v2551
  %v2807 = vadd.f32 %v2806, %v2552
  %v2808 = vadd.f32 %v2807, %v2553
  %v2809 = vadd.f32 %v2808, %v2554
  %v2810 = vadd.f32 %v2809, %v2555
  %v2811 = vadd.f32 %v2810, %v2556
  %v2812 = vadd.f32 %v2811, %v2557
  %v2813 = vadd.f32 %v2812, %v2558
  %v2814 = vadd.f32 %v2813, %v2559
  %v2815 = vadd.f32 %v2814, %v2560
  %v2816 = vadd.f32 %v2815, %v2561
  %v2817 = vadd.f32 %v2816, %v2562
  %v2818 = vadd.f32 %v2817, %v2563
  %v2819 = vadd.f32 %v2818, %v2564
  %v2820 = vadd.f32 %v2819, %v2565
  %v2821 = vadd.f32 %v2820, %v2566
  %v2822 = vadd.f32 %v2821, %v2567
  %v2823 = vadd.f32 %v2822, %v2568
  %v2824 = vadd.f32 %v2823, %v2569
  %v2825 = vadd.f32 %v2824, %v2570
  %v2826 = vadd.f32 %v2825, %v2571
  %v2827 = vadd.f32 %v2826, %v2572
  %v2828 = vadd.f32 %v2827, %v2573
  %v2829 = vadd.f32 %v2828, %v2574
  %v2830 = vadd.f32 %v2829, %v2575
  %v2831 = vadd.f32 %v2830, %v2576
  %v2832 = vadd.f32 %v2831, %v2577
  %v2833 = vadd.f32 %v2832, %v2578
  %v2834 = vadd.f32 %v2833, %v2579
  %v2835 = vadd.f32 %v2834, %v2580
  %v2836 = vadd.f32 %v2835, %v2581
  %v2837 = vadd.f32 %v2836, %v2582
  %v2838 = vadd.f32 %v2837, %v2583
  %v2839 = vadd.f32 %v2838, %v2584
  %v2840 = vadd.f32 %v2839, %v2585
  %v2841 = vadd.f32 %v2840, %v2586
  %v2842 = vadd.f32 %v2841, %v2587
  %v2843 = vadd.f32 %v2842, %v2588
  %v2844 = vadd.f32 %v2843, %v2589
  %v2845 = vadd.f32 %v2844, %v2590
  %v2846 = vadd.f32 %v2845, %v2591
  %v2847 = vadd.f32 %v2846, %v2592
  %v2848 = vadd.f32 %v2847, %v2593
  %v2849 = vadd.f32 %v2848, %v2594
  %v2850 = vadd.f32 %v2849, %v2595
  %v2851 = vadd.f32 %v2850, %v2596
  %v2852 = vadd.f32 %v2851, %v2597
  %v2853 = vadd.f32 %v2852, %v2598
  %v2854 = vadd.f32 %v2853, %v2599
  %v2855 = vadd.f32 %v2854, %v2600
  %v2856 = vadd.f32 %v2855, %v2601
  %v2857 = vadd.f32 %v2856, %v2602
  %v2858 = vadd.f32 %v2857, %v2603
  %v2859 = vadd.f32 %v2858, %v2604
  %v2860 = vadd.f32 %v2859, %v2605
  %v2861 = vadd.f32 %v2860, %v2606
  %v2862 = vadd.f32 %v2861, %v2607
  %v2863 = vadd.f32 %v2862, %v2608
  %v2864 = vadd.f32 %v2863, %v2609
  %v2865 = vadd.f32 %v2864, %v2610
  %v2866 = vadd.f32 %v2865, %v2611
  %v2867 = vadd.f32 %v2866, %v2612
  %v2868 = vadd.f32 %v2867, %v2613
  %v2869 = vadd.f32 %v2868, %v2614
  %v2870 = vadd.f32 %v2869, %v2615
  %v2871 = vadd.f32 %v2870, %v2616
  %v2872 = vadd.f32 %v2871, %v2617
  %v2873 = vadd.f32 %v2872, %v2618
  %v2874 = vadd.f32 %v2873, %v2619
  %v2875 = vadd.f32 %v2874, %v2620
  %v2876 = vadd.f32 %v2875, %v2621
  %v2877 = vadd.f32 %v2876, %v2622
  %v2878 = vadd.f32 %v2877, %v2623
  %v2879 = vadd.f32 %v2878, %v2624
  %v2880 = vadd.f32 %v2879, %v2625
  %v2881 = vadd.f32 %v2880, %v2626
  %v2882 = vadd.f32 %v2881, %v2627
  %v2883 = vadd.f32 %v2882, %v2628
  %v2884 = vadd.f32 %v2883, %v2629
  %v2885 = vadd.f32 %v2884, %v2630
  %v2886 = vadd.f32 %v2885, %v2631
  %v2887 = vadd.f32 %v2886, %v2632
  %v2888 = vadd.f32 %v2887, %v2633
  %v2889 = vadd.f32 %v2888, %v2634
  %v2890 = vadd.f32 %v2889, %v2635
  %v2891 = vadd.f32 %v2890, %v2636
  %v2892 = vadd.f32 %v2891, %v2637
  %v2893 = vadd.f32 %v2892, %v2638
  %v2894 = vadd.f32 %v2893, %v2639
  %v2895 = vadd.f32 %v2894, %v2640
  %v2896 = vadd.f32 %v2895, %v2641
  %v2897 = vadd.f32 %v2896, %v2642
  %v2898 = vadd.f32 %v2897, %v2643
  %v2899 = vadd.f32 %v2898, %v2644
  %v2900 = vadd.f32 %v2899, %v2645
  %v2901 = vadd.f32 %v2900, %v2646
  %v2902 = vadd.f32 %v2901, %v2647
  %v2903 = vadd.f32 %v2902, %v2648
  %v2904 = vadd.f32 %v2903, %v2649
  %v2905 = vadd.f32 %v2904, %v2650
  %v2906 = vadd.f32 %v2905, %v2651
  %v2907 = vadd.f32 %v2906, %v2652
  %v2908 = vadd.f32 %v2907, %v2653
  %v2909 = vadd.f32 %v2908, %v2654
  %v2910 = vadd.f32 %v2909, %v2655
  %v2911 = vadd.f32 %v2910, %v2656
  %v2912 = vadd.f32 %v2911, %v2657
  %v2913 = vadd.f32 %v2912, %v2658
  %v2914 = vadd.f32 %v2913, %v2659
  %v2915 = vadd.f32 %v2914, %v2660
  %v2916 = vadd.f32 %v2915, %v2661
  %v2917 = vadd.f32 %v2916, %v2662
  %v2918 = vadd.f32 %v2917, %v2663
  %v2919 = vadd.f32 %v2918, %v2664
  %v2920 = vadd.f32 %v2919, %v2665
  %v2921 = vadd.f32 %v2920, %v2666
  %v2922 = vadd.f32 %v2921, %v2667
  %v2923 = vadd.f32 %v2922, %v2668
  %v2924 = vadd.f32 %v2923, %v2669
  %v2925 = vadd.f32 %v2924, %v2670
  %v2926 = vadd.f32 %v2925, %v2671
  %v2927 = vadd.f32 %v2926, %v2672
  %v2928 = vadd.f32 %v2927, %v2673
  %v2929 = vadd.f32 %v2928, %v2674
  %v2930 = vadd.f32 %v2929, %v2675
  %v2931 = vadd.f32 %v2930, %v2676
  %v2932 = vadd.f32 %v2931, %v2677
  %v2933 = vadd.f32 %v2932, %v2678
  %v2934 = vadd.f32 %v2933, %v2679
  %v2935 = vadd.f32 %v2934, %v2680
  %v2936 = vadd.f32 %v2935, %v2681
  %v2937 = vadd.f32 %v2936, %v2682
  %v2938 = vadd.f32 %v2937, %v2683
  %v2939 = vadd.f32 %v2938, %v2684
  %v2940 = vadd.f32 %v2939, %v2685
  %v2941 = vadd.f32 %v2940, %v2686
  %v2942 = vadd.f32 %v2941, %v2687
  %v2943 = vadd.f32 %v2942, %v2688
  %v2944 = vadd.f32 %v2943, %v2689
  %v2945 = vadd.f32 %v2944, %v2690
  %v2946 = vadd.f32 %v2945, %v2691
  %v2947 = vadd.f32 %v2946, %v2692
  %v2948 = vadd.f32 %v2947, %v2693
  %v2949 = vadd.f32 %v2948, %v2694
  %v2950 = vadd.f32 %v2949, %v2695
  %v2951 = vadd.f32 %v2950, %v2696
  %v2952 = vadd.f32 %v2951, %v2697
  %v2953 = vadd.f32 %v2952, %v2698
  %v2954 = vadd.f32 %v2953, %v2699
  %v2955 = vadd.f32 %v2954, %v2700
  %v2956 = vadd.f32 %v2955, %v2701
  %v2957 = vadd.f32 %v2956, %v2702
  %v2958 = vadd.f32 %v2957, %v2703
  %v2959 = vadd.f32 %v2958, %v2704
  %v2960 = vadd.f32 %v2959, %v2705
  %v2961 = vadd.f32 %v2960, %v2706
  %v2962 = vadd.f32 %v2961, %v2707
  %v2963 = vadd.f32 %v2962, %v2708
  %v2964 = vadd.f32 %v2963, %v2709
  %v2965 = vadd.f32 %v2964, %v2710
  %v2966 = vadd.f32 %v2965, %v2711
  %v2967 = vadd.f32 %v2966, %v2712
  %v2968 = vadd.f32 %v2967, %v2713
  %v2969 = vadd.f32 %v2968, %v2714
  %v2970 = vadd.f32 %v2969, %v2715
  %v2971 = vadd.f32 %v2970, %v2716
  %v2972 = vadd.f32 %v2971, %v2717
  %v2973 = vadd.f32 %v2972, %v2718
  %v2974 = vadd.f32 %v2973, %v2719
  %v2975 = vadd.f32 %v2974, %v2720
  %v2976 = vadd.f32 %v2975, %v2721
  %v2977 = vadd.f32 %v2976, %v2722
  %v2978 = vadd.f32 %v2977, %v2723
  %v2979 = vadd.f32 %v2978, %v2724
  %v2980 = vadd.f32 %v2979, %v2725
  %v2981 = vadd.f32 %v2980, %v2726
  %v2982 = vadd.f32 %v2981, %v2727
  %v2983 = vadd.f32 %v2982, %v2728
  %v2984 = vadd.f32 %v2983, %v2729
  %v2985 = vadd.f32 %v2984, %v2730
  %v2986 = vadd.f32 %v2985, %v2731
  %v2987 = vadd.f32 %v2986, %v2732
  %v2988 = vadd.f32 %v2987, %v2733
  %v2989 = vadd.f32 %v2988, %v2734
  %v2990 = vadd.f32 %v2989, %v2735
  %v2991 = vadd.f32 %v2990, %v2736
  %v2992 = vadd.f32 %v2991, %v2737
  %v2993 = vadd.f32 %v2992, %v2738
  %v2994 = vadd.f32 %v2993, %v2739
  %v2995 = vadd.f32 %v2994, %v2740
  %v2996 = vadd.f32 %v2995, %v2741
  %v2997 = vadd.f32 %v2996, %v2742
  %v2998 = vadd.f32 %v2997, %v2743
  %v2999 = vadd.f32 %v2998, %v2744
  %v3000 = vadd.f32 %v2999, %v2745
  %v3001 = vadd.f32 %v3000, %v2746
  %v3002 = vadd.f32 %v3001, %v2747
  %v3003 = vadd.f32 %v3002, %v2748
  %v3004 = vadd.f32 %v3003, %v2749
  %v3005 = vadd.f32 %v3004, %v2750
  %v3006 = vadd.f32 %v3005, %v2751
  %v3007 = vadd.f32 %v3006, %v2752
  %v3008 = vadd.f32 %v3007, %v2753
  %v3009 = vadd.f32 %v3008, %v2754
  %v3010 = vadd.f32 %v3009, %v2755
  %v3011 = vadd.f32 %v3010, %v2756
  %v3012 = vadd.f32 %v3011, %v2757
  %v3013 = vadd.f32 %v3012, %v2758
  %v3014 = vadd.f32 %v3013, %v2759
  %v3015 = vadd.f32 %v3014, %v2760
  %v3016 = vadd.f32 %v3015, %v2761
  %v3017 = vadd.f32 %v3016, %v2762
  %v3018 = vadd.f32 %v3017, %v2763
  %v3019 = vadd.f32 %v3018, %v2764
  %v3020 = vadd.f32 %v3019, %v2765
  %v3021 = vrot.slane %v3020, 4
  %v3022 = vadd.f32 %v3020, %v3021
  %v3023 = vrot.slane %v3022, 2
  %v3024 = vadd.f32 %v3022, %v3023
  %v3025 = vrot.slane %v3024, 1
  %v3026 = vadd.f32 %v3024, %v3025
  %v3027 = vmul.f32 %v3026, %v2252
  %v3028 = vadd.f32 %v3027, 1e-05
  %v3029 = vrsqrt.pop %v3028
  %v3030 = vmul.f32 %v3029, %v3028
  %v3031 = vmul.f32 %v3030, %v3029
  %v3032 = vmul.f32 0.5, %v3031
  %v3033 = vsub.f32 1.5, %v3032
  %v3034 = vmul.f32 %v3029, %v3033
  %vm3035 = vweird.f32 %v3028
  %vm3036 = vweird.f32 %v3029
  %vm3037 = vmor %vm3035, %vm3036
  %v3038 = vsel %vm3037, %v3029, %v3034
  %v3039 = vmul.f32 %v2254, %v3038
  %v3040 = vmul.f32 %v2255, %v3038
  %v3041 = vmul.f32 %v2256, %v3038
  %v3042 = vmul.f32 %v2257, %v3038
  %v3043 = vmul.f32 %v2258, %v3038
  %v3044 = vmul.f32 %v2259, %v3038
  %v3045 = vmul.f32 %v2260, %v3038
  %v3046 = vmul.f32 %v2261, %v3038
  %v3047 = vmul.f32 %v2262, %v3038
  %v3048 = vmul.f32 %v2263, %v3038
  %v3049 = vmul.f32 %v2264, %v3038
  %v3050 = vmul.f32 %v2265, %v3038
  %v3051 = vmul.f32 %v2266, %v3038
  %v3052 = vmul.f32 %v2267, %v3038
  %v3053 = vmul.f32 %v2268, %v3038
  %v3054 = vmul.f32 %v2269, %v3038
  %v3055 = vmul.f32 %v2270, %v3038
  %v3056 = vmul.f32 %v2271, %v3038
  %v3057 = vmul.f32 %v2272, %v3038
  %v3058 = vmul.f32 %v2273, %v3038
  %v3059 = vmul.f32 %v2274, %v3038
  %v3060 = vmul.f32 %v2275, %v3038
  %v3061 = vmul.f32 %v2276, %v3038
  %v3062 = vmul.f32 %v2277, %v3038
  %v3063 = vmul.f32 %v2278, %v3038
  %v3064 = vmul.f32 %v2279, %v3038
  %v3065 = vmul.f32 %v2280, %v3038
  %v3066 = vmul.f32 %v2281, %v3038
  %v3067 = vmul.f32 %v2282, %v3038
  %v3068 = vmul.f32 %v2283, %v3038
  %v3069 = vmul.f32 %v2284, %v3038
  %v3070 = vmul.f32 %v2285, %v3038
  %v3071 = vmul.f32 %v2286, %v3038
  %v3072 = vmul.f32 %v2287, %v3038
  %v3073 = vmul.f32 %v2288, %v3038
  %v3074 = vmul.f32 %v2289, %v3038
  %v3075 = vmul.f32 %v2290, %v3038
  %v3076 = vmul.f32 %v2291, %v3038
  %v3077 = vmul.f32 %v2292, %v3038
  %v3078 = vmul.f32 %v2293, %v3038
  %v3079 = vmul.f32 %v2294, %v3038
  %v3080 = vmul.f32 %v2295, %v3038
  %v3081 = vmul.f32 %v2296, %v3038
  %v3082 = vmul.f32 %v2297, %v3038
  %v3083 = vmul.f32 %v2298, %v3038
  %v3084 = vmul.f32 %v2299, %v3038
  %v3085 = vmul.f32 %v2300, %v3038
  %v3086 = vmul.f32 %v2301, %v3038
  %v3087 = vmul.f32 %v2302, %v3038
  %v3088 = vmul.f32 %v2303, %v3038
  %v3089 = vmul.f32 %v2304, %v3038
  %v3090 = vmul.f32 %v2305, %v3038
  %v3091 = vmul.f32 %v2306, %v3038
  %v3092 = vmul.f32 %v2307, %v3038
  %v3093 = vmul.f32 %v2308, %v3038
  %v3094 = vmul.f32 %v2309, %v3038
  %v3095 = vmul.f32 %v2310, %v3038
  %v3096 = vmul.f32 %v2311, %v3038
  %v3097 = vmul.f32 %v2312, %v3038
  %v3098 = vmul.f32 %v2313, %v3038
  %v3099 = vmul.f32 %v2314, %v3038
  %v3100 = vmul.f32 %v2315, %v3038
  %v3101 = vmul.f32 %v2316, %v3038
  %v3102 = vmul.f32 %v2317, %v3038
  %v3103 = vmul.f32 %v2318, %v3038
  %v3104 = vmul.f32 %v2319, %v3038
  %v3105 = vmul.f32 %v2320, %v3038
  %v3106 = vmul.f32 %v2321, %v3038
  %v3107 = vmul.f32 %v2322, %v3038
  %v3108 = vmul.f32 %v2323, %v3038
  %v3109 = vmul.f32 %v2324, %v3038
  %v3110 = vmul.f32 %v2325, %v3038
  %v3111 = vmul.f32 %v2326, %v3038
  %v3112 = vmul.f32 %v2327, %v3038
  %v3113 = vmul.f32 %v2328, %v3038
  %v3114 = vmul.f32 %v2329, %v3038
  %v3115 = vmul.f32 %v2330, %v3038
  %v3116 = vmul.f32 %v2331, %v3038
  %v3117 = vmul.f32 %v2332, %v3038
  %v3118 = vmul.f32 %v2333, %v3038
  %v3119 = vmul.f32 %v2334, %v3038
  %v3120 = vmul.f32 %v2335, %v3038
  %v3121 = vmul.f32 %v2336, %v3038
  %v3122 = vmul.f32 %v2337, %v3038
  %v3123 = vmul.f32 %v2338, %v3038
  %v3124 = vmul.f32 %v2339, %v3038
  %v3125 = vmul.f32 %v2340, %v3038
  %v3126 = vmul.f32 %v2341, %v3038
  %v3127 = vmul.f32 %v2342, %v3038
  %v3128 = vmul.f32 %v2343, %v3038
  %v3129 = vmul.f32 %v2344, %v3038
  %v3130 = vmul.f32 %v2345, %v3038
  %v3131 = vmul.f32 %v2346, %v3038
  %v3132 = vmul.f32 %v2347, %v3038
  %v3133 = vmul.f32 %v2348, %v3038
  %v3134 = vmul.f32 %v2349, %v3038
  %v3135 = vmul.f32 %v2350, %v3038
  %v3136 = vmul.f32 %v2351, %v3038
  %v3137 = vmul.f32 %v2352, %v3038
  %v3138 = vmul.f32 %v2353, %v3038
  %v3139 = vmul.f32 %v2354, %v3038
  %v3140 = vmul.f32 %v2355, %v3038
  %v3141 = vmul.f32 %v2356, %v3038
  %v3142 = vmul.f32 %v2357, %v3038
  %v3143 = vmul.f32 %v2358, %v3038
  %v3144 = vmul.f32 %v2359, %v3038
  %v3145 = vmul.f32 %v2360, %v3038
  %v3146 = vmul.f32 %v2361, %v3038
  %v3147 = vmul.f32 %v2362, %v3038
  %v3148 = vmul.f32 %v2363, %v3038
  %v3149 = vmul.f32 %v2364, %v3038
  %v3150 = vmul.f32 %v2365, %v3038
  %v3151 = vmul.f32 %v2366, %v3038
  %v3152 = vmul.f32 %v2367, %v3038
  %v3153 = vmul.f32 %v2368, %v3038
  %v3154 = vmul.f32 %v2369, %v3038
  %v3155 = vmul.f32 %v2370, %v3038
  %v3156 = vmul.f32 %v2371, %v3038
  %v3157 = vmul.f32 %v2372, %v3038
  %v3158 = vmul.f32 %v2373, %v3038
  %v3159 = vmul.f32 %v2374, %v3038
  %v3160 = vmul.f32 %v2375, %v3038
  %v3161 = vmul.f32 %v2376, %v3038
  %v3162 = vmul.f32 %v2377, %v3038
  %v3163 = vmul.f32 %v2378, %v3038
  %v3164 = vmul.f32 %v2379, %v3038
  %v3165 = vmul.f32 %v2380, %v3038
  %v3166 = vmul.f32 %v2381, %v3038
  %v3167 = vmul.f32 %v2382, %v3038
  %v3168 = vmul.f32 %v2383, %v3038
  %v3169 = vmul.f32 %v2384, %v3038
  %v3170 = vmul.f32 %v2385, %v3038
  %v3171 = vmul.f32 %v2386, %v3038
  %v3172 = vmul.f32 %v2387, %v3038
  %v3173 = vmul.f32 %v2388, %v3038
  %v3174 = vmul.f32 %v2389, %v3038
  %v3175 = vmul.f32 %v2390, %v3038
  %v3176 = vmul.f32 %v2391, %v3038
  %v3177 = vmul.f32 %v2392, %v3038
  %v3178 = vmul.f32 %v2393, %v3038
  %v3179 = vmul.f32 %v2394, %v3038
  %v3180 = vmul.f32 %v2395, %v3038
  %v3181 = vmul.f32 %v2396, %v3038
  %v3182 = vmul.f32 %v2397, %v3038
  %v3183 = vmul.f32 %v2398, %v3038
  %v3184 = vmul.f32 %v2399, %v3038
  %v3185 = vmul.f32 %v2400, %v3038
  %v3186 = vmul.f32 %v2401, %v3038
  %v3187 = vmul.f32 %v2402, %v3038
  %v3188 = vmul.f32 %v2403, %v3038
  %v3189 = vmul.f32 %v2404, %v3038
  %v3190 = vmul.f32 %v2405, %v3038
  %v3191 = vmul.f32 %v2406, %v3038
  %v3192 = vmul.f32 %v2407, %v3038
  %v3193 = vmul.f32 %v2408, %v3038
  %v3194 = vmul.f32 %v2409, %v3038
  %v3195 = vmul.f32 %v2410, %v3038
  %v3196 = vmul.f32 %v2411, %v3038
  %v3197 = vmul.f32 %v2412, %v3038
  %v3198 = vmul.f32 %v2413, %v3038
  %v3199 = vmul.f32 %v2414, %v3038
  %v3200 = vmul.f32 %v2415, %v3038
  %v3201 = vmul.f32 %v2416, %v3038
  %v3202 = vmul.f32 %v2417, %v3038
  %v3203 = vmul.f32 %v2418, %v3038
  %v3204 = vmul.f32 %v2419, %v3038
  %v3205 = vmul.f32 %v2420, %v3038
  %v3206 = vmul.f32 %v2421, %v3038
  %v3207 = vmul.f32 %v2422, %v3038
  %v3208 = vmul.f32 %v2423, %v3038
  %v3209 = vmul.f32 %v2424, %v3038
  %v3210 = vmul.f32 %v2425, %v3038
  %v3211 = vmul.f32 %v2426, %v3038
  %v3212 = vmul.f32 %v2427, %v3038
  %v3213 = vmul.f32 %v2428, %v3038
  %v3214 = vmul.f32 %v2429, %v3038
  %v3215 = vmul.f32 %v2430, %v3038
  %v3216 = vmul.f32 %v2431, %v3038
  %v3217 = vmul.f32 %v2432, %v3038
  %v3218 = vmul.f32 %v2433, %v3038
  %v3219 = vmul.f32 %v2434, %v3038
  %v3220 = vmul.f32 %v2435, %v3038
  %v3221 = vmul.f32 %v2436, %v3038
  %v3222 = vmul.f32 %v2437, %v3038
  %v3223 = vmul.f32 %v2438, %v3038
  %v3224 = vmul.f32 %v2439, %v3038
  %v3225 = vmul.f32 %v2440, %v3038
  %v3226 = vmul.f32 %v2441, %v3038
  %v3227 = vmul.f32 %v2442, %v3038
  %v3228 = vmul.f32 %v2443, %v3038
  %v3229 = vmul.f32 %v2444, %v3038
  %v3230 = vmul.f32 %v2445, %v3038
  %v3231 = vmul.f32 %v2446, %v3038
  %v3232 = vmul.f32 %v2447, %v3038
  %v3233 = vmul.f32 %v2448, %v3038
  %v3234 = vmul.f32 %v2449, %v3038
  %v3235 = vmul.f32 %v2450, %v3038
  %v3236 = vmul.f32 %v2451, %v3038
  %v3237 = vmul.f32 %v2452, %v3038
  %v3238 = vmul.f32 %v2453, %v3038
  %v3239 = vmul.f32 %v2454, %v3038
  %v3240 = vmul.f32 %v2455, %v3038
  %v3241 = vmul.f32 %v2456, %v3038
  %v3242 = vmul.f32 %v2457, %v3038
  %v3243 = vmul.f32 %v2458, %v3038
  %v3244 = vmul.f32 %v2459, %v3038
  %v3245 = vmul.f32 %v2460, %v3038
  %v3246 = vmul.f32 %v2461, %v3038
  %v3247 = vmul.f32 %v2462, %v3038
  %v3248 = vmul.f32 %v2463, %v3038
  %v3249 = vmul.f32 %v2464, %v3038
  %v3250 = vmul.f32 %v2465, %v3038
  %v3251 = vmul.f32 %v2466, %v3038
  %v3252 = vmul.f32 %v2467, %v3038
  %v3253 = vmul.f32 %v2468, %v3038
  %v3254 = vmul.f32 %v2469, %v3038
  %v3255 = vmul.f32 %v2470, %v3038
  %v3256 = vmul.f32 %v2471, %v3038
  %v3257 = vmul.f32 %v2472, %v3038
  %v3258 = vmul.f32 %v2473, %v3038
  %v3259 = vmul.f32 %v2474, %v3038
  %v3260 = vmul.f32 %v2475, %v3038
  %v3261 = vmul.f32 %v2476, %v3038
  %v3262 = vmul.f32 %v2477, %v3038
  %v3263 = vmul.f32 %v2478, %v3038
  %v3264 = vmul.f32 %v2479, %v3038
  %v3265 = vmul.f32 %v2480, %v3038
  %v3266 = vmul.f32 %v2481, %v3038
  %v3267 = vmul.f32 %v2482, %v3038
  %v3268 = vmul.f32 %v2483, %v3038
  %v3269 = vmul.f32 %v2484, %v3038
  %v3270 = vmul.f32 %v2485, %v3038
  %v3271 = vmul.f32 %v2486, %v3038
  %v3272 = vmul.f32 %v2487, %v3038
  %v3273 = vmul.f32 %v2488, %v3038
  %v3274 = vmul.f32 %v2489, %v3038
  %v3275 = vmul.f32 %v2490, %v3038
  %v3276 = vmul.f32 %v2491, %v3038
  %v3277 = vmul.f32 %v2492, %v3038
  %v3278 = vmul.f32 %v2493, %v3038
  %v3279 = vmul.f32 %v2494, %v3038
  %v3280 = vmul.f32 %v2495, %v3038
  %v3281 = vmul.f32 %v2496, %v3038
  %v3282 = vmul.f32 %v2497, %v3038
  %v3283 = vmul.f32 %v2498, %v3038
  %v3284 = vmul.f32 %v2499, %v3038
  %v3285 = vmul.f32 %v2500, %v3038
  %v3286 = vmul.f32 %v2501, %v3038
  %v3287 = vmul.f32 %v2502, %v3038
  %v3288 = vmul.f32 %v2503, %v3038
  %v3289 = vmul.f32 %v2504, %v3038
  %v3290 = vmul.f32 %v2505, %v3038
  %v3291 = vmul.f32 %v2506, %v3038
  %v3292 = vmul.f32 %v2507, %v3038
  %v3293 = vmul.f32 %v2508, %v3038
  %v3294 = vmul.f32 %v2509, %v3038
  %v3295 = vld [vmem:[%s2] sm:$0x1]
  %v3297 = vperm.slane %v3295, 0
  %v3299 = vmul.f32 %v3039, %v3297
  %v3300 = vmul.f32 %v3040, %v3297
  %v3301 = vmul.f32 %v3041, %v3297
  %v3302 = vmul.f32 %v3042, %v3297
  %v3303 = vmul.f32 %v3043, %v3297
  %v3304 = vmul.f32 %v3044, %v3297
  %v3305 = vmul.f32 %v3045, %v3297
  %v3306 = vmul.f32 %v3046, %v3297
  %v3307 = vmul.f32 %v3047, %v3297
  %v3308 = vmul.f32 %v3048, %v3297
  %v3309 = vmul.f32 %v3049, %v3297
  %v3310 = vmul.f32 %v3050, %v3297
  %v3311 = vmul.f32 %v3051, %v3297
  %v3312 = vmul.f32 %v3052, %v3297
  %v3313 = vmul.f32 %v3053, %v3297
  %v3314 = vmul.f32 %v3054, %v3297
  %v3315 = vmul.f32 %v3055, %v3297
  %v3316 = vmul.f32 %v3056, %v3297
  %v3317 = vmul.f32 %v3057, %v3297
  %v3318 = vmul.f32 %v3058, %v3297
  %v3319 = vmul.f32 %v3059, %v3297
  %v3320 = vmul.f32 %v3060, %v3297
  %v3321 = vmul.f32 %v3061, %v3297
  %v3322 = vmul.f32 %v3062, %v3297
  %v3323 = vmul.f32 %v3063, %v3297
  %v3324 = vmul.f32 %v3064, %v3297
  %v3325 = vmul.f32 %v3065, %v3297
  %v3326 = vmul.f32 %v3066, %v3297
  %v3327 = vmul.f32 %v3067, %v3297
  %v3328 = vmul.f32 %v3068, %v3297
  %v3329 = vmul.f32 %v3069, %v3297
  %v3330 = vmul.f32 %v3070, %v3297
  %v3331 = vmul.f32 %v3071, %v3297
  %v3332 = vmul.f32 %v3072, %v3297
  %v3333 = vmul.f32 %v3073, %v3297
  %v3334 = vmul.f32 %v3074, %v3297
  %v3335 = vmul.f32 %v3075, %v3297
  %v3336 = vmul.f32 %v3076, %v3297
  %v3337 = vmul.f32 %v3077, %v3297
  %v3338 = vmul.f32 %v3078, %v3297
  %v3339 = vmul.f32 %v3079, %v3297
  %v3340 = vmul.f32 %v3080, %v3297
  %v3341 = vmul.f32 %v3081, %v3297
  %v3342 = vmul.f32 %v3082, %v3297
  %v3343 = vmul.f32 %v3083, %v3297
  %v3344 = vmul.f32 %v3084, %v3297
  %v3345 = vmul.f32 %v3085, %v3297
  %v3346 = vmul.f32 %v3086, %v3297
  %v3347 = vmul.f32 %v3087, %v3297
  %v3348 = vmul.f32 %v3088, %v3297
  %v3349 = vmul.f32 %v3089, %v3297
  %v3350 = vmul.f32 %v3090, %v3297
  %v3351 = vmul.f32 %v3091, %v3297
  %v3352 = vmul.f32 %v3092, %v3297
  %v3353 = vmul.f32 %v3093, %v3297
  %v3354 = vmul.f32 %v3094, %v3297
  %v3355 = vmul.f32 %v3095, %v3297
  %v3356 = vmul.f32 %v3096, %v3297
  %v3357 = vmul.f32 %v3097, %v3297
  %v3358 = vmul.f32 %v3098, %v3297
  %v3359 = vmul.f32 %v3099, %v3297
  %v3360 = vmul.f32 %v3100, %v3297
  %v3361 = vmul.f32 %v3101, %v3297
  %v3362 = vmul.f32 %v3102, %v3297
  %v3363 = vmul.f32 %v3103, %v3297
  %v3364 = vmul.f32 %v3104, %v3297
  %v3365 = vmul.f32 %v3105, %v3297
  %v3366 = vmul.f32 %v3106, %v3297
  %v3367 = vmul.f32 %v3107, %v3297
  %v3368 = vmul.f32 %v3108, %v3297
  %v3369 = vmul.f32 %v3109, %v3297
  %v3370 = vmul.f32 %v3110, %v3297
  %v3371 = vmul.f32 %v3111, %v3297
  %v3372 = vmul.f32 %v3112, %v3297
  %v3373 = vmul.f32 %v3113, %v3297
  %v3374 = vmul.f32 %v3114, %v3297
  %v3375 = vmul.f32 %v3115, %v3297
  %v3376 = vmul.f32 %v3116, %v3297
  %v3377 = vmul.f32 %v3117, %v3297
  %v3378 = vmul.f32 %v3118, %v3297
  %v3379 = vmul.f32 %v3119, %v3297
  %v3380 = vmul.f32 %v3120, %v3297
  %v3381 = vmul.f32 %v3121, %v3297
  %v3382 = vmul.f32 %v3122, %v3297
  %v3383 = vmul.f32 %v3123, %v3297
  %v3384 = vmul.f32 %v3124, %v3297
  %v3385 = vmul.f32 %v3125, %v3297
  %v3386 = vmul.f32 %v3126, %v3297
  %v3387 = vmul.f32 %v3127, %v3297
  %v3388 = vmul.f32 %v3128, %v3297
  %v3389 = vmul.f32 %v3129, %v3297
  %v3390 = vmul.f32 %v3130, %v3297
  %v3391 = vmul.f32 %v3131, %v3297
  %v3392 = vmul.f32 %v3132, %v3297
  %v3393 = vmul.f32 %v3133, %v3297
  %v3394 = vmul.f32 %v3134, %v3297
  %v3395 = vmul.f32 %v3135, %v3297
  %v3396 = vmul.f32 %v3136, %v3297
  %v3397 = vmul.f32 %v3137, %v3297
  %v3398 = vmul.f32 %v3138, %v3297
  %v3399 = vmul.f32 %v3139, %v3297
  %v3400 = vmul.f32 %v3140, %v3297
  %v3401 = vmul.f32 %v3141, %v3297
  %v3402 = vmul.f32 %v3142, %v3297
  %v3403 = vmul.f32 %v3143, %v3297
  %v3404 = vmul.f32 %v3144, %v3297
  %v3405 = vmul.f32 %v3145, %v3297
  %v3406 = vmul.f32 %v3146, %v3297
  %v3407 = vmul.f32 %v3147, %v3297
  %v3408 = vmul.f32 %v3148, %v3297
  %v3409 = vmul.f32 %v3149, %v3297
  %v3410 = vmul.f32 %v3150, %v3297
  %v3411 = vmul.f32 %v3151, %v3297
  %v3412 = vmul.f32 %v3152, %v3297
  %v3413 = vmul.f32 %v3153, %v3297
  %v3414 = vmul.f32 %v3154, %v3297
  %v3415 = vmul.f32 %v3155, %v3297
  %v3416 = vmul.f32 %v3156, %v3297
  %v3417 = vmul.f32 %v3157, %v3297
  %v3418 = vmul.f32 %v3158, %v3297
  %v3419 = vmul.f32 %v3159, %v3297
  %v3420 = vmul.f32 %v3160, %v3297
  %v3421 = vmul.f32 %v3161, %v3297
  %v3422 = vmul.f32 %v3162, %v3297
  %v3423 = vmul.f32 %v3163, %v3297
  %v3424 = vmul.f32 %v3164, %v3297
  %v3425 = vmul.f32 %v3165, %v3297
  %v3426 = vmul.f32 %v3166, %v3297
  %v3427 = vmul.f32 %v3167, %v3297
  %v3428 = vmul.f32 %v3168, %v3297
  %v3429 = vmul.f32 %v3169, %v3297
  %v3430 = vmul.f32 %v3170, %v3297
  %v3431 = vmul.f32 %v3171, %v3297
  %v3432 = vmul.f32 %v3172, %v3297
  %v3433 = vmul.f32 %v3173, %v3297
  %v3434 = vmul.f32 %v3174, %v3297
  %v3435 = vmul.f32 %v3175, %v3297
  %v3436 = vmul.f32 %v3176, %v3297
  %v3437 = vmul.f32 %v3177, %v3297
  %v3438 = vmul.f32 %v3178, %v3297
  %v3439 = vmul.f32 %v3179, %v3297
  %v3440 = vmul.f32 %v3180, %v3297
  %v3441 = vmul.f32 %v3181, %v3297
  %v3442 = vmul.f32 %v3182, %v3297
  %v3443 = vmul.f32 %v3183, %v3297
  %v3444 = vmul.f32 %v3184, %v3297
  %v3445 = vmul.f32 %v3185, %v3297
  %v3446 = vmul.f32 %v3186, %v3297
  %v3447 = vmul.f32 %v3187, %v3297
  %v3448 = vmul.f32 %v3188, %v3297
  %v3449 = vmul.f32 %v3189, %v3297
  %v3450 = vmul.f32 %v3190, %v3297
  %v3451 = vmul.f32 %v3191, %v3297
  %v3452 = vmul.f32 %v3192, %v3297
  %v3453 = vmul.f32 %v3193, %v3297
  %v3454 = vmul.f32 %v3194, %v3297
  %v3455 = vmul.f32 %v3195, %v3297
  %v3456 = vmul.f32 %v3196, %v3297
  %v3457 = vmul.f32 %v3197, %v3297
  %v3458 = vmul.f32 %v3198, %v3297
  %v3459 = vmul.f32 %v3199, %v3297
  %v3460 = vmul.f32 %v3200, %v3297
  %v3461 = vmul.f32 %v3201, %v3297
  %v3462 = vmul.f32 %v3202, %v3297
  %v3463 = vmul.f32 %v3203, %v3297
  %v3464 = vmul.f32 %v3204, %v3297
  %v3465 = vmul.f32 %v3205, %v3297
  %v3466 = vmul.f32 %v3206, %v3297
  %v3467 = vmul.f32 %v3207, %v3297
  %v3468 = vmul.f32 %v3208, %v3297
  %v3469 = vmul.f32 %v3209, %v3297
  %v3470 = vmul.f32 %v3210, %v3297
  %v3471 = vmul.f32 %v3211, %v3297
  %v3472 = vmul.f32 %v3212, %v3297
  %v3473 = vmul.f32 %v3213, %v3297
  %v3474 = vmul.f32 %v3214, %v3297
  %v3475 = vmul.f32 %v3215, %v3297
  %v3476 = vmul.f32 %v3216, %v3297
  %v3477 = vmul.f32 %v3217, %v3297
  %v3478 = vmul.f32 %v3218, %v3297
  %v3479 = vmul.f32 %v3219, %v3297
  %v3480 = vmul.f32 %v3220, %v3297
  %v3481 = vmul.f32 %v3221, %v3297
  %v3482 = vmul.f32 %v3222, %v3297
  %v3483 = vmul.f32 %v3223, %v3297
  %v3484 = vmul.f32 %v3224, %v3297
  %v3485 = vmul.f32 %v3225, %v3297
  %v3486 = vmul.f32 %v3226, %v3297
  %v3487 = vmul.f32 %v3227, %v3297
  %v3488 = vmul.f32 %v3228, %v3297
  %v3489 = vmul.f32 %v3229, %v3297
  %v3490 = vmul.f32 %v3230, %v3297
  %v3491 = vmul.f32 %v3231, %v3297
  %v3492 = vmul.f32 %v3232, %v3297
  %v3493 = vmul.f32 %v3233, %v3297
  %v3494 = vmul.f32 %v3234, %v3297
  %v3495 = vmul.f32 %v3235, %v3297
  %v3496 = vmul.f32 %v3236, %v3297
  %v3497 = vmul.f32 %v3237, %v3297
  %v3498 = vmul.f32 %v3238, %v3297
  %v3499 = vmul.f32 %v3239, %v3297
  %v3500 = vmul.f32 %v3240, %v3297
  %v3501 = vmul.f32 %v3241, %v3297
  %v3502 = vmul.f32 %v3242, %v3297
  %v3503 = vmul.f32 %v3243, %v3297
  %v3504 = vmul.f32 %v3244, %v3297
  %v3505 = vmul.f32 %v3245, %v3297
  %v3506 = vmul.f32 %v3246, %v3297
  %v3507 = vmul.f32 %v3247, %v3297
  %v3508 = vmul.f32 %v3248, %v3297
  %v3509 = vmul.f32 %v3249, %v3297
  %v3510 = vmul.f32 %v3250, %v3297
  %v3511 = vmul.f32 %v3251, %v3297
  %v3512 = vmul.f32 %v3252, %v3297
  %v3513 = vmul.f32 %v3253, %v3297
  %v3514 = vmul.f32 %v3254, %v3297
  %v3515 = vmul.f32 %v3255, %v3297
  %v3516 = vmul.f32 %v3256, %v3297
  %v3517 = vmul.f32 %v3257, %v3297
  %v3518 = vmul.f32 %v3258, %v3297
  %v3519 = vmul.f32 %v3259, %v3297
  %v3520 = vmul.f32 %v3260, %v3297
  %v3521 = vmul.f32 %v3261, %v3297
  %v3522 = vmul.f32 %v3262, %v3297
  %v3523 = vmul.f32 %v3263, %v3297
  %v3524 = vmul.f32 %v3264, %v3297
  %v3525 = vmul.f32 %v3265, %v3297
  %v3526 = vmul.f32 %v3266, %v3297
  %v3527 = vmul.f32 %v3267, %v3297
  %v3528 = vmul.f32 %v3268, %v3297
  %v3529 = vmul.f32 %v3269, %v3297
  %v3530 = vmul.f32 %v3270, %v3297
  %v3531 = vmul.f32 %v3271, %v3297
  %v3532 = vmul.f32 %v3272, %v3297
  %v3533 = vmul.f32 %v3273, %v3297
  %v3534 = vmul.f32 %v3274, %v3297
  %v3535 = vmul.f32 %v3275, %v3297
  %v3536 = vmul.f32 %v3276, %v3297
  %v3537 = vmul.f32 %v3277, %v3297
  %v3538 = vmul.f32 %v3278, %v3297
  %v3539 = vmul.f32 %v3279, %v3297
  %v3540 = vmul.f32 %v3280, %v3297
  %v3541 = vmul.f32 %v3281, %v3297
  %v3542 = vmul.f32 %v3282, %v3297
  %v3543 = vmul.f32 %v3283, %v3297
  %v3544 = vmul.f32 %v3284, %v3297
  %v3545 = vmul.f32 %v3285, %v3297
  %v3546 = vmul.f32 %v3286, %v3297
  %v3547 = vmul.f32 %v3287, %v3297
  %v3548 = vmul.f32 %v3288, %v3297
  %v3549 = vmul.f32 %v3289, %v3297
  %v3550 = vmul.f32 %v3290, %v3297
  %v3551 = vmul.f32 %v3291, %v3297
  %v3552 = vmul.f32 %v3292, %v3297
  %v3553 = vmul.f32 %v3293, %v3297
  %v3554 = vmul.f32 %v3294, %v3297
  %v3555 = vld [vmem:[%s3] sm:$0x1]
  %v3557 = vperm.slane %v3555, 0
  %v3559 = vadd.f32 %v3299, %v3557
  %v3560 = vadd.f32 %v3300, %v3557
  %v3561 = vadd.f32 %v3301, %v3557
  %v3562 = vadd.f32 %v3302, %v3557
  %v3563 = vadd.f32 %v3303, %v3557
  %v3564 = vadd.f32 %v3304, %v3557
  %v3565 = vadd.f32 %v3305, %v3557
  %v3566 = vadd.f32 %v3306, %v3557
  %v3567 = vadd.f32 %v3307, %v3557
  %v3568 = vadd.f32 %v3308, %v3557
  %v3569 = vadd.f32 %v3309, %v3557
  %v3570 = vadd.f32 %v3310, %v3557
  %v3571 = vadd.f32 %v3311, %v3557
  %v3572 = vadd.f32 %v3312, %v3557
  %v3573 = vadd.f32 %v3313, %v3557
  %v3574 = vadd.f32 %v3314, %v3557
  %v3575 = vadd.f32 %v3315, %v3557
  %v3576 = vadd.f32 %v3316, %v3557
  %v3577 = vadd.f32 %v3317, %v3557
  %v3578 = vadd.f32 %v3318, %v3557
  %v3579 = vadd.f32 %v3319, %v3557
  %v3580 = vadd.f32 %v3320, %v3557
  %v3581 = vadd.f32 %v3321, %v3557
  %v3582 = vadd.f32 %v3322, %v3557
  %v3583 = vadd.f32 %v3323, %v3557
  %v3584 = vadd.f32 %v3324, %v3557
  %v3585 = vadd.f32 %v3325, %v3557
  %v3586 = vadd.f32 %v3326, %v3557
  %v3587 = vadd.f32 %v3327, %v3557
  %v3588 = vadd.f32 %v3328, %v3557
  %v3589 = vadd.f32 %v3329, %v3557
  %v3590 = vadd.f32 %v3330, %v3557
  %v3591 = vadd.f32 %v3331, %v3557
  %v3592 = vadd.f32 %v3332, %v3557
  %v3593 = vadd.f32 %v3333, %v3557
  %v3594 = vadd.f32 %v3334, %v3557
  %v3595 = vadd.f32 %v3335, %v3557
  %v3596 = vadd.f32 %v3336, %v3557
  %v3597 = vadd.f32 %v3337, %v3557
  %v3598 = vadd.f32 %v3338, %v3557
  %v3599 = vadd.f32 %v3339, %v3557
  %v3600 = vadd.f32 %v3340, %v3557
  %v3601 = vadd.f32 %v3341, %v3557
  %v3602 = vadd.f32 %v3342, %v3557
  %v3603 = vadd.f32 %v3343, %v3557
  %v3604 = vadd.f32 %v3344, %v3557
  %v3605 = vadd.f32 %v3345, %v3557
  %v3606 = vadd.f32 %v3346, %v3557
  %v3607 = vadd.f32 %v3347, %v3557
  %v3608 = vadd.f32 %v3348, %v3557
  %v3609 = vadd.f32 %v3349, %v3557
  %v3610 = vadd.f32 %v3350, %v3557
  %v3611 = vadd.f32 %v3351, %v3557
  %v3612 = vadd.f32 %v3352, %v3557
  %v3613 = vadd.f32 %v3353, %v3557
  %v3614 = vadd.f32 %v3354, %v3557
  %v3615 = vadd.f32 %v3355, %v3557
  %v3616 = vadd.f32 %v3356, %v3557
  %v3617 = vadd.f32 %v3357, %v3557
  %v3618 = vadd.f32 %v3358, %v3557
  %v3619 = vadd.f32 %v3359, %v3557
  %v3620 = vadd.f32 %v3360, %v3557
  %v3621 = vadd.f32 %v3361, %v3557
  %v3622 = vadd.f32 %v3362, %v3557
  %v3623 = vadd.f32 %v3363, %v3557
  %v3624 = vadd.f32 %v3364, %v3557
  %v3625 = vadd.f32 %v3365, %v3557
  %v3626 = vadd.f32 %v3366, %v3557
  %v3627 = vadd.f32 %v3367, %v3557
  %v3628 = vadd.f32 %v3368, %v3557
  %v3629 = vadd.f32 %v3369, %v3557
  %v3630 = vadd.f32 %v3370, %v3557
  %v3631 = vadd.f32 %v3371, %v3557
  %v3632 = vadd.f32 %v3372, %v3557
  %v3633 = vadd.f32 %v3373, %v3557
  %v3634 = vadd.f32 %v3374, %v3557
  %v3635 = vadd.f32 %v3375, %v3557
  %v3636 = vadd.f32 %v3376, %v3557
  %v3637 = vadd.f32 %v3377, %v3557
  %v3638 = vadd.f32 %v3378, %v3557
  %v3639 = vadd.f32 %v3379, %v3557
  %v3640 = vadd.f32 %v3380, %v3557
  %v3641 = vadd.f32 %v3381, %v3557
  %v3642 = vadd.f32 %v3382, %v3557
  %v3643 = vadd.f32 %v3383, %v3557
  %v3644 = vadd.f32 %v3384, %v3557
  %v3645 = vadd.f32 %v3385, %v3557
  %v3646 = vadd.f32 %v3386, %v3557
  %v3647 = vadd.f32 %v3387, %v3557
  %v3648 = vadd.f32 %v3388, %v3557
  %v3649 = vadd.f32 %v3389, %v3557
  %v3650 = vadd.f32 %v3390, %v3557
  %v3651 = vadd.f32 %v3391, %v3557
  %v3652 = vadd.f32 %v3392, %v3557
  %v3653 = vadd.f32 %v3393, %v3557
  %v3654 = vadd.f32 %v3394, %v3557
  %v3655 = vadd.f32 %v3395, %v3557
  %v3656 = vadd.f32 %v3396, %v3557
  %v3657 = vadd.f32 %v3397, %v3557
  %v3658 = vadd.f32 %v3398, %v3557
  %v3659 = vadd.f32 %v3399, %v3557
  %v3660 = vadd.f32 %v3400, %v3557
  %v3661 = vadd.f32 %v3401, %v3557
  %v3662 = vadd.f32 %v3402, %v3557
  %v3663 = vadd.f32 %v3403, %v3557
  %v3664 = vadd.f32 %v3404, %v3557
  %v3665 = vadd.f32 %v3405, %v3557
  %v3666 = vadd.f32 %v3406, %v3557
  %v3667 = vadd.f32 %v3407, %v3557
  %v3668 = vadd.f32 %v3408, %v3557
  %v3669 = vadd.f32 %v3409, %v3557
  %v3670 = vadd.f32 %v3410, %v3557
  %v3671 = vadd.f32 %v3411, %v3557
  %v3672 = vadd.f32 %v3412, %v3557
  %v3673 = vadd.f32 %v3413, %v3557
  %v3674 = vadd.f32 %v3414, %v3557
  %v3675 = vadd.f32 %v3415, %v3557
  %v3676 = vadd.f32 %v3416, %v3557
  %v3677 = vadd.f32 %v3417, %v3557
  %v3678 = vadd.f32 %v3418, %v3557
  %v3679 = vadd.f32 %v3419, %v3557
  %v3680 = vadd.f32 %v3420, %v3557
  %v3681 = vadd.f32 %v3421, %v3557
  %v3682 = vadd.f32 %v3422, %v3557
  %v3683 = vadd.f32 %v3423, %v3557
  %v3684 = vadd.f32 %v3424, %v3557
  %v3685 = vadd.f32 %v3425, %v3557
  %v3686 = vadd.f32 %v3426, %v3557
  %v3687 = vadd.f32 %v3427, %v3557
  %v3688 = vadd.f32 %v3428, %v3557
  %v3689 = vadd.f32 %v3429, %v3557
  %v3690 = vadd.f32 %v3430, %v3557
  %v3691 = vadd.f32 %v3431, %v3557
  %v3692 = vadd.f32 %v3432, %v3557
  %v3693 = vadd.f32 %v3433, %v3557
  %v3694 = vadd.f32 %v3434, %v3557
  %v3695 = vadd.f32 %v3435, %v3557
  %v3696 = vadd.f32 %v3436, %v3557
  %v3697 = vadd.f32 %v3437, %v3557
  %v3698 = vadd.f32 %v3438, %v3557
  %v3699 = vadd.f32 %v3439, %v3557
  %v3700 = vadd.f32 %v3440, %v3557
  %v3701 = vadd.f32 %v3441, %v3557
  %v3702 = vadd.f32 %v3442, %v3557
  %v3703 = vadd.f32 %v3443, %v3557
  %v3704 = vadd.f32 %v3444, %v3557
  %v3705 = vadd.f32 %v3445, %v3557
  %v3706 = vadd.f32 %v3446, %v3557
  %v3707 = vadd.f32 %v3447, %v3557
  %v3708 = vadd.f32 %v3448, %v3557
  %v3709 = vadd.f32 %v3449, %v3557
  %v3710 = vadd.f32 %v3450, %v3557
  %v3711 = vadd.f32 %v3451, %v3557
  %v3712 = vadd.f32 %v3452, %v3557
  %v3713 = vadd.f32 %v3453, %v3557
  %v3714 = vadd.f32 %v3454, %v3557
  %v3715 = vadd.f32 %v3455, %v3557
  %v3716 = vadd.f32 %v3456, %v3557
  %v3717 = vadd.f32 %v3457, %v3557
  %v3718 = vadd.f32 %v3458, %v3557
  %v3719 = vadd.f32 %v3459, %v3557
  %v3720 = vadd.f32 %v3460, %v3557
  %v3721 = vadd.f32 %v3461, %v3557
  %v3722 = vadd.f32 %v3462, %v3557
  %v3723 = vadd.f32 %v3463, %v3557
  %v3724 = vadd.f32 %v3464, %v3557
  %v3725 = vadd.f32 %v3465, %v3557
  %v3726 = vadd.f32 %v3466, %v3557
  %v3727 = vadd.f32 %v3467, %v3557
  %v3728 = vadd.f32 %v3468, %v3557
  %v3729 = vadd.f32 %v3469, %v3557
  %v3730 = vadd.f32 %v3470, %v3557
  %v3731 = vadd.f32 %v3471, %v3557
  %v3732 = vadd.f32 %v3472, %v3557
  %v3733 = vadd.f32 %v3473, %v3557
  %v3734 = vadd.f32 %v3474, %v3557
  %v3735 = vadd.f32 %v3475, %v3557
  %v3736 = vadd.f32 %v3476, %v3557
  %v3737 = vadd.f32 %v3477, %v3557
  %v3738 = vadd.f32 %v3478, %v3557
  %v3739 = vadd.f32 %v3479, %v3557
  %v3740 = vadd.f32 %v3480, %v3557
  %v3741 = vadd.f32 %v3481, %v3557
  %v3742 = vadd.f32 %v3482, %v3557
  %v3743 = vadd.f32 %v3483, %v3557
  %v3744 = vadd.f32 %v3484, %v3557
  %v3745 = vadd.f32 %v3485, %v3557
  %v3746 = vadd.f32 %v3486, %v3557
  %v3747 = vadd.f32 %v3487, %v3557
  %v3748 = vadd.f32 %v3488, %v3557
  %v3749 = vadd.f32 %v3489, %v3557
  %v3750 = vadd.f32 %v3490, %v3557
  %v3751 = vadd.f32 %v3491, %v3557
  %v3752 = vadd.f32 %v3492, %v3557
  %v3753 = vadd.f32 %v3493, %v3557
  %v3754 = vadd.f32 %v3494, %v3557
  %v3755 = vadd.f32 %v3495, %v3557
  %v3756 = vadd.f32 %v3496, %v3557
  %v3757 = vadd.f32 %v3497, %v3557
  %v3758 = vadd.f32 %v3498, %v3557
  %v3759 = vadd.f32 %v3499, %v3557
  %v3760 = vadd.f32 %v3500, %v3557
  %v3761 = vadd.f32 %v3501, %v3557
  %v3762 = vadd.f32 %v3502, %v3557
  %v3763 = vadd.f32 %v3503, %v3557
  %v3764 = vadd.f32 %v3504, %v3557
  %v3765 = vadd.f32 %v3505, %v3557
  %v3766 = vadd.f32 %v3506, %v3557
  %v3767 = vadd.f32 %v3507, %v3557
  %v3768 = vadd.f32 %v3508, %v3557
  %v3769 = vadd.f32 %v3509, %v3557
  %v3770 = vadd.f32 %v3510, %v3557
  %v3771 = vadd.f32 %v3511, %v3557
  %v3772 = vadd.f32 %v3512, %v3557
  %v3773 = vadd.f32 %v3513, %v3557
  %v3774 = vadd.f32 %v3514, %v3557
  %v3775 = vadd.f32 %v3515, %v3557
  %v3776 = vadd.f32 %v3516, %v3557
  %v3777 = vadd.f32 %v3517, %v3557
  %v3778 = vadd.f32 %v3518, %v3557
  %v3779 = vadd.f32 %v3519, %v3557
  %v3780 = vadd.f32 %v3520, %v3557
  %v3781 = vadd.f32 %v3521, %v3557
  %v3782 = vadd.f32 %v3522, %v3557
  %v3783 = vadd.f32 %v3523, %v3557
  %v3784 = vadd.f32 %v3524, %v3557
  %v3785 = vadd.f32 %v3525, %v3557
  %v3786 = vadd.f32 %v3526, %v3557
  %v3787 = vadd.f32 %v3527, %v3557
  %v3788 = vadd.f32 %v3528, %v3557
  %v3789 = vadd.f32 %v3529, %v3557
  %v3790 = vadd.f32 %v3530, %v3557
  %v3791 = vadd.f32 %v3531, %v3557
  %v3792 = vadd.f32 %v3532, %v3557
  %v3793 = vadd.f32 %v3533, %v3557
  %v3794 = vadd.f32 %v3534, %v3557
  %v3795 = vadd.f32 %v3535, %v3557
  %v3796 = vadd.f32 %v3536, %v3557
  %v3797 = vadd.f32 %v3537, %v3557
  %v3798 = vadd.f32 %v3538, %v3557
  %v3799 = vadd.f32 %v3539, %v3557
  %v3800 = vadd.f32 %v3540, %v3557
  %v3801 = vadd.f32 %v3541, %v3557
  %v3802 = vadd.f32 %v3542, %v3557
  %v3803 = vadd.f32 %v3543, %v3557
  %v3804 = vadd.f32 %v3544, %v3557
  %v3805 = vadd.f32 %v3545, %v3557
  %v3806 = vadd.f32 %v3546, %v3557
  %v3807 = vadd.f32 %v3547, %v3557
  %v3808 = vadd.f32 %v3548, %v3557
  %v3809 = vadd.f32 %v3549, %v3557
  %v3810 = vadd.f32 %v3550, %v3557
  %v3811 = vadd.f32 %v3551, %v3557
  %v3812 = vadd.f32 %v3552, %v3557
  %v3813 = vadd.f32 %v3553, %v3557
  %v3814 = vadd.f32 %v3554, %v3557
  %v3815 = vmax.f32 %v3559, 0.0
  %v3816 = vmax.f32 %v3560, 0.0
  %v3817 = vmax.f32 %v3561, 0.0
  %v3818 = vmax.f32 %v3562, 0.0
  %v3819 = vmax.f32 %v3563, 0.0
  %v3820 = vmax.f32 %v3564, 0.0
  %v3821 = vmax.f32 %v3565, 0.0
  %v3822 = vmax.f32 %v3566, 0.0
  %v3823 = vmax.f32 %v3567, 0.0
  %v3824 = vmax.f32 %v3568, 0.0
  %v3825 = vmax.f32 %v3569, 0.0
  %v3826 = vmax.f32 %v3570, 0.0
  %v3827 = vmax.f32 %v3571, 0.0
  %v3828 = vmax.f32 %v3572, 0.0
  %v3829 = vmax.f32 %v3573, 0.0
  %v3830 = vmax.f32 %v3574, 0.0
  %v3831 = vmax.f32 %v3575, 0.0
  %v3832 = vmax.f32 %v3576, 0.0
  %v3833 = vmax.f32 %v3577, 0.0
  %v3834 = vmax.f32 %v3578, 0.0
  %v3835 = vmax.f32 %v3579, 0.0
  %v3836 = vmax.f32 %v3580, 0.0
  %v3837 = vmax.f32 %v3581, 0.0
  %v3838 = vmax.f32 %v3582, 0.0
  %v3839 = vmax.f32 %v3583, 0.0
  %v3840 = vmax.f32 %v3584, 0.0
  %v3841 = vmax.f32 %v3585, 0.0
  %v3842 = vmax.f32 %v3586, 0.0
  %v3843 = vmax.f32 %v3587, 0.0
  %v3844 = vmax.f32 %v3588, 0.0
  %v3845 = vmax.f32 %v3589, 0.0
  %v3846 = vmax.f32 %v3590, 0.0
  %v3847 = vmax.f32 %v3591, 0.0
  %v3848 = vmax.f32 %v3592, 0.0
  %v3849 = vmax.f32 %v3593, 0.0
  %v3850 = vmax.f32 %v3594, 0.0
  %v3851 = vmax.f32 %v3595, 0.0
  %v3852 = vmax.f32 %v3596, 0.0
  %v3853 = vmax.f32 %v3597, 0.0
  %v3854 = vmax.f32 %v3598, 0.0
  %v3855 = vmax.f32 %v3599, 0.0
  %v3856 = vmax.f32 %v3600, 0.0
  %v3857 = vmax.f32 %v3601, 0.0
  %v3858 = vmax.f32 %v3602, 0.0
  %v3859 = vmax.f32 %v3603, 0.0
  %v3860 = vmax.f32 %v3604, 0.0
  %v3861 = vmax.f32 %v3605, 0.0
  %v3862 = vmax.f32 %v3606, 0.0
  %v3863 = vmax.f32 %v3607, 0.0
  %v3864 = vmax.f32 %v3608, 0.0
  %v3865 = vmax.f32 %v3609, 0.0
  %v3866 = vmax.f32 %v3610, 0.0
  %v3867 = vmax.f32 %v3611, 0.0
  %v3868 = vmax.f32 %v3612, 0.0
  %v3869 = vmax.f32 %v3613, 0.0
  %v3870 = vmax.f32 %v3614, 0.0
  %v3871 = vmax.f32 %v3615, 0.0
  %v3872 = vmax.f32 %v3616, 0.0
  %v3873 = vmax.f32 %v3617, 0.0
  %v3874 = vmax.f32 %v3618, 0.0
  %v3875 = vmax.f32 %v3619, 0.0
  %v3876 = vmax.f32 %v3620, 0.0
  %v3877 = vmax.f32 %v3621, 0.0
  %v3878 = vmax.f32 %v3622, 0.0
  %v3879 = vmax.f32 %v3623, 0.0
  %v3880 = vmax.f32 %v3624, 0.0
  %v3881 = vmax.f32 %v3625, 0.0
  %v3882 = vmax.f32 %v3626, 0.0
  %v3883 = vmax.f32 %v3627, 0.0
  %v3884 = vmax.f32 %v3628, 0.0
  %v3885 = vmax.f32 %v3629, 0.0
  %v3886 = vmax.f32 %v3630, 0.0
  %v3887 = vmax.f32 %v3631, 0.0
  %v3888 = vmax.f32 %v3632, 0.0
  %v3889 = vmax.f32 %v3633, 0.0
  %v3890 = vmax.f32 %v3634, 0.0
  %v3891 = vmax.f32 %v3635, 0.0
  %v3892 = vmax.f32 %v3636, 0.0
  %v3893 = vmax.f32 %v3637, 0.0
  %v3894 = vmax.f32 %v3638, 0.0
  %v3895 = vmax.f32 %v3639, 0.0
  %v3896 = vmax.f32 %v3640, 0.0
  %v3897 = vmax.f32 %v3641, 0.0
  %v3898 = vmax.f32 %v3642, 0.0
  %v3899 = vmax.f32 %v3643, 0.0
  %v3900 = vmax.f32 %v3644, 0.0
  %v3901 = vmax.f32 %v3645, 0.0
  %v3902 = vmax.f32 %v3646, 0.0
  %v3903 = vmax.f32 %v3647, 0.0
  %v3904 = vmax.f32 %v3648, 0.0
  %v3905 = vmax.f32 %v3649, 0.0
  %v3906 = vmax.f32 %v3650, 0.0
  %v3907 = vmax.f32 %v3651, 0.0
  %v3908 = vmax.f32 %v3652, 0.0
  %v3909 = vmax.f32 %v3653, 0.0
  %v3910 = vmax.f32 %v3654, 0.0
  %v3911 = vmax.f32 %v3655, 0.0
  %v3912 = vmax.f32 %v3656, 0.0
  %v3913 = vmax.f32 %v3657, 0.0
  %v3914 = vmax.f32 %v3658, 0.0
  %v3915 = vmax.f32 %v3659, 0.0
  %v3916 = vmax.f32 %v3660, 0.0
  %v3917 = vmax.f32 %v3661, 0.0
  %v3918 = vmax.f32 %v3662, 0.0
  %v3919 = vmax.f32 %v3663, 0.0
  %v3920 = vmax.f32 %v3664, 0.0
  %v3921 = vmax.f32 %v3665, 0.0
  %v3922 = vmax.f32 %v3666, 0.0
  %v3923 = vmax.f32 %v3667, 0.0
  %v3924 = vmax.f32 %v3668, 0.0
  %v3925 = vmax.f32 %v3669, 0.0
  %v3926 = vmax.f32 %v3670, 0.0
  %v3927 = vmax.f32 %v3671, 0.0
  %v3928 = vmax.f32 %v3672, 0.0
  %v3929 = vmax.f32 %v3673, 0.0
  %v3930 = vmax.f32 %v3674, 0.0
  %v3931 = vmax.f32 %v3675, 0.0
  %v3932 = vmax.f32 %v3676, 0.0
  %v3933 = vmax.f32 %v3677, 0.0
  %v3934 = vmax.f32 %v3678, 0.0
  %v3935 = vmax.f32 %v3679, 0.0
  %v3936 = vmax.f32 %v3680, 0.0
  %v3937 = vmax.f32 %v3681, 0.0
  %v3938 = vmax.f32 %v3682, 0.0
  %v3939 = vmax.f32 %v3683, 0.0
  %v3940 = vmax.f32 %v3684, 0.0
  %v3941 = vmax.f32 %v3685, 0.0
  %v3942 = vmax.f32 %v3686, 0.0
  %v3943 = vmax.f32 %v3687, 0.0
  %v3944 = vmax.f32 %v3688, 0.0
  %v3945 = vmax.f32 %v3689, 0.0
  %v3946 = vmax.f32 %v3690, 0.0
  %v3947 = vmax.f32 %v3691, 0.0
  %v3948 = vmax.f32 %v3692, 0.0
  %v3949 = vmax.f32 %v3693, 0.0
  %v3950 = vmax.f32 %v3694, 0.0
  %v3951 = vmax.f32 %v3695, 0.0
  %v3952 = vmax.f32 %v3696, 0.0
  %v3953 = vmax.f32 %v3697, 0.0
  %v3954 = vmax.f32 %v3698, 0.0
  %v3955 = vmax.f32 %v3699, 0.0
  %v3956 = vmax.f32 %v3700, 0.0
  %v3957 = vmax.f32 %v3701, 0.0
  %v3958 = vmax.f32 %v3702, 0.0
  %v3959 = vmax.f32 %v3703, 0.0
  %v3960 = vmax.f32 %v3704, 0.0
  %v3961 = vmax.f32 %v3705, 0.0
  %v3962 = vmax.f32 %v3706, 0.0
  %v3963 = vmax.f32 %v3707, 0.0
  %v3964 = vmax.f32 %v3708, 0.0
  %v3965 = vmax.f32 %v3709, 0.0
  %v3966 = vmax.f32 %v3710, 0.0
  %v3967 = vmax.f32 %v3711, 0.0
  %v3968 = vmax.f32 %v3712, 0.0
  %v3969 = vmax.f32 %v3713, 0.0
  %v3970 = vmax.f32 %v3714, 0.0
  %v3971 = vmax.f32 %v3715, 0.0
  %v3972 = vmax.f32 %v3716, 0.0
  %v3973 = vmax.f32 %v3717, 0.0
  %v3974 = vmax.f32 %v3718, 0.0
  %v3975 = vmax.f32 %v3719, 0.0
  %v3976 = vmax.f32 %v3720, 0.0
  %v3977 = vmax.f32 %v3721, 0.0
  %v3978 = vmax.f32 %v3722, 0.0
  %v3979 = vmax.f32 %v3723, 0.0
  %v3980 = vmax.f32 %v3724, 0.0
  %v3981 = vmax.f32 %v3725, 0.0
  %v3982 = vmax.f32 %v3726, 0.0
  %v3983 = vmax.f32 %v3727, 0.0
  %v3984 = vmax.f32 %v3728, 0.0
  %v3985 = vmax.f32 %v3729, 0.0
  %v3986 = vmax.f32 %v3730, 0.0
  %v3987 = vmax.f32 %v3731, 0.0
  %v3988 = vmax.f32 %v3732, 0.0
  %v3989 = vmax.f32 %v3733, 0.0
  %v3990 = vmax.f32 %v3734, 0.0
  %v3991 = vmax.f32 %v3735, 0.0
  %v3992 = vmax.f32 %v3736, 0.0
  %v3993 = vmax.f32 %v3737, 0.0
  %v3994 = vmax.f32 %v3738, 0.0
  %v3995 = vmax.f32 %v3739, 0.0
  %v3996 = vmax.f32 %v3740, 0.0
  %v3997 = vmax.f32 %v3741, 0.0
  %v3998 = vmax.f32 %v3742, 0.0
  %v3999 = vmax.f32 %v3743, 0.0
  %v4000 = vmax.f32 %v3744, 0.0
  %v4001 = vmax.f32 %v3745, 0.0
  %v4002 = vmax.f32 %v3746, 0.0
  %v4003 = vmax.f32 %v3747, 0.0
  %v4004 = vmax.f32 %v3748, 0.0
  %v4005 = vmax.f32 %v3749, 0.0
  %v4006 = vmax.f32 %v3750, 0.0
  %v4007 = vmax.f32 %v3751, 0.0
  %v4008 = vmax.f32 %v3752, 0.0
  %v4009 = vmax.f32 %v3753, 0.0
  %v4010 = vmax.f32 %v3754, 0.0
  %v4011 = vmax.f32 %v3755, 0.0
  %v4012 = vmax.f32 %v3756, 0.0
  %v4013 = vmax.f32 %v3757, 0.0
  %v4014 = vmax.f32 %v3758, 0.0
  %v4015 = vmax.f32 %v3759, 0.0
  %v4016 = vmax.f32 %v3760, 0.0
  %v4017 = vmax.f32 %v3761, 0.0
  %v4018 = vmax.f32 %v3762, 0.0
  %v4019 = vmax.f32 %v3763, 0.0
  %v4020 = vmax.f32 %v3764, 0.0
  %v4021 = vmax.f32 %v3765, 0.0
  %v4022 = vmax.f32 %v3766, 0.0
  %v4023 = vmax.f32 %v3767, 0.0
  %v4024 = vmax.f32 %v3768, 0.0
  %v4025 = vmax.f32 %v3769, 0.0
  %v4026 = vmax.f32 %v3770, 0.0
  %v4027 = vmax.f32 %v3771, 0.0
  %v4028 = vmax.f32 %v3772, 0.0
  %v4029 = vmax.f32 %v3773, 0.0
  %v4030 = vmax.f32 %v3774, 0.0
  %v4031 = vmax.f32 %v3775, 0.0
  %v4032 = vmax.f32 %v3776, 0.0
  %v4033 = vmax.f32 %v3777, 0.0
  %v4034 = vmax.f32 %v3778, 0.0
  %v4035 = vmax.f32 %v3779, 0.0
  %v4036 = vmax.f32 %v3780, 0.0
  %v4037 = vmax.f32 %v3781, 0.0
  %v4038 = vmax.f32 %v3782, 0.0
  %v4039 = vmax.f32 %v3783, 0.0
  %v4040 = vmax.f32 %v3784, 0.0
  %v4041 = vmax.f32 %v3785, 0.0
  %v4042 = vmax.f32 %v3786, 0.0
  %v4043 = vmax.f32 %v3787, 0.0
  %v4044 = vmax.f32 %v3788, 0.0
  %v4045 = vmax.f32 %v3789, 0.0
  %v4046 = vmax.f32 %v3790, 0.0
  %v4047 = vmax.f32 %v3791, 0.0
  %v4048 = vmax.f32 %v3792, 0.0
  %v4049 = vmax.f32 %v3793, 0.0
  %v4050 = vmax.f32 %v3794, 0.0
  %v4051 = vmax.f32 %v3795, 0.0
  %v4052 = vmax.f32 %v3796, 0.0
  %v4053 = vmax.f32 %v3797, 0.0
  %v4054 = vmax.f32 %v3798, 0.0
  %v4055 = vmax.f32 %v3799, 0.0
  %v4056 = vmax.f32 %v3800, 0.0
  %v4057 = vmax.f32 %v3801, 0.0
  %v4058 = vmax.f32 %v3802, 0.0
  %v4059 = vmax.f32 %v3803, 0.0
  %v4060 = vmax.f32 %v3804, 0.0
  %v4061 = vmax.f32 %v3805, 0.0
  %v4062 = vmax.f32 %v3806, 0.0
  %v4063 = vmax.f32 %v3807, 0.0
  %v4064 = vmax.f32 %v3808, 0.0
  %v4065 = vmax.f32 %v3809, 0.0
  %v4066 = vmax.f32 %v3810, 0.0
  %v4067 = vmax.f32 %v3811, 0.0
  %v4068 = vmax.f32 %v3812, 0.0
  %v4069 = vmax.f32 %v3813, 0.0
  %v4070 = vmax.f32 %v3814, 0.0
  %v4071 = vadd.f32 %v3815, %v3816
  %v4072 = vadd.f32 %v4071, %v3817
  %v4073 = vadd.f32 %v4072, %v3818
  %v4074 = vadd.f32 %v4073, %v3819
  %v4075 = vadd.f32 %v4074, %v3820
  %v4076 = vadd.f32 %v4075, %v3821
  %v4077 = vadd.f32 %v4076, %v3822
  %v4078 = vadd.f32 %v4077, %v3823
  %v4079 = vadd.f32 %v4078, %v3824
  %v4080 = vadd.f32 %v4079, %v3825
  %v4081 = vadd.f32 %v4080, %v3826
  %v4082 = vadd.f32 %v4081, %v3827
  %v4083 = vadd.f32 %v4082, %v3828
  %v4084 = vadd.f32 %v4083, %v3829
  %v4085 = vadd.f32 %v4084, %v3830
  %v4086 = vadd.f32 %v4085, %v3831
  %v4087 = vadd.f32 %v4086, %v3832
  %v4088 = vadd.f32 %v4087, %v3833
  %v4089 = vadd.f32 %v4088, %v3834
  %v4090 = vadd.f32 %v4089, %v3835
  %v4091 = vadd.f32 %v4090, %v3836
  %v4092 = vadd.f32 %v4091, %v3837
  %v4093 = vadd.f32 %v4092, %v3838
  %v4094 = vadd.f32 %v4093, %v3839
  %v4095 = vadd.f32 %v4094, %v3840
  %v4096 = vadd.f32 %v4095, %v3841
  %v4097 = vadd.f32 %v4096, %v3842
  %v4098 = vadd.f32 %v4097, %v3843
  %v4099 = vadd.f32 %v4098, %v3844
  %v4100 = vadd.f32 %v4099, %v3845
  %v4101 = vadd.f32 %v4100, %v3846
  %v4102 = vrot.slane %v4101, 4
  %v4103 = vadd.f32 %v4101, %v4102
  %v4104 = vrot.slane %v4103, 2
  %v4105 = vadd.f32 %v4103, %v4104
  %v4106 = vrot.slane %v4105, 1
  %v4107 = vadd.f32 %v4105, %v4106
  %v4108 = vadd.f32 %v3847, %v3848
  %v4109 = vadd.f32 %v4108, %v3849
  %v4110 = vadd.f32 %v4109, %v3850
  %v4111 = vadd.f32 %v4110, %v3851
  %v4112 = vadd.f32 %v4111, %v3852
  %v4113 = vadd.f32 %v4112, %v3853
  %v4114 = vadd.f32 %v4113, %v3854
  %v4115 = vadd.f32 %v4114, %v3855
  %v4116 = vadd.f32 %v4115, %v3856
  %v4117 = vadd.f32 %v4116, %v3857
  %v4118 = vadd.f32 %v4117, %v3858
  %v4119 = vadd.f32 %v4118, %v3859
  %v4120 = vadd.f32 %v4119, %v3860
  %v4121 = vadd.f32 %v4120, %v3861
  %v4122 = vadd.f32 %v4121, %v3862
  %v4123 = vadd.f32 %v4122, %v3863
  %v4124 = vadd.f32 %v4123, %v3864
  %v4125 = vadd.f32 %v4124, %v3865
  %v4126 = vadd.f32 %v4125, %v3866
  %v4127 = vadd.f32 %v4126, %v3867
  %v4128 = vadd.f32 %v4127, %v3868
  %v4129 = vadd.f32 %v4128, %v3869
  %v4130 = vadd.f32 %v4129, %v3870
  %v4131 = vadd.f32 %v4130, %v3871
  %v4132 = vadd.f32 %v4131, %v3872
  %v4133 = vadd.f32 %v4132, %v3873
  %v4134 = vadd.f32 %v4133, %v3874
  %v4135 = vadd.f32 %v4134, %v3875
  %v4136 = vadd.f32 %v4135, %v3876
  %v4137 = vadd.f32 %v4136, %v3877
  %v4138 = vadd.f32 %v4137, %v3878
  %v4139 = vrot.slane %v4138, 4
  %v4140 = vadd.f32 %v4138, %v4139
  %v4141 = vrot.slane %v4140, 2
  %v4142 = vadd.f32 %v4140, %v4141
  %v4143 = vrot.slane %v4142, 1
  %v4144 = vadd.f32 %v4142, %v4143
  %v4145 = vadd.f32 %v3879, %v3880
  %v4146 = vadd.f32 %v4145, %v3881
  %v4147 = vadd.f32 %v4146, %v3882
  %v4148 = vadd.f32 %v4147, %v3883
  %v4149 = vadd.f32 %v4148, %v3884
  %v4150 = vadd.f32 %v4149, %v3885
  %v4151 = vadd.f32 %v4150, %v3886
  %v4152 = vadd.f32 %v4151, %v3887
  %v4153 = vadd.f32 %v4152, %v3888
  %v4154 = vadd.f32 %v4153, %v3889
  %v4155 = vadd.f32 %v4154, %v3890
  %v4156 = vadd.f32 %v4155, %v3891
  %v4157 = vadd.f32 %v4156, %v3892
  %v4158 = vadd.f32 %v4157, %v3893
  %v4159 = vadd.f32 %v4158, %v3894
  %v4160 = vadd.f32 %v4159, %v3895
  %v4161 = vadd.f32 %v4160, %v3896
  %v4162 = vadd.f32 %v4161, %v3897
  %v4163 = vadd.f32 %v4162, %v3898
  %v4164 = vadd.f32 %v4163, %v3899
  %v4165 = vadd.f32 %v4164, %v3900
  %v4166 = vadd.f32 %v4165, %v3901
  %v4167 = vadd.f32 %v4166, %v3902
  %v4168 = vadd.f32 %v4167, %v3903
  %v4169 = vadd.f32 %v4168, %v3904
  %v4170 = vadd.f32 %v4169, %v3905
  %v4171 = vadd.f32 %v4170, %v3906
  %v4172 = vadd.f32 %v4171, %v3907
  %v4173 = vadd.f32 %v4172, %v3908
  %v4174 = vadd.f32 %v4173, %v3909
  %v4175 = vadd.f32 %v4174, %v3910
  %v4176 = vrot.slane %v4175, 4
  %v4177 = vadd.f32 %v4175, %v4176
  %v4178 = vrot.slane %v4177, 2
  %v4179 = vadd.f32 %v4177, %v4178
  %v4180 = vrot.slane %v4179, 1
  %v4181 = vadd.f32 %v4179, %v4180
  %v4182 = vadd.f32 %v3911, %v3912
  %v4183 = vadd.f32 %v4182, %v3913
  %v4184 = vadd.f32 %v4183, %v3914
  %v4185 = vadd.f32 %v4184, %v3915
  %v4186 = vadd.f32 %v4185, %v3916
  %v4187 = vadd.f32 %v4186, %v3917
  %v4188 = vadd.f32 %v4187, %v3918
  %v4189 = vadd.f32 %v4188, %v3919
  %v4190 = vadd.f32 %v4189, %v3920
  %v4191 = vadd.f32 %v4190, %v3921
  %v4192 = vadd.f32 %v4191, %v3922
  %v4193 = vadd.f32 %v4192, %v3923
  %v4194 = vadd.f32 %v4193, %v3924
  %v4195 = vadd.f32 %v4194, %v3925
  %v4196 = vadd.f32 %v4195, %v3926
  %v4197 = vadd.f32 %v4196, %v3927
  %v4198 = vadd.f32 %v4197, %v3928
  %v4199 = vadd.f32 %v4198, %v3929
  %v4200 = vadd.f32 %v4199, %v3930
  %v4201 = vadd.f32 %v4200, %v3931
  %v4202 = vadd.f32 %v4201, %v3932
  %v4203 = vadd.f32 %v4202, %v3933
  %v4204 = vadd.f32 %v4203, %v3934
  %v4205 = vadd.f32 %v4204, %v3935
  %v4206 = vadd.f32 %v4205, %v3936
  %v4207 = vadd.f32 %v4206, %v3937
  %v4208 = vadd.f32 %v4207, %v3938
  %v4209 = vadd.f32 %v4208, %v3939
  %v4210 = vadd.f32 %v4209, %v3940
  %v4211 = vadd.f32 %v4210, %v3941
  %v4212 = vadd.f32 %v4211, %v3942
  %v4213 = vrot.slane %v4212, 4
  %v4214 = vadd.f32 %v4212, %v4213
  %v4215 = vrot.slane %v4214, 2
  %v4216 = vadd.f32 %v4214, %v4215
  %v4217 = vrot.slane %v4216, 1
  %v4218 = vadd.f32 %v4216, %v4217
  %v4219 = vadd.f32 %v3943, %v3944
  %v4220 = vadd.f32 %v4219, %v3945
  %v4221 = vadd.f32 %v4220, %v3946
  %v4222 = vadd.f32 %v4221, %v3947
  %v4223 = vadd.f32 %v4222, %v3948
  %v4224 = vadd.f32 %v4223, %v3949
  %v4225 = vadd.f32 %v4224, %v3950
  %v4226 = vadd.f32 %v4225, %v3951
  %v4227 = vadd.f32 %v4226, %v3952
  %v4228 = vadd.f32 %v4227, %v3953
  %v4229 = vadd.f32 %v4228, %v3954
  %v4230 = vadd.f32 %v4229, %v3955
  %v4231 = vadd.f32 %v4230, %v3956
  %v4232 = vadd.f32 %v4231, %v3957
  %v4233 = vadd.f32 %v4232, %v3958
  %v4234 = vadd.f32 %v4233, %v3959
  %v4235 = vadd.f32 %v4234, %v3960
  %v4236 = vadd.f32 %v4235, %v3961
  %v4237 = vadd.f32 %v4236, %v3962
  %v4238 = vadd.f32 %v4237, %v3963
  %v4239 = vadd.f32 %v4238, %v3964
  %v4240 = vadd.f32 %v4239, %v3965
  %v4241 = vadd.f32 %v4240, %v3966
  %v4242 = vadd.f32 %v4241, %v3967
  %v4243 = vadd.f32 %v4242, %v3968
  %v4244 = vadd.f32 %v4243, %v3969
  %v4245 = vadd.f32 %v4244, %v3970
  %v4246 = vadd.f32 %v4245, %v3971
  %v4247 = vadd.f32 %v4246, %v3972
  %v4248 = vadd.f32 %v4247, %v3973
  %v4249 = vadd.f32 %v4248, %v3974
  %v4250 = vrot.slane %v4249, 4
  %v4251 = vadd.f32 %v4249, %v4250
  %v4252 = vrot.slane %v4251, 2
  %v4253 = vadd.f32 %v4251, %v4252
  %v4254 = vrot.slane %v4253, 1
  %v4255 = vadd.f32 %v4253, %v4254
  %v4256 = vadd.f32 %v3975, %v3976
  %v4257 = vadd.f32 %v4256, %v3977
  %v4258 = vadd.f32 %v4257, %v3978
  %v4259 = vadd.f32 %v4258, %v3979
  %v4260 = vadd.f32 %v4259, %v3980
  %v4261 = vadd.f32 %v4260, %v3981
  %v4262 = vadd.f32 %v4261, %v3982
  %v4263 = vadd.f32 %v4262, %v3983
  %v4264 = vadd.f32 %v4263, %v3984
  %v4265 = vadd.f32 %v4264, %v3985
  %v4266 = vadd.f32 %v4265, %v3986
  %v4267 = vadd.f32 %v4266, %v3987
  %v4268 = vadd.f32 %v4267, %v3988
  %v4269 = vadd.f32 %v4268, %v3989
  %v4270 = vadd.f32 %v4269, %v3990
  %v4271 = vadd.f32 %v4270, %v3991
  %v4272 = vadd.f32 %v4271, %v3992
  %v4273 = vadd.f32 %v4272, %v3993
  %v4274 = vadd.f32 %v4273, %v3994
  %v4275 = vadd.f32 %v4274, %v3995
  %v4276 = vadd.f32 %v4275, %v3996
  %v4277 = vadd.f32 %v4276, %v3997
  %v4278 = vadd.f32 %v4277, %v3998
  %v4279 = vadd.f32 %v4278, %v3999
  %v4280 = vadd.f32 %v4279, %v4000
  %v4281 = vadd.f32 %v4280, %v4001
  %v4282 = vadd.f32 %v4281, %v4002
  %v4283 = vadd.f32 %v4282, %v4003
  %v4284 = vadd.f32 %v4283, %v4004
  %v4285 = vadd.f32 %v4284, %v4005
  %v4286 = vadd.f32 %v4285, %v4006
  %v4287 = vrot.slane %v4286, 4
  %v4288 = vadd.f32 %v4286, %v4287
  %v4289 = vrot.slane %v4288, 2
  %v4290 = vadd.f32 %v4288, %v4289
  %v4291 = vrot.slane %v4290, 1
  %v4292 = vadd.f32 %v4290, %v4291
  %v4293 = vadd.f32 %v4007, %v4008
  %v4294 = vadd.f32 %v4293, %v4009
  %v4295 = vadd.f32 %v4294, %v4010
  %v4296 = vadd.f32 %v4295, %v4011
  %v4297 = vadd.f32 %v4296, %v4012
  %v4298 = vadd.f32 %v4297, %v4013
  %v4299 = vadd.f32 %v4298, %v4014
  %v4300 = vadd.f32 %v4299, %v4015
  %v4301 = vadd.f32 %v4300, %v4016
  %v4302 = vadd.f32 %v4301, %v4017
  %v4303 = vadd.f32 %v4302, %v4018
  %v4304 = vadd.f32 %v4303, %v4019
  %v4305 = vadd.f32 %v4304, %v4020
  %v4306 = vadd.f32 %v4305, %v4021
  %v4307 = vadd.f32 %v4306, %v4022
  %v4308 = vadd.f32 %v4307, %v4023
  %v4309 = vadd.f32 %v4308, %v4024
  %v4310 = vadd.f32 %v4309, %v4025
  %v4311 = vadd.f32 %v4310, %v4026
  %v4312 = vadd.f32 %v4311, %v4027
  %v4313 = vadd.f32 %v4312, %v4028
  %v4314 = vadd.f32 %v4313, %v4029
  %v4315 = vadd.f32 %v4314, %v4030
  %v4316 = vadd.f32 %v4315, %v4031
  %v4317 = vadd.f32 %v4316, %v4032
  %v4318 = vadd.f32 %v4317, %v4033
  %v4319 = vadd.f32 %v4318, %v4034
  %v4320 = vadd.f32 %v4319, %v4035
  %v4321 = vadd.f32 %v4320, %v4036
  %v4322 = vadd.f32 %v4321, %v4037
  %v4323 = vadd.f32 %v4322, %v4038
  %v4324 = vrot.slane %v4323, 4
  %v4325 = vadd.f32 %v4323, %v4324
  %v4326 = vrot.slane %v4325, 2
  %v4327 = vadd.f32 %v4325, %v4326
  %v4328 = vrot.slane %v4327, 1
  %v4329 = vadd.f32 %v4327, %v4328
  %v4330 = vadd.f32 %v4039, %v4040
  %v4331 = vadd.f32 %v4330, %v4041
  %v4332 = vadd.f32 %v4331, %v4042
  %v4333 = vadd.f32 %v4332, %v4043
  %v4334 = vadd.f32 %v4333, %v4044
  %v4335 = vadd.f32 %v4334, %v4045
  %v4336 = vadd.f32 %v4335, %v4046
  %v4337 = vadd.f32 %v4336, %v4047
  %v4338 = vadd.f32 %v4337, %v4048
  %v4339 = vadd.f32 %v4338, %v4049
  %v4340 = vadd.f32 %v4339, %v4050
  %v4341 = vadd.f32 %v4340, %v4051
  %v4342 = vadd.f32 %v4341, %v4052
  %v4343 = vadd.f32 %v4342, %v4053
  %v4344 = vadd.f32 %v4343, %v4054
  %v4345 = vadd.f32 %v4344, %v4055
  %v4346 = vadd.f32 %v4345, %v4056
  %v4347 = vadd.f32 %v4346, %v4057
  %v4348 = vadd.f32 %v4347, %v4058
  %v4349 = vadd.f32 %v4348, %v4059
  %v4350 = vadd.f32 %v4349, %v4060
  %v4351 = vadd.f32 %v4350, %v4061
  %v4352 = vadd.f32 %v4351, %v4062
  %v4353 = vadd.f32 %v4352, %v4063
  %v4354 = vadd.f32 %v4353, %v4064
  %v4355 = vadd.f32 %v4354, %v4065
  %v4356 = vadd.f32 %v4355, %v4066
  %v4357 = vadd.f32 %v4356, %v4067
  %v4358 = vadd.f32 %v4357, %v4068
  %v4359 = vadd.f32 %v4358, %v4069
  %v4360 = vadd.f32 %v4359, %v4070
  %v4361 = vrot.slane %v4360, 4
  %v4362 = vadd.f32 %v4360, %v4361
  %v4363 = vrot.slane %v4362, 2
  %v4364 = vadd.f32 %v4362, %v4363
  %v4365 = vrot.slane %v4364, 1
  %v4366 = vadd.f32 %v4364, %v4365
  %v4367 = vrcp.pop 256.0
  %v4368 = vmul.f32 256.0, %v4367
  %v4369 = vsub.f32 1.0, %v4368
  %v4370 = vmul.f32 %v4367, %v4369
  %v4371 = vadd.f32 %v4367, %v4370
  %vm4372 = vweird.f32 %v4367
  %v4373 = vsel %vm4372, %v4367, %v4371
  %v4374 = vmul.f32 %v4107, %v4373
  %v4375 = vmul.f32 %v4144, %v4373
  %v4376 = vmul.f32 %v4181, %v4373
  %v4377 = vmul.f32 %v4218, %v4373
  %v4378 = vmul.f32 %v4255, %v4373
  %v4379 = vmul.f32 %v4292, %v4373
  %v4380 = vmul.f32 %v4329, %v4373
  %v4381 = vmul.f32 %v4366, %v4373
  %v4382 = vpack.c.bf16 %v4374, %v4374
  %v4383 = vpack.c.bf16 %v4375, %v4375
  %v4384 = vpack.c.bf16 %v4376, %v4376
  %v4385 = vpack.c.bf16 %v4377, %v4377
  %v4386 = vpack.c.bf16 %v4378, %v4378
  %v4387 = vpack.c.bf16 %v4379, %v4379
  %v4388 = vpack.c.bf16 %v4380, %v4380
  %v4389 = vpack.c.bf16 %v4381, %v4381
  %v4390 = vld [vmem:[%s4] sm:$0xff]
  %v4391 = vld [vmem:[%s4 + $0x8] sm:$0xff]
  %v4392 = vld [vmem:[%s4 + $0x10] sm:$0xff]
  %v4393 = vld [vmem:[%s4 + $0x18] sm:$0xff]
  %v4394 = vld [vmem:[%s4 + $0x20] sm:$0xff]
  %v4395 = vld [vmem:[%s4 + $0x28] sm:$0xff]
  %v4396 = vld [vmem:[%s4 + $0x30] sm:$0xff]
  %v4397 = vld [vmem:[%s4 + $0x38] sm:$0xff]
  %v4398 = vld [vmem:[%s4 + $0x40] sm:$0xff]
  %v4399 = vld [vmem:[%s4 + $0x48] sm:$0xff]
  %v4400 = vld [vmem:[%s4 + $0x50] sm:$0xff]
  %v4401 = vld [vmem:[%s4 + $0x58] sm:$0xff]
  %v4402 = vld [vmem:[%s4 + $0x60] sm:$0xff]
  %v4403 = vld [vmem:[%s4 + $0x68] sm:$0xff]
  %v4404 = vld [vmem:[%s4 + $0x70] sm:$0xff]
  %v4405 = vld [vmem:[%s4 + $0x78] sm:$0xff]
  %v4414 = vunpack.c.l.b16 %v4382
  %v4415 = vunpack.c.l.b16 %v4383
  %v4416 = vunpack.c.l.b16 %v4384
  %v4417 = vunpack.c.l.b16 %v4385
  %v4418 = vunpack.c.l.b16 %v4386
  %v4419 = vunpack.c.l.b16 %v4387
  %v4420 = vunpack.c.l.b16 %v4388
  %v4421 = vunpack.c.l.b16 %v4389
  %vm4422 = vcmask 1041409
  %v4423 = vsel %vm4422, %v4415, %v4414
  %vm4424 = vcmask 1042434
  %v4425 = vsel %vm4424, %v4416, %v4423
  %vm4426 = vcmask 1043459
  %v4427 = vsel %vm4426, %v4417, %v4425
  %vm4428 = vcmask 1044484
  %v4429 = vsel %vm4428, %v4418, %v4427
  %vm4430 = vcmask 1045509
  %v4431 = vsel %vm4430, %v4419, %v4429
  %vm4432 = vcmask 1046534
  %v4433 = vsel %vm4432, %v4420, %v4431
  %vm4434 = vcmask 1047559
  %v4435 = vsel %vm4434, %v4421, %v4433
  %v4436 = vpack.c.b16 %v4435, %v4435
  %v4454 = vunpack.c.l.b16 %v4390
  %v4455 = vunpack.c.h.b16 %v4390
  %v4456 = vunpack.c.l.b16 %v4391
  %v4457 = vunpack.c.h.b16 %v4391
  %v4458 = vunpack.c.l.b16 %v4392
  %v4459 = vunpack.c.h.b16 %v4392
  %v4460 = vunpack.c.l.b16 %v4393
  %v4461 = vunpack.c.h.b16 %v4393
  %v4462 = vunpack.c.l.b16 %v4394
  %v4463 = vunpack.c.h.b16 %v4394
  %v4464 = vunpack.c.l.b16 %v4395
  %v4465 = vunpack.c.h.b16 %v4395
  %v4466 = vunpack.c.l.b16 %v4396
  %v4467 = vunpack.c.h.b16 %v4396
  %v4468 = vunpack.c.l.b16 %v4397
  %v4469 = vunpack.c.h.b16 %v4397
  %v4470 = vunpack.c.l.b16 %v4398
  %v4471 = vunpack.c.h.b16 %v4398
  %v4472 = vunpack.c.l.b16 %v4399
  %v4473 = vunpack.c.h.b16 %v4399
  %v4474 = vunpack.c.l.b16 %v4400
  %v4475 = vunpack.c.h.b16 %v4400
  %v4476 = vunpack.c.l.b16 %v4401
  %v4477 = vunpack.c.h.b16 %v4401
  %v4478 = vunpack.c.l.b16 %v4402
  %v4479 = vunpack.c.h.b16 %v4402
  %v4480 = vunpack.c.l.b16 %v4403
  %v4481 = vunpack.c.h.b16 %v4403
  %v4482 = vunpack.c.l.b16 %v4404
  %v4483 = vunpack.c.h.b16 %v4404
  %v4484 = vunpack.c.l.b16 %v4405
  %v4485 = vunpack.c.h.b16 %v4405
  %v4486 = vpack.c.b16 %v4456, %v4454
  %v4487 = vpack.c.b16 %v4457, %v4455
  %v4488 = vpack.c.b16 %v4460, %v4458
  %v4489 = vpack.c.b16 %v4461, %v4459
  %v4490 = vpack.c.b16 %v4464, %v4462
  %v4491 = vpack.c.b16 %v4465, %v4463
  %v4492 = vpack.c.b16 %v4468, %v4466
  %v4493 = vpack.c.b16 %v4469, %v4467
  %v4494 = vpack.c.b16 %v4472, %v4470
  %v4495 = vpack.c.b16 %v4473, %v4471
  %v4496 = vpack.c.b16 %v4476, %v4474
  %v4497 = vpack.c.b16 %v4477, %v4475
  %v4498 = vpack.c.b16 %v4480, %v4478
  %v4499 = vpack.c.b16 %v4481, %v4479
  %v4500 = vpack.c.b16 %v4484, %v4482
  %v4501 = vpack.c.b16 %v4485, %v4483
  %4518 = vmatpush.bf16.msra.mxu0 %v4500
  %4519 = vmatpush.bf16.msra.mxu0 %v4498
  %4520 = vmatpush.bf16.msra.mxu0 %v4496
  %4521 = vmatpush.bf16.msra.mxu0 %v4494
  %4522 = vmatpush.bf16.msra.mxu0 %v4492
  %4523 = vmatpush.bf16.msra.mxu0 %v4490
  %4524 = vmatpush.bf16.msra.mxu0 %v4488
  %4525 = vmatpush.bf16.msra.mxu0 %v4486
  %4526 = vmatmul.bf16.gmra.mxu0 %v4436
  %v4527 = vpop.f32.mrf.mxu0
  %v4528 = vadd.f32 0.0, %v4527
  %v4529 = vpop.f32.mrf.mxu0
  %4530 = vdwg.mxu0
  %4531 = vmatpush.bf16.msra.mxu0 %v4501
  %4532 = vmatpush.bf16.msra.mxu0 %v4499
  %4533 = vmatpush.bf16.msra.mxu0 %v4497
  %4534 = vmatpush.bf16.msra.mxu0 %v4495
  %4535 = vmatpush.bf16.msra.mxu0 %v4493
  %4536 = vmatpush.bf16.msra.mxu0 %v4491
  %4537 = vmatpush.bf16.msra.mxu0 %v4489
  %4538 = vmatpush.bf16.msra.mxu0 %v4487
  %4539 = vmatmul.bf16.gmra.mxu0 %v4436
  %v4540 = vpop.f32.mrf.mxu0
  %v4541 = vadd.f32 0.0, %v4540
  %v4542 = vpop.f32.mrf.mxu0
  %4543 = vdwg.mxu0
  %v4544 = vrot.slane %v4528, 4
  %v4545 = vadd.f32 %v4528, %v4544
  %v4546 = vrot.slane %v4545, 2
  %v4547 = vadd.f32 %v4545, %v4546
  %v4548 = vrot.slane %v4547, 1
  %v4549 = vadd.f32 %v4547, %v4548
  %v4550 = vrot.slane %v4541, 4
  %v4551 = vadd.f32 %v4541, %v4550
  %v4552 = vrot.slane %v4551, 2
  %v4553 = vadd.f32 %v4551, %v4552
  %v4554 = vrot.slane %v4553, 1
  %v4555 = vadd.f32 %v4553, %v4554
  %v4556 = vrcp.pop 8.0
  %v4557 = vmul.f32 8.0, %v4556
  %v4558 = vsub.f32 1.0, %v4557
  %v4559 = vmul.f32 %v4556, %v4558
  %v4560 = vadd.f32 %v4556, %v4559
  %vm4561 = vweird.f32 %v4556
  %v4562 = vsel %vm4561, %v4556, %v4560
  %v4563 = vmul.f32 %v4549, %v4562
  %v4564 = vmul.f32 %v4555, %v4562
  %v4565 = vsub.f32 %v4528, %v4563
  %v4566 = vsub.f32 %v4541, %v4564
  %v4567 = vmul.f32 %v4565, %v4565
  %v4568 = vmul.f32 %v4566, %v4566
  %v4569 = vrot.slane %v4567, 4
  %v4570 = vadd.f32 %v4567, %v4569
  %v4571 = vrot.slane %v4570, 2
  %v4572 = vadd.f32 %v4570, %v4571
  %v4573 = vrot.slane %v4572, 1
  %v4574 = vadd.f32 %v4572, %v4573
  %v4575 = vrot.slane %v4568, 4
  %v4576 = vadd.f32 %v4568, %v4575
  %v4577 = vrot.slane %v4576, 2
  %v4578 = vadd.f32 %v4576, %v4577
  %v4579 = vrot.slane %v4578, 1
  %v4580 = vadd.f32 %v4578, %v4579
  %v4581 = vmul.f32 %v4574, %v4562
  %v4582 = vmul.f32 %v4580, %v4562
  %v4583 = vadd.f32 %v4581, 1e-05
  %v4584 = vadd.f32 %v4582, 1e-05
  %v4585 = vrsqrt.pop %v4583
  %v4586 = vmul.f32 %v4585, %v4583
  %v4587 = vmul.f32 %v4586, %v4585
  %v4588 = vmul.f32 0.5, %v4587
  %v4589 = vsub.f32 1.5, %v4588
  %v4590 = vmul.f32 %v4585, %v4589
  %vm4591 = vweird.f32 %v4583
  %vm4592 = vweird.f32 %v4585
  %vm4593 = vmor %vm4591, %vm4592
  %v4594 = vsel %vm4593, %v4585, %v4590
  %v4595 = vrsqrt.pop %v4584
  %v4596 = vmul.f32 %v4595, %v4584
  %v4597 = vmul.f32 %v4596, %v4595
  %v4598 = vmul.f32 0.5, %v4597
  %v4599 = vsub.f32 1.5, %v4598
  %v4600 = vmul.f32 %v4595, %v4599
  %vm4601 = vweird.f32 %v4584
  %vm4602 = vweird.f32 %v4595
  %vm4603 = vmor %vm4601, %vm4602
  %v4604 = vsel %vm4603, %v4595, %v4600
  %v4605 = vmul.f32 %v4565, %v4594
  %v4606 = vmul.f32 %v4566, %v4604
  %v4607 = vld [vmem:[%s5] sm:$0x3]
  %v4609 = vperm.slane %v4607, 0
  %v4610 = vperm.slane %v4607, 1
  %v4613 = vmul.f32 %v4605, %v4609
  %v4614 = vmul.f32 %v4606, %v4610
  %v4615 = vld [vmem:[%s6] sm:$0x3]
  %v4617 = vperm.slane %v4615, 0
  %v4618 = vperm.slane %v4615, 1
  %v4621 = vadd.f32 %v4613, %v4617
  %v4622 = vadd.f32 %v4614, %v4618
  %v4623 = vmax.f32 %v4621, 0.0
  %v4624 = vmax.f32 %v4622, 0.0
  %v4625 = vpack.c.bf16 %v4623, %v4623
  %v4626 = vpack.c.bf16 %v4624, %v4624
  %v4627 = vld [vmem:[%s7] sm:$0xf]
  %v4628 = vld [vmem:[%s7 + $0x4] sm:$0xf]
  %v4629 = vld [vmem:[%s7 + $0x8] sm:$0xf]
  %v4630 = vld [vmem:[%s7 + $0xc] sm:$0xf]
  %v4631 = vld [vmem:[%s7 + $0x10] sm:$0xf]
  %v4632 = vld [vmem:[%s7 + $0x14] sm:$0xf]
  %v4633 = vld [vmem:[%s7 + $0x18] sm:$0xf]
  %v4634 = vld [vmem:[%s7 + $0x1c] sm:$0xf]
  %v4635 = vld [vmem:[%s7 + $0x20] sm:$0xf]
  %v4636 = vld [vmem:[%s7 + $0x24] sm:$0xf]
  %v4637 = vld [vmem:[%s7 + $0x28] sm:$0xf]
  %v4638 = vld [vmem:[%s7 + $0x2c] sm:$0xf]
  %v4639 = vld [vmem:[%s7 + $0x30] sm:$0xf]
  %v4640 = vld [vmem:[%s7 + $0x34] sm:$0xf]
  %v4641 = vld [vmem:[%s7 + $0x38] sm:$0xf]
  %v4642 = vld [vmem:[%s7 + $0x3c] sm:$0xf]
  %v4643 = vld [vmem:[%s7 + $0x40] sm:$0xf]
  %v4644 = vld [vmem:[%s7 + $0x44] sm:$0xf]
  %v4645 = vld [vmem:[%s7 + $0x48] sm:$0xf]
  %v4646 = vld [vmem:[%s7 + $0x4c] sm:$0xf]
  %v4647 = vld [vmem:[%s7 + $0x50] sm:$0xf]
  %v4648 = vld [vmem:[%s7 + $0x54] sm:$0xf]
  %v4649 = vld [vmem:[%s7 + $0x58] sm:$0xf]
  %v4650 = vld [vmem:[%s7 + $0x5c] sm:$0xf]
  %v4651 = vld [vmem:[%s7 + $0x60] sm:$0xf]
  %v4652 = vld [vmem:[%s7 + $0x64] sm:$0xf]
  %v4653 = vld [vmem:[%s7 + $0x68] sm:$0xf]
  %v4654 = vld [vmem:[%s7 + $0x6c] sm:$0xf]
  %v4655 = vld [vmem:[%s7 + $0x70] sm:$0xf]
  %v4656 = vld [vmem:[%s7 + $0x74] sm:$0xf]
  %v4657 = vld [vmem:[%s7 + $0x78] sm:$0xf]
  %v4658 = vld [vmem:[%s7 + $0x7c] sm:$0xf]
  %v4659 = vld [vmem:[%s8] sm:$0x1]
  %v4661 = vperm.slane %v4659, 0
  %v4695 = vunpack.c.l.b16 %v4627
  %v4696 = vunpack.c.l.b16 %v4628
  %v4697 = vunpack.c.l.b16 %v4629
  %v4698 = vunpack.c.l.b16 %v4630
  %v4699 = vunpack.c.l.b16 %v4631
  %v4700 = vunpack.c.l.b16 %v4632
  %v4701 = vunpack.c.l.b16 %v4633
  %v4702 = vunpack.c.l.b16 %v4634
  %v4703 = vunpack.c.l.b16 %v4635
  %v4704 = vunpack.c.l.b16 %v4636
  %v4705 = vunpack.c.l.b16 %v4637
  %v4706 = vunpack.c.l.b16 %v4638
  %v4707 = vunpack.c.l.b16 %v4639
  %v4708 = vunpack.c.l.b16 %v4640
  %v4709 = vunpack.c.l.b16 %v4641
  %v4710 = vunpack.c.l.b16 %v4642
  %v4711 = vunpack.c.l.b16 %v4643
  %v4712 = vunpack.c.l.b16 %v4644
  %v4713 = vunpack.c.l.b16 %v4645
  %v4714 = vunpack.c.l.b16 %v4646
  %v4715 = vunpack.c.l.b16 %v4647
  %v4716 = vunpack.c.l.b16 %v4648
  %v4717 = vunpack.c.l.b16 %v4649
  %v4718 = vunpack.c.l.b16 %v4650
  %v4719 = vunpack.c.l.b16 %v4651
  %v4720 = vunpack.c.l.b16 %v4652
  %v4721 = vunpack.c.l.b16 %v4653
  %v4722 = vunpack.c.l.b16 %v4654
  %v4723 = vunpack.c.l.b16 %v4655
  %v4724 = vunpack.c.l.b16 %v4656
  %v4725 = vunpack.c.l.b16 %v4657
  %v4726 = vunpack.c.l.b16 %v4658
  %v4727 = vpack.c.b16 %v4696, %v4695
  %v4728 = vpack.c.b16 %v4698, %v4697
  %v4729 = vpack.c.b16 %v4700, %v4699
  %v4730 = vpack.c.b16 %v4702, %v4701
  %v4731 = vpack.c.b16 %v4704, %v4703
  %v4732 = vpack.c.b16 %v4706, %v4705
  %v4733 = vpack.c.b16 %v4708, %v4707
  %v4734 = vpack.c.b16 %v4710, %v4709
  %v4735 = vpack.c.b16 %v4712, %v4711
  %v4736 = vpack.c.b16 %v4714, %v4713
  %v4737 = vpack.c.b16 %v4716, %v4715
  %v4738 = vpack.c.b16 %v4718, %v4717
  %v4739 = vpack.c.b16 %v4720, %v4719
  %v4740 = vpack.c.b16 %v4722, %v4721
  %v4741 = vpack.c.b16 %v4724, %v4723
  %v4742 = vpack.c.b16 %v4726, %v4725
  %4759 = vmatpush.bf16.msra.mxu0 %v4734
  %4760 = vmatpush.bf16.msra.mxu0 %v4733
  %4761 = vmatpush.bf16.msra.mxu0 %v4732
  %4762 = vmatpush.bf16.msra.mxu0 %v4731
  %4763 = vmatpush.bf16.msra.mxu0 %v4730
  %4764 = vmatpush.bf16.msra.mxu0 %v4729
  %4765 = vmatpush.bf16.msra.mxu0 %v4728
  %4766 = vmatpush.bf16.msra.mxu0 %v4727
  %4767 = vmatmul.bf16.gmra.mxu0 %v4625
  %v4768 = vpop.f32.mrf.mxu0
  %v4769 = vadd.f32 %v4661, %v4768
  %v4770 = vpop.f32.mrf.mxu0
  %4771 = vdwg.mxu0
  %4772 = vmatpush.bf16.msra.mxu0 %v4742
  %4773 = vmatpush.bf16.msra.mxu0 %v4741
  %4774 = vmatpush.bf16.msra.mxu0 %v4740
  %4775 = vmatpush.bf16.msra.mxu0 %v4739
  %4776 = vmatpush.bf16.msra.mxu0 %v4738
  %4777 = vmatpush.bf16.msra.mxu0 %v4737
  %4778 = vmatpush.bf16.msra.mxu0 %v4736
  %4779 = vmatpush.bf16.msra.mxu0 %v4735
  %4780 = vmatmul.bf16.gmra.mxu0 %v4626
  %v4781 = vpop.f32.mrf.mxu0
  %v4782 = vadd.f32 %v4769, %v4781
  %v4783 = vpop.f32.mrf.mxu0
  %4784 = vdwg.mxu0
  %v4785 = vmul.f32 %v4782, %v4782
  %4786 = vadd.xlane.f32.xlu0 %v4785
  %v4787 = vpop.xlane.xlu0 %4786
  %v4788 = vmax.f32 %v4787, 1e-24
  %v4789 = vrsqrt.pop %v4788
  %v4790 = vmul.f32 %v4789, %v4788
  %v4791 = vmul.f32 %v4790, %v4789
  %v4792 = vmul.f32 0.5, %v4791
  %v4793 = vsub.f32 1.5, %v4792
  %v4794 = vmul.f32 %v4789, %v4793
  %vm4795 = vweird.f32 %v4788
  %vm4796 = vweird.f32 %v4789
  %vm4797 = vmor %vm4795, %vm4796
  %v4798 = vsel %vm4797, %v4789, %v4794
  %v4799 = vmul.f32 %v4782, %v4798
  %4800 = vst [vmem:[%s9] sm:$0xff] %v4799
  // Predicated region
  $region38: #{moco_forward.4} parent=0 // pred_check
    _
  $region39: #{moco_forward.4} parent=0 // pred_check_branch
    %4802 = sbr.rel (0) target = $region41
  $region40: #{moco_forward.4} parent=0 // pred_region
    _
  $region41: #{moco_forward.4} parent=0 // pred_fallthru
    _
  // Predicated region
  $region42: #{moco_forward.4} parent=0 // pred_check
    _
  $region43: #{moco_forward.4} parent=0 // pred_check_branch
    %4804 = sbr.rel (0) target = $region45
  $region44: #{moco_forward.4} parent=0 // pred_region
    _
  $region45: #{moco_forward.4} parent=0 // pred_fallthru
    _

</llo_original>
